<compile_context>
chip_gen: v6e
topology: v6e:2x2x1
jax: 0.10.0
libtpu: 0.0.40
codegen_flags: <defaults>
</compile_context>

<pallas_src>
import functools
import math

import jax
import jax.numpy as jnp
import numpy as np
from jax.experimental import pallas as pl
from jax.experimental.pallas import tpu as pltpu


def _layernorm(x, g, b, eps=1e-5):
    mu = jnp.mean(x, axis=-1, keepdims=True)
    var = jnp.mean((x - mu) ** 2, axis=-1, keepdims=True)
    return (x - mu) * jax.lax.rsqrt(var + eps) * g + b


def cross_attention_kernel(
    rgb_ref, ir_ref,
    ln1_g_ref, ln1_b_ref, ln2_g_ref, ln2_b_ref,
    wq_vis_ref, bq_vis_ref, wk_vis_ref, bk_vis_ref, wv_vis_ref, bv_vis_ref,
    wq_ir_ref, bq_ir_ref, wk_ir_ref, bk_ir_ref, wv_ir_ref, bv_ir_ref,
    wo_vis_ref, bo_vis_ref, wo_ir_ref, bo_ir_ref,
    out_vis_ref, out_ir_ref,
    *, num_heads, d_k, tb, n_tok, mxu_dtype, approx_recip,
):
    d_model = num_heads * d_k
    rows = tb * n_tok

    def mm(a, w_ref, b_ref):
        # `a` must already be in mxu_dtype; weights are pre-cast at param prep
        # (no per-step VPU weight cast, half the weight DMA when bf16).
        # f32 accumulation on the MXU either way.
        return jnp.dot(a, w_ref[...], preferred_element_type=jnp.float32) + b_ref[...]

    # LayerNorm on (tb*n, d): tokens are independent, so flatten batch into the
    # sublane axis to fill vregs and feed wide matmuls.  Element-wise math
    # stays f32 on all generations (v5e has no bf16 VPU/EUP).
    rgb = _layernorm(rgb_ref[...].reshape(rows, d_model).astype(jnp.float32),
                     ln1_g_ref[...], ln1_b_ref[...])
    ir = _layernorm(ir_ref[...].reshape(rows, d_model).astype(jnp.float32),
                    ln2_g_ref[...], ln2_b_ref[...])
    rgb_m = rgb.astype(mxu_dtype)
    ir_m = ir.astype(mxu_dtype)

    # Full-width (d, d) projections: one wide MXU matmul per stream/projection.
    # The 1/sqrt(d_k) attention scale is folded into the que_proj weights.
    q_vis = mm(rgb_m, wq_vis_ref, bq_vis_ref)
    k_vis = mm(rgb_m, wk_vis_ref, bk_vis_ref)
    v_vis = mm(rgb_m, wv_vis_ref, bv_vis_ref)
    q_ir = mm(ir_m, wq_ir_ref, bq_ir_ref)
    k_ir = mm(ir_m, wk_ir_ref, bk_ir_ref)
    v_ir = mm(ir_m, wv_ir_ref, bv_ir_ref)

    def split_heads(x):
        # (rows, d) -> (h*tb, n, d_k) with merged (head, batch) batch index
        # m = hi*tb + b.  Static lane slices + leading-axis concat only
        # (no minor-dim-splitting reshape, no multi-batch-dim dot_general).
        parts = [x[:, hi * d_k:(hi + 1) * d_k].reshape(tb, n_tok, d_k)
                 for hi in range(num_heads)]
        return jnp.concatenate(parts, axis=0)

    def merge_heads(o):
        # (h*tb, n, d_k) -> (rows, d); heads concatenated along lanes so the
        # output projection is a single full-K (d_model) MXU contraction.
        parts = [o[hi * tb:(hi + 1) * tb].reshape(rows, d_k)
                 for hi in range(num_heads)]
        return jnp.concatenate(parts, axis=-1)

    def attention(q, k, v):
        # q/k/v: (h*tb, n, d_k) — one batched einsum over ALL (head, batch)
        # pairs at once (previously 4*h small dispatches per grid step).
        # NOTE: for very large n_tok (>= ~1k) this should become a kv-blocked
        # online-softmax loop to bound the (h*tb, n, n) score intermediate
        # (matters first on v7x's 64 MiB VMEM).
        s = jnp.einsum('bqd,bkd->bqk', q.astype(mxu_dtype), k.astype(mxu_dtype),
                       preferred_element_type=jnp.float32)
        s = s - jnp.max(s, axis=-1, keepdims=True)
        p = jnp.exp(s)                                    # f32 exp (v5e-safe)
        denom = jnp.sum(p, axis=-1, keepdims=True)
        if approx_recip:
            # EUP reciprocal (free VLIW slot) — production bf16 path only.
            p = p * pl.reciprocal(denom, approx=True)
        else:
            # Exact division — f32 verification path.
            p = p / denom
        # attn_drop / resid_drop are identity at inference.
        return jnp.einsum('bqk,bkd->bqd', p.astype(mxu_dtype), v.astype(mxu_dtype),
                          preferred_element_type=jnp.float32)

    # att_vis = softmax(q_ir @ k_vis^T / sqrt(d_k)) with values v_vis;
    # att_ir  = softmax(q_vis @ k_ir^T / sqrt(d_k)) with values v_ir.
    o_vis = merge_heads(
        attention(split_heads(q_ir), split_heads(k_vis), split_heads(v_vis)))
    o_ir = merge_heads(
        attention(split_heads(q_vis), split_heads(k_ir), split_heads(v_ir)))

    out_vis = mm(o_vis.astype(mxu_dtype), wo_vis_ref, bo_vis_ref)
    out_ir = mm(o_ir.astype(mxu_dtype), wo_ir_ref, bo_ir_ref)

    out_vis_ref[...] = out_vis.reshape(tb, n_tok, d_model).astype(out_vis_ref.dtype)
    out_ir_ref[...] = out_ir.reshape(tb, n_tok, d_model).astype(out_ir_ref.dtype)


def _pick_batch_block(b_s, n, d, vmem_cap_bytes):
    """Pick tb = batch elements per grid step.

    Priorities: (1) f32 activation tile (tb, n, d) stays within a fraction of
    device VMEM; (2) keep >= 2 grid steps when b_s allows (megacore / v7x dual
    TensorCore); (3) prefer rows = tb*n that are multiples of 512 (v5e's 4x128
    MXUs) or 256 (v6e/v7x 256-wide MXU) and an even number of grid steps;
    (4) otherwise the largest divisor of b_s that fits.
    """
    target_bytes = max(2 << 20, min(16 << 20, vmem_cap_bytes // 8))
    per_batch_bytes = max(n * d * 4, 1)
    tb_cap = max(1, min(b_s, target_bytes // per_batch_bytes))
    if b_s >= 2:
        tb_cap = min(tb_cap, b_s // 2)
    tb_cap = max(tb_cap, 1)

    best_tb, best_score = 1, (-1, -1, -1, -1)
    for tb in range(1, tb_cap + 1):
        if b_s % tb:
            continue
        rows = tb * n
        steps = b_s // tb
        score = (int(rows % 512 == 0), int(rows % 256 == 0),
                 int(steps % 2 == 0), tb)
        if score > best_score:
            best_tb, best_score = tb, score
    return best_tb


@functools.partial(jax.jit, static_argnames=("num_heads",))
def cross_attention_pallas(rgb, ir, kparams, num_heads):
    b_s, n, d = rgb.shape
    d_k = d // num_heads

    # MXU operand dtype is taken from the pre-cast projection weights
    # (kparams[4] is the first (d, d) weight): bf16 => bf16 MXU operands with
    # f32 accumulation (production); f32 => full-f32 verification path.
    mxu_dtype = jnp.dtype(kparams[4].dtype)
    approx_recip = mxu_dtype != jnp.dtype(jnp.float32)

    # Honest per-device VMEM budget (v5e/v6e 128 MiB, v7x 64 MiB per core).
    try:
        info = pltpu.get_tpu_info()
        vmem_cap = int(getattr(info, "vmem_capacity_bytes", 64 << 20))
    except Exception:
        vmem_cap = 64 << 20  # conservative fallback, safe on every generation

    tb = _pick_batch_block(b_s, n, d, vmem_cap)

    kernel = functools.partial(
        cross_attention_kernel,
        num_heads=num_heads, d_k=d_k, tb=tb, n_tok=n,
        mxu_dtype=mxu_dtype, approx_recip=approx_recip)

    tok_spec = pl.BlockSpec((tb, n, d), lambda b: (b, 0, 0))

    weight_bytes = sum(int(np.prod(p_.shape)) * jnp.dtype(p_.dtype).itemsize
                       for p_ in kparams)
    # v7x: double-buffered resident weights can dominate its 64 MiB VMEM; when
    # they would eat > 1/3 of device VMEM, single-buffer them (constant
    # index_map => nothing is re-fetched between grid steps anyway).
    single_buffer_weights = 2 * weight_bytes > vmem_cap // 3

    def whole(arr):
        nd = arr.ndim
        if single_buffer_weights:
            return pl.BlockSpec(arr.shape, lambda b, _nd=nd: (0,) * _nd,
                                pipeline_mode=pl.Buffered(1))
        return pl.BlockSpec(arr.shape, lambda b, _nd=nd: (0,) * _nd)

    in_specs = [tok_spec, tok_spec] + [whole(p_) for p_ in kparams]
    out_specs = [tok_spec, tok_spec]
    out_shape = (
        jax.ShapeDtypeStruct((b_s, n, d), rgb.dtype),
        jax.ShapeDtypeStruct((b_s, n, d), ir.dtype),
    )

    # VMEM estimate: resident weights (+ double-buffering unless disabled),
    # double-buffered token in/out tiles, f32 q/k/v + split/merge intermediates
    # and the (h*tb, n, n) score/prob tensors for both streams, with headroom.
    # NOTE: models with d_model not a multiple of 128 pay lane padding here;
    # padding d_model to 128 at the wrapper level would remove masked stores.
    act_tile = tb * n * d * 4
    score_tile = num_heads * tb * n * n * 4
    w_mult = 1 if single_buffer_weights else 2
    vmem_est = int(1.3 * (w_mult * weight_bytes
                          + 4 * 2 * act_tile
                          + 22 * act_tile
                          + 4 * score_tile))
    vmem = int(min(max(vmem_est, 32 << 20), max(vmem_cap - (8 << 20), 16 << 20)))

    return pl.pallas_call(
        kernel,
        grid=(b_s // tb,),
        in_specs=in_specs,
        out_specs=out_specs,
        out_shape=out_shape,
        compiler_params=pltpu.CompilerParams(
            dimension_semantics=("parallel",),
            vmem_limit_bytes=vmem,
        ),
    )(rgb, ir, *kparams)


# ----------------------- parameter setup (plain JAX glue) -----------------------

_LIN_NAMES = [
    "que_proj_vis", "key_proj_vis", "val_proj_vis",
    "que_proj_ir", "key_proj_ir", "val_proj_ir",
    "out_proj_vis", "out_proj_ir",
]


def init_raw_params(key, d_model):
    """Matches CrossAttention.init_weights: Linear w ~ N(0, 0.001), b = 0; LN = (1, 0)."""
    keys = jax.random.split(key, len(_LIN_NAMES))
    p = {}
    for k, name in zip(keys, _LIN_NAMES):
        p[name + "_w"] = 0.001 * jax.random.normal(k, (d_model, d_model), jnp.float32)
        p[name + "_b"] = jnp.zeros((d_model,), jnp.float32)
    p["ln1_g"] = jnp.ones((d_model,), jnp.float32)
    p["ln1_b"] = jnp.zeros((d_model,), jnp.float32)
    p["ln2_g"] = jnp.ones((d_model,), jnp.float32)
    p["ln2_b"] = jnp.zeros((d_model,), jnp.float32)
    return p


def to_kernel_params(p, d_model, h, param_dtype=jnp.bfloat16):
    """Kernel-layout parameters.

    * torch Linear computes y = x @ W.T + b, so the kernel weight is W.T.
    * the 1/sqrt(d_k) attention scale is folded into the que_proj weights and
      biases (static prep, zero runtime cost).
    * the 8 (d, d) weights are pre-cast to `param_dtype` (bf16 production
      default): half the weight HBM->VMEM DMA and resident VMEM, no per-step
      VPU weight casts, f32 accumulation kept on the MXU.
    * biases and LayerNorm params stay f32 (applied to f32 values).
    """
    dk = d_model // h
    scale = 1.0 / math.sqrt(dk)

    def row(v):
        return v.reshape(1, d_model)

    def w(m):
        return m.T.astype(param_dtype)

    return [
        row(p["ln1_g"]), row(p["ln1_b"]), row(p["ln2_g"]), row(p["ln2_b"]),
        w(p["que_proj_vis_w"] * scale), row(p["que_proj_vis_b"] * scale),
        w(p["key_proj_vis_w"]), row(p["key_proj_vis_b"]),
        w(p["val_proj_vis_w"]), row(p["val_proj_vis_b"]),
        w(p["que_proj_ir_w"] * scale), row(p["que_proj_ir_b"] * scale),
        w(p["key_proj_ir_w"]), row(p["key_proj_ir_b"]),
        w(p["val_proj_ir_w"]), row(p["val_proj_ir_b"]),
        w(p["out_proj_vis_w"]), row(p["out_proj_vis_b"]),
        w(p["out_proj_ir_w"]), row(p["out_proj_ir_b"]),
    ]


# ----------------------- pure-JAX reference (for verification) ------------------

def reference_forward(rgb, ir, p, h):
    b_s, n, d = rgb.shape
    dk = d // h

    def ln(x, g, b):
        mu = x.mean(-1, keepdims=True)
        var = ((x - mu) ** 2).mean(-1, keepdims=True)
        return (x - mu) / jnp.sqrt(var + 1e-5) * g + b

    def linear(x, w, b):
        return x @ w.T + b

    rgb_n = ln(rgb, p["ln1_g"], p["ln1_b"])
    ir_n = ln(ir, p["ln2_g"], p["ln2_b"])

    def split_q(y):  # (b, n, d) -> (b, h, n, dk)
        return y.reshape(b_s, n, h, dk).transpose(0, 2, 1, 3)

    def split_k(y):  # (b, n, d) -> (b, h, dk, n)
        return y.reshape(b_s, n, h, dk).transpose(0, 2, 3, 1)

    q_vis = split_q(linear(rgb_n, p["que_proj_vis_w"], p["que_proj_vis_b"]))
    k_vis = split_k(linear(rgb_n, p["key_proj_vis_w"], p["key_proj_vis_b"]))
    v_vis = split_q(linear(rgb_n, p["val_proj_vis_w"], p["val_proj_vis_b"]))
    q_ir = split_q(linear(ir_n, p["que_proj_ir_w"], p["que_proj_ir_b"]))
    k_ir = split_k(linear(ir_n, p["key_proj_ir_w"], p["key_proj_ir_b"]))
    v_ir = split_q(linear(ir_n, p["val_proj_ir_w"], p["val_proj_ir_b"]))

    att_vis = jax.nn.softmax((q_ir @ k_vis) / np.sqrt(dk), axis=-1)
    att_ir = jax.nn.softmax((q_vis @ k_ir) / np.sqrt(dk), axis=-1)

    out_vis = (att_vis @ v_vis).transpose(0, 2, 1, 3).reshape(b_s, n, h * dk)
    out_ir = (att_ir @ v_ir).transpose(0, 2, 1, 3).reshape(b_s, n, h * dk)
    out_vis = linear(out_vis, p["out_proj_vis_w"], p["out_proj_vis_b"])
    out_ir = linear(out_ir, p["out_proj_ir_w"], p["out_proj_ir_b"])
    return out_vis, out_ir


if __name__ == "__main__":
    B, N, D_MODEL, H = 2, 16, 32, 4  # x = [rgb_fea_flat, ir_fea_flat], each (B, N, D_MODEL)

    key = jax.random.PRNGKey(0)
    k_rgb, k_ir, k_par = jax.random.split(key, 3)
    rgb = jax.random.normal(k_rgb, (B, N, D_MODEL), jnp.float32)
    ir = jax.random.normal(k_ir, (B, N, D_MODEL), jnp.float32)

    raw = init_raw_params(k_par, D_MODEL)
    ref_vis, ref_ir = reference_forward(rgb, ir, raw, H)

    # 1) f32 verification path (exact softmax division, tight tolerances).
    kp_f32 = to_kernel_params(raw, D_MODEL, H, param_dtype=jnp.float32)
    out_vis, out_ir = cross_attention_pallas(rgb, ir, kp_f32, num_heads=H)
    jax.block_until_ready((out_vis, out_ir))
    np.testing.assert_allclose(np.asarray(out_vis), np.asarray(ref_vis),
                               rtol=1e-3, atol=1e-6)
    np.testing.assert_allclose(np.asarray(out_ir), np.asarray(ref_ir),
                               rtol=1e-3, atol=1e-6)

    # 2) production path: bf16 MXU operands (f32 accumulation), approx recip.
    kp_bf16 = to_kernel_params(raw, D_MODEL, H, param_dtype=jnp.bfloat16)
    out_vis_b, out_ir_b = cross_attention_pallas(rgb, ir, kp_bf16, num_heads=H)
    jax.block_until_ready((out_vis_b, out_ir_b))
    np.testing.assert_allclose(np.asarray(out_vis_b), np.asarray(ref_vis),
                               rtol=1.5e-1, atol=2e-6)
    np.testing.assert_allclose(np.asarray(out_ir_b), np.asarray(ref_ir),
                               rtol=1.5e-1, atol=2e-6)

    print("KERNEL_OK")
</pallas_src>

<mosaic_0001>
module attributes {stable_mosaic.version = 11 : i64} {
  func.func @cross_attention_kernel(%arg0: i32, %arg1: memref<1x16x32xf32, #tpu.memory_space<vmem>>, %arg2: memref<1x16x32xf32, #tpu.memory_space<vmem>>, %arg3: memref<1x32xf32, #tpu.memory_space<vmem>>, %arg4: memref<1x32xf32, #tpu.memory_space<vmem>>, %arg5: memref<1x32xf32, #tpu.memory_space<vmem>>, %arg6: memref<1x32xf32, #tpu.memory_space<vmem>>, %arg7: memref<32x32xf32, #tpu.memory_space<vmem>>, %arg8: memref<1x32xf32, #tpu.memory_space<vmem>>, %arg9: memref<32x32xf32, #tpu.memory_space<vmem>>, %arg10: memref<1x32xf32, #tpu.memory_space<vmem>>, %arg11: memref<32x32xf32, #tpu.memory_space<vmem>>, %arg12: memref<1x32xf32, #tpu.memory_space<vmem>>, %arg13: memref<32x32xf32, #tpu.memory_space<vmem>>, %arg14: memref<1x32xf32, #tpu.memory_space<vmem>>, %arg15: memref<32x32xf32, #tpu.memory_space<vmem>>, %arg16: memref<1x32xf32, #tpu.memory_space<vmem>>, %arg17: memref<32x32xf32, #tpu.memory_space<vmem>>, %arg18: memref<1x32xf32, #tpu.memory_space<vmem>>, %arg19: memref<32x32xf32, #tpu.memory_space<vmem>>, %arg20: memref<1x32xf32, #tpu.memory_space<vmem>>, %arg21: memref<32x32xf32, #tpu.memory_space<vmem>>, %arg22: memref<1x32xf32, #tpu.memory_space<vmem>>, %arg23: memref<1x16x32xf32, #tpu.memory_space<vmem>>, %arg24: memref<1x16x32xf32, #tpu.memory_space<vmem>>) attributes {dimension_semantics = [#tpu.dimension_semantics<parallel>], iteration_bounds = array<i64: 2>, scalar_prefetch = 0 : i64, scratch_operands = 0 : i64, tpu.core_type = #tpu.core_type<tc>, window_params = [{transform_indices = @transform_0, window_bounds = array<i64: 1, 16, 32>}, {transform_indices = @transform_1, window_bounds = array<i64: 1, 16, 32>}, {pipeline_mode = #tpu.pipeline_mode<synchronous>, transform_indices = @transform_2, window_bounds = array<i64: 1, 32>}, {pipeline_mode = #tpu.pipeline_mode<synchronous>, transform_indices = @transform_3, window_bounds = array<i64: 1, 32>}, {pipeline_mode = #tpu.pipeline_mode<synchronous>, transform_indices = @transform_4, window_bounds = array<i64: 1, 32>}, {pipeline_mode = #tpu.pipeline_mode<synchronous>, transform_indices = @transform_5, window_bounds = array<i64: 1, 32>}, {pipeline_mode = #tpu.pipeline_mode<synchronous>, transform_indices = @transform_6, window_bounds = array<i64: 32, 32>}, {pipeline_mode = #tpu.pipeline_mode<synchronous>, transform_indices = @transform_7, window_bounds = array<i64: 1, 32>}, {pipeline_mode = #tpu.pipeline_mode<synchronous>, transform_indices = @transform_8, window_bounds = array<i64: 32, 32>}, {pipeline_mode = #tpu.pipeline_mode<synchronous>, transform_indices = @transform_9, window_bounds = array<i64: 1, 32>}, {pipeline_mode = #tpu.pipeline_mode<synchronous>, transform_indices = @transform_10, window_bounds = array<i64: 32, 32>}, {pipeline_mode = #tpu.pipeline_mode<synchronous>, transform_indices = @transform_11, window_bounds = array<i64: 1, 32>}, {pipeline_mode = #tpu.pipeline_mode<synchronous>, transform_indices = @transform_12, window_bounds = array<i64: 32, 32>}, {pipeline_mode = #tpu.pipeline_mode<synchronous>, transform_indices = @transform_13, window_bounds = array<i64: 1, 32>}, {pipeline_mode = #tpu.pipeline_mode<synchronous>, transform_indices = @transform_14, window_bounds = array<i64: 32, 32>}, {pipeline_mode = #tpu.pipeline_mode<synchronous>, transform_indices = @transform_15, window_bounds = array<i64: 1, 32>}, {pipeline_mode = #tpu.pipeline_mode<synchronous>, transform_indices = @transform_16, window_bounds = array<i64: 32, 32>}, {pipeline_mode = #tpu.pipeline_mode<synchronous>, transform_indices = @transform_17, window_bounds = array<i64: 1, 32>}, {pipeline_mode = #tpu.pipeline_mode<synchronous>, transform_indices = @transform_18, window_bounds = array<i64: 32, 32>}, {pipeline_mode = #tpu.pipeline_mode<synchronous>, transform_indices = @transform_19, window_bounds = array<i64: 1, 32>}, {pipeline_mode = #tpu.pipeline_mode<synchronous>, transform_indices = @transform_20, window_bounds = array<i64: 32, 32>}, {pipeline_mode = #tpu.pipeline_mode<synchronous>, transform_indices = @transform_21, window_bounds = array<i64: 1, 32>}, {transform_indices = @transform_22, window_bounds = array<i64: 1, 16, 32>}, {transform_indices = @transform_23, window_bounds = array<i64: 1, 16, 32>}]} {
    %c0 = arith.constant 0 : index
    %c0_0 = arith.constant 0 : index
    %c0_1 = arith.constant 0 : index
    %0 = vector.load %arg1[%c0, %c0_0, %c0_1] : memref<1x16x32xf32, #tpu.memory_space<vmem>>, vector<1x16x32xf32>
    %1 = vector.shape_cast %0 : vector<1x16x32xf32> to vector<16x32xf32>
    %c0_2 = arith.constant 0 : index
    %c0_3 = arith.constant 0 : index
    %2 = vector.load %arg3[%c0_2, %c0_3] : memref<1x32xf32, #tpu.memory_space<vmem>>, vector<1x32xf32>
    %c0_4 = arith.constant 0 : index
    %c0_5 = arith.constant 0 : index
    %3 = vector.load %arg4[%c0_4, %c0_5] : memref<1x32xf32, #tpu.memory_space<vmem>>, vector<1x32xf32>
    %cst = arith.constant dense<0.000000e+00> : vector<16xf32>
    %4 = vector.multi_reduction <add>, %1, %cst [1] : vector<16x32xf32> to vector<16xf32>
    %5 = vector.shape_cast %4 : vector<16xf32> to vector<16x1xf32>
    %cst_6 = arith.constant 3.200000e+01 : f32
    %6 = vector.broadcast %cst_6 : f32 to vector<16x1xf32>
    %7 = arith.divf %5, %6 : vector<16x1xf32>
    %8 = vector.broadcast %7 : vector<16x1xf32> to vector<16x32xf32>
    %9 = arith.subf %1, %8 : vector<16x32xf32>
    %10 = arith.mulf %9, %9 : vector<16x32xf32>
    %cst_7 = arith.constant dense<0.000000e+00> : vector<16xf32>
    %11 = vector.multi_reduction <add>, %10, %cst_7 [1] : vector<16x32xf32> to vector<16xf32>
    %12 = vector.shape_cast %11 : vector<16xf32> to vector<16x1xf32>
    %cst_8 = arith.constant 3.200000e+01 : f32
    %13 = vector.broadcast %cst_8 : f32 to vector<16x1xf32>
    %14 = arith.divf %12, %13 : vector<16x1xf32>
    %15 = vector.broadcast %7 : vector<16x1xf32> to vector<16x32xf32>
    %16 = arith.subf %1, %15 : vector<16x32xf32>
    %cst_9 = arith.constant 9.99999974E-6 : f32
    %17 = vector.broadcast %cst_9 : f32 to vector<16x1xf32>
    %18 = arith.addf %14, %17 : vector<16x1xf32>
    %19 = math.rsqrt %18 : vector<16x1xf32>
    %20 = vector.broadcast %19 : vector<16x1xf32> to vector<16x32xf32>
    %21 = arith.mulf %16, %20 : vector<16x32xf32>
    %22 = vector.broadcast %2 : vector<1x32xf32> to vector<16x32xf32>
    %23 = arith.mulf %21, %22 : vector<16x32xf32>
    %24 = vector.broadcast %3 : vector<1x32xf32> to vector<16x32xf32>
    %25 = arith.addf %23, %24 : vector<16x32xf32>
    %c0_10 = arith.constant 0 : index
    %c0_11 = arith.constant 0 : index
    %c0_12 = arith.constant 0 : index
    %26 = vector.load %arg2[%c0_10, %c0_11, %c0_12] : memref<1x16x32xf32, #tpu.memory_space<vmem>>, vector<1x16x32xf32>
    %27 = vector.shape_cast %26 : vector<1x16x32xf32> to vector<16x32xf32>
    %c0_13 = arith.constant 0 : index
    %c0_14 = arith.constant 0 : index
    %28 = vector.load %arg5[%c0_13, %c0_14] : memref<1x32xf32, #tpu.memory_space<vmem>>, vector<1x32xf32>
    %c0_15 = arith.constant 0 : index
    %c0_16 = arith.constant 0 : index
    %29 = vector.load %arg6[%c0_15, %c0_16] : memref<1x32xf32, #tpu.memory_space<vmem>>, vector<1x32xf32>
    %cst_17 = arith.constant dense<0.000000e+00> : vector<16xf32>
    %30 = vector.multi_reduction <add>, %27, %cst_17 [1] : vector<16x32xf32> to vector<16xf32>
    %31 = vector.shape_cast %30 : vector<16xf32> to vector<16x1xf32>
    %cst_18 = arith.constant 3.200000e+01 : f32
    %32 = vector.broadcast %cst_18 : f32 to vector<16x1xf32>
    %33 = arith.divf %31, %32 : vector<16x1xf32>
    %34 = vector.broadcast %33 : vector<16x1xf32> to vector<16x32xf32>
    %35 = arith.subf %27, %34 : vector<16x32xf32>
    %36 = arith.mulf %35, %35 : vector<16x32xf32>
    %cst_19 = arith.constant dense<0.000000e+00> : vector<16xf32>
    %37 = vector.multi_reduction <add>, %36, %cst_19 [1] : vector<16x32xf32> to vector<16xf32>
    %38 = vector.shape_cast %37 : vector<16xf32> to vector<16x1xf32>
    %cst_20 = arith.constant 3.200000e+01 : f32
    %39 = vector.broadcast %cst_20 : f32 to vector<16x1xf32>
    %40 = arith.divf %38, %39 : vector<16x1xf32>
    %41 = vector.broadcast %33 : vector<16x1xf32> to vector<16x32xf32>
    %42 = arith.subf %27, %41 : vector<16x32xf32>
    %cst_21 = arith.constant 9.99999974E-6 : f32
    %43 = vector.broadcast %cst_21 : f32 to vector<16x1xf32>
    %44 = arith.addf %40, %43 : vector<16x1xf32>
    %45 = math.rsqrt %44 : vector<16x1xf32>
    %46 = vector.broadcast %45 : vector<16x1xf32> to vector<16x32xf32>
    %47 = arith.mulf %42, %46 : vector<16x32xf32>
    %48 = vector.broadcast %28 : vector<1x32xf32> to vector<16x32xf32>
    %49 = arith.mulf %47, %48 : vector<16x32xf32>
    %50 = vector.broadcast %29 : vector<1x32xf32> to vector<16x32xf32>
    %51 = arith.addf %49, %50 : vector<16x32xf32>
    %c0_22 = arith.constant 0 : index
    %c0_23 = arith.constant 0 : index
    %52 = vector.load %arg7[%c0_22, %c0_23] : memref<32x32xf32, #tpu.memory_space<vmem>>, vector<32x32xf32>
    %cst_24 = arith.constant dense<0.000000e+00> : vector<16x32xf32>
    %53 = tpu.matmul %25, %52, %cst_24 {dimension_numbers = #tpu.dot_dimension_numbers<[1], [0], [0], [1], [0, 0, 1, 1], [], []>} : vector<16x32xf32>, vector<32x32xf32>, vector<16x32xf32> -> vector<16x32xf32>
    %c0_25 = arith.constant 0 : index
    %c0_26 = arith.constant 0 : index
    %54 = vector.load %arg8[%c0_25, %c0_26] : memref<1x32xf32, #tpu.memory_space<vmem>>, vector<1x32xf32>
    %55 = vector.broadcast %54 : vector<1x32xf32> to vector<16x32xf32>
    %56 = arith.addf %53, %55 : vector<16x32xf32>
    %c0_27 = arith.constant 0 : index
    %c0_28 = arith.constant 0 : index
    %57 = vector.load %arg9[%c0_27, %c0_28] : memref<32x32xf32, #tpu.memory_space<vmem>>, vector<32x32xf32>
    %cst_29 = arith.constant dense<0.000000e+00> : vector<16x32xf32>
    %58 = tpu.matmul %25, %57, %cst_29 {dimension_numbers = #tpu.dot_dimension_numbers<[1], [0], [0], [1], [0, 0, 1, 1], [], []>} : vector<16x32xf32>, vector<32x32xf32>, vector<16x32xf32> -> vector<16x32xf32>
    %c0_30 = arith.constant 0 : index
    %c0_31 = arith.constant 0 : index
    %59 = vector.load %arg10[%c0_30, %c0_31] : memref<1x32xf32, #tpu.memory_space<vmem>>, vector<1x32xf32>
    %60 = vector.broadcast %59 : vector<1x32xf32> to vector<16x32xf32>
    %61 = arith.addf %58, %60 : vector<16x32xf32>
    %c0_32 = arith.constant 0 : index
    %c0_33 = arith.constant 0 : index
    %62 = vector.load %arg11[%c0_32, %c0_33] : memref<32x32xf32, #tpu.memory_space<vmem>>, vector<32x32xf32>
    %cst_34 = arith.constant dense<0.000000e+00> : vector<16x32xf32>
    %63 = tpu.matmul %25, %62, %cst_34 {dimension_numbers = #tpu.dot_dimension_numbers<[1], [0], [0], [1], [0, 0, 1, 1], [], []>} : vector<16x32xf32>, vector<32x32xf32>, vector<16x32xf32> -> vector<16x32xf32>
    %c0_35 = arith.constant 0 : index
    %c0_36 = arith.constant 0 : index
    %64 = vector.load %arg12[%c0_35, %c0_36] : memref<1x32xf32, #tpu.memory_space<vmem>>, vector<1x32xf32>
    %65 = vector.broadcast %64 : vector<1x32xf32> to vector<16x32xf32>
    %66 = arith.addf %63, %65 : vector<16x32xf32>
    %c0_37 = arith.constant 0 : index
    %c0_38 = arith.constant 0 : index
    %67 = vector.load %arg13[%c0_37, %c0_38] : memref<32x32xf32, #tpu.memory_space<vmem>>, vector<32x32xf32>
    %cst_39 = arith.constant dense<0.000000e+00> : vector<16x32xf32>
    %68 = tpu.matmul %51, %67, %cst_39 {dimension_numbers = #tpu.dot_dimension_numbers<[1], [0], [0], [1], [0, 0, 1, 1], [], []>} : vector<16x32xf32>, vector<32x32xf32>, vector<16x32xf32> -> vector<16x32xf32>
    %c0_40 = arith.constant 0 : index
    %c0_41 = arith.constant 0 : index
    %69 = vector.load %arg14[%c0_40, %c0_41] : memref<1x32xf32, #tpu.memory_space<vmem>>, vector<1x32xf32>
    %70 = vector.broadcast %69 : vector<1x32xf32> to vector<16x32xf32>
    %71 = arith.addf %68, %70 : vector<16x32xf32>
    %c0_42 = arith.constant 0 : index
    %c0_43 = arith.constant 0 : index
    %72 = vector.load %arg15[%c0_42, %c0_43] : memref<32x32xf32, #tpu.memory_space<vmem>>, vector<32x32xf32>
    %cst_44 = arith.constant dense<0.000000e+00> : vector<16x32xf32>
    %73 = tpu.matmul %51, %72, %cst_44 {dimension_numbers = #tpu.dot_dimension_numbers<[1], [0], [0], [1], [0, 0, 1, 1], [], []>} : vector<16x32xf32>, vector<32x32xf32>, vector<16x32xf32> -> vector<16x32xf32>
    %c0_45 = arith.constant 0 : index
    %c0_46 = arith.constant 0 : index
    %74 = vector.load %arg16[%c0_45, %c0_46] : memref<1x32xf32, #tpu.memory_space<vmem>>, vector<1x32xf32>
    %75 = vector.broadcast %74 : vector<1x32xf32> to vector<16x32xf32>
    %76 = arith.addf %73, %75 : vector<16x32xf32>
    %c0_47 = arith.constant 0 : index
    %c0_48 = arith.constant 0 : index
    %77 = vector.load %arg17[%c0_47, %c0_48] : memref<32x32xf32, #tpu.memory_space<vmem>>, vector<32x32xf32>
    %cst_49 = arith.constant dense<0.000000e+00> : vector<16x32xf32>
    %78 = tpu.matmul %51, %77, %cst_49 {dimension_numbers = #tpu.dot_dimension_numbers<[1], [0], [0], [1], [0, 0, 1, 1], [], []>} : vector<16x32xf32>, vector<32x32xf32>, vector<16x32xf32> -> vector<16x32xf32>
    %c0_50 = arith.constant 0 : index
    %c0_51 = arith.constant 0 : index
    %79 = vector.load %arg18[%c0_50, %c0_51] : memref<1x32xf32, #tpu.memory_space<vmem>>, vector<1x32xf32>
    %80 = vector.broadcast %79 : vector<1x32xf32> to vector<16x32xf32>
    %81 = arith.addf %78, %80 : vector<16x32xf32>
    %82 = vector.extract_strided_slice %71 {offsets = [0, 0], sizes = [16, 8], strides = [1, 1]} : vector<16x32xf32> to vector<16x8xf32>
    %83 = vector.shape_cast %82 : vector<16x8xf32> to vector<1x16x8xf32>
    %84 = vector.extract_strided_slice %71 {offsets = [0, 8], sizes = [16, 8], strides = [1, 1]} : vector<16x32xf32> to vector<16x8xf32>
    %85 = vector.shape_cast %84 : vector<16x8xf32> to vector<1x16x8xf32>
    %86 = vector.extract_strided_slice %71 {offsets = [0, 16], sizes = [16, 8], strides = [1, 1]} : vector<16x32xf32> to vector<16x8xf32>
    %87 = vector.shape_cast %86 : vector<16x8xf32> to vector<1x16x8xf32>
    %88 = vector.extract_strided_slice %71 {offsets = [0, 24], sizes = [16, 8], strides = [1, 1]} : vector<16x32xf32> to vector<16x8xf32>
    %89 = vector.shape_cast %88 : vector<16x8xf32> to vector<1x16x8xf32>
    %90 = tpu.concatenate %83, %85, %87, %89 in 0 : vector<1x16x8xf32>, vector<1x16x8xf32>, vector<1x16x8xf32>, vector<1x16x8xf32> -> vector<4x16x8xf32>
    %91 = vector.extract_strided_slice %61 {offsets = [0, 0], sizes = [16, 8], strides = [1, 1]} : vector<16x32xf32> to vector<16x8xf32>
    %92 = vector.shape_cast %91 : vector<16x8xf32> to vector<1x16x8xf32>
    %93 = vector.extract_strided_slice %61 {offsets = [0, 8], sizes = [16, 8], strides = [1, 1]} : vector<16x32xf32> to vector<16x8xf32>
    %94 = vector.shape_cast %93 : vector<16x8xf32> to vector<1x16x8xf32>
    %95 = vector.extract_strided_slice %61 {offsets = [0, 16], sizes = [16, 8], strides = [1, 1]} : vector<16x32xf32> to vector<16x8xf32>
    %96 = vector.shape_cast %95 : vector<16x8xf32> to vector<1x16x8xf32>
    %97 = vector.extract_strided_slice %61 {offsets = [0, 24], sizes = [16, 8], strides = [1, 1]} : vector<16x32xf32> to vector<16x8xf32>
    %98 = vector.shape_cast %97 : vector<16x8xf32> to vector<1x16x8xf32>
    %99 = tpu.concatenate %92, %94, %96, %98 in 0 : vector<1x16x8xf32>, vector<1x16x8xf32>, vector<1x16x8xf32>, vector<1x16x8xf32> -> vector<4x16x8xf32>
    %100 = vector.extract_strided_slice %66 {offsets = [0, 0], sizes = [16, 8], strides = [1, 1]} : vector<16x32xf32> to vector<16x8xf32>
    %101 = vector.shape_cast %100 : vector<16x8xf32> to vector<1x16x8xf32>
    %102 = vector.extract_strided_slice %66 {offsets = [0, 8], sizes = [16, 8], strides = [1, 1]} : vector<16x32xf32> to vector<16x8xf32>
    %103 = vector.shape_cast %102 : vector<16x8xf32> to vector<1x16x8xf32>
    %104 = vector.extract_strided_slice %66 {offsets = [0, 16], sizes = [16, 8], strides = [1, 1]} : vector<16x32xf32> to vector<16x8xf32>
    %105 = vector.shape_cast %104 : vector<16x8xf32> to vector<1x16x8xf32>
    %106 = vector.extract_strided_slice %66 {offsets = [0, 24], sizes = [16, 8], strides = [1, 1]} : vector<16x32xf32> to vector<16x8xf32>
    %107 = vector.shape_cast %106 : vector<16x8xf32> to vector<1x16x8xf32>
    %108 = tpu.concatenate %101, %103, %105, %107 in 0 : vector<1x16x8xf32>, vector<1x16x8xf32>, vector<1x16x8xf32>, vector<1x16x8xf32> -> vector<4x16x8xf32>
    "tpu.trace_start"() <{level = 10 : i32, message = "bqd,bkd->bqk"}> : () -> ()
    %cst_52 = arith.constant dense<0.000000e+00> : vector<4x16x16xf32>
    %109 = tpu.matmul %90, %99, %cst_52 {dimension_numbers = #tpu.dot_dimension_numbers<[2], [2], [1], [1], [0, 0, 0, 1, 1, 1], [0], [0]>} : vector<4x16x8xf32>, vector<4x16x8xf32>, vector<4x16x16xf32> -> vector<4x16x16xf32>
    "tpu.trace_stop"() : () -> ()
    %cst_53 = arith.constant dense<0xFF800000> : vector<4x16xf32>
    %110 = vector.multi_reduction <maximumf>, %109, %cst_53 [2] : vector<4x16x16xf32> to vector<4x16xf32>
    %111 = vector.shape_cast %110 : vector<4x16xf32> to vector<4x16x1xf32>
    %112 = vector.broadcast %111 : vector<4x16x1xf32> to vector<4x16x16xf32>
    %113 = arith.subf %109, %112 : vector<4x16x16xf32>
    %114 = math.exp %113 : vector<4x16x16xf32>
    %cst_54 = arith.constant dense<0.000000e+00> : vector<4x16xf32>
    %115 = vector.multi_reduction <add>, %114, %cst_54 [2] : vector<4x16x16xf32> to vector<4x16xf32>
    %116 = vector.shape_cast %115 : vector<4x16xf32> to vector<4x16x1xf32>
    %117 = vector.broadcast %116 : vector<4x16x1xf32> to vector<4x16x16xf32>
    %118 = arith.divf %114, %117 : vector<4x16x16xf32>
    "tpu.trace_start"() <{level = 10 : i32, message = "bqk,bkd->bqd"}> : () -> ()
    %cst_55 = arith.constant dense<0.000000e+00> : vector<4x16x8xf32>
    %119 = tpu.matmul %118, %108, %cst_55 {dimension_numbers = #tpu.dot_dimension_numbers<[2], [1], [1], [2], [0, 0, 0, 1, 1, 2], [0], [0]>} : vector<4x16x16xf32>, vector<4x16x8xf32>, vector<4x16x8xf32> -> vector<4x16x8xf32>
    "tpu.trace_stop"() : () -> ()
    %120 = vector.extract_strided_slice %119 {offsets = [0, 0, 0], sizes = [1, 16, 8], strides = [1, 1, 1]} : vector<4x16x8xf32> to vector<1x16x8xf32>
    %121 = vector.shape_cast %120 : vector<1x16x8xf32> to vector<16x8xf32>
    %122 = vector.extract_strided_slice %119 {offsets = [1, 0, 0], sizes = [1, 16, 8], strides = [1, 1, 1]} : vector<4x16x8xf32> to vector<1x16x8xf32>
    %123 = vector.shape_cast %122 : vector<1x16x8xf32> to vector<16x8xf32>
    %124 = vector.extract_strided_slice %119 {offsets = [2, 0, 0], sizes = [1, 16, 8], strides = [1, 1, 1]} : vector<4x16x8xf32> to vector<1x16x8xf32>
    %125 = vector.shape_cast %124 : vector<1x16x8xf32> to vector<16x8xf32>
    %126 = vector.extract_strided_slice %119 {offsets = [3, 0, 0], sizes = [1, 16, 8], strides = [1, 1, 1]} : vector<4x16x8xf32> to vector<1x16x8xf32>
    %127 = vector.shape_cast %126 : vector<1x16x8xf32> to vector<16x8xf32>
    %128 = tpu.concatenate %121, %123, %125, %127 in 1 : vector<16x8xf32>, vector<16x8xf32>, vector<16x8xf32>, vector<16x8xf32> -> vector<16x32xf32>
    %129 = vector.extract_strided_slice %56 {offsets = [0, 0], sizes = [16, 8], strides = [1, 1]} : vector<16x32xf32> to vector<16x8xf32>
    %130 = vector.shape_cast %129 : vector<16x8xf32> to vector<1x16x8xf32>
    %131 = vector.extract_strided_slice %56 {offsets = [0, 8], sizes = [16, 8], strides = [1, 1]} : vector<16x32xf32> to vector<16x8xf32>
    %132 = vector.shape_cast %131 : vector<16x8xf32> to vector<1x16x8xf32>
    %133 = vector.extract_strided_slice %56 {offsets = [0, 16], sizes = [16, 8], strides = [1, 1]} : vector<16x32xf32> to vector<16x8xf32>
    %134 = vector.shape_cast %133 : vector<16x8xf32> to vector<1x16x8xf32>
    %135 = vector.extract_strided_slice %56 {offsets = [0, 24], sizes = [16, 8], strides = [1, 1]} : vector<16x32xf32> to vector<16x8xf32>
    %136 = vector.shape_cast %135 : vector<16x8xf32> to vector<1x16x8xf32>
    %137 = tpu.concatenate %130, %132, %134, %136 in 0 : vector<1x16x8xf32>, vector<1x16x8xf32>, vector<1x16x8xf32>, vector<1x16x8xf32> -> vector<4x16x8xf32>
    %138 = vector.extract_strided_slice %76 {offsets = [0, 0], sizes = [16, 8], strides = [1, 1]} : vector<16x32xf32> to vector<16x8xf32>
    %139 = vector.shape_cast %138 : vector<16x8xf32> to vector<1x16x8xf32>
    %140 = vector.extract_strided_slice %76 {offsets = [0, 8], sizes = [16, 8], strides = [1, 1]} : vector<16x32xf32> to vector<16x8xf32>
    %141 = vector.shape_cast %140 : vector<16x8xf32> to vector<1x16x8xf32>
    %142 = vector.extract_strided_slice %76 {offsets = [0, 16], sizes = [16, 8], strides = [1, 1]} : vector<16x32xf32> to vector<16x8xf32>
    %143 = vector.shape_cast %142 : vector<16x8xf32> to vector<1x16x8xf32>
    %144 = vector.extract_strided_slice %76 {offsets = [0, 24], sizes = [16, 8], strides = [1, 1]} : vector<16x32xf32> to vector<16x8xf32>
    %145 = vector.shape_cast %144 : vector<16x8xf32> to vector<1x16x8xf32>
    %146 = tpu.concatenate %139, %141, %143, %145 in 0 : vector<1x16x8xf32>, vector<1x16x8xf32>, vector<1x16x8xf32>, vector<1x16x8xf32> -> vector<4x16x8xf32>
    %147 = vector.extract_strided_slice %81 {offsets = [0, 0], sizes = [16, 8], strides = [1, 1]} : vector<16x32xf32> to vector<16x8xf32>
    %148 = vector.shape_cast %147 : vector<16x8xf32> to vector<1x16x8xf32>
    %149 = vector.extract_strided_slice %81 {offsets = [0, 8], sizes = [16, 8], strides = [1, 1]} : vector<16x32xf32> to vector<16x8xf32>
    %150 = vector.shape_cast %149 : vector<16x8xf32> to vector<1x16x8xf32>
    %151 = vector.extract_strided_slice %81 {offsets = [0, 16], sizes = [16, 8], strides = [1, 1]} : vector<16x32xf32> to vector<16x8xf32>
    %152 = vector.shape_cast %151 : vector<16x8xf32> to vector<1x16x8xf32>
    %153 = vector.extract_strided_slice %81 {offsets = [0, 24], sizes = [16, 8], strides = [1, 1]} : vector<16x32xf32> to vector<16x8xf32>
    %154 = vector.shape_cast %153 : vector<16x8xf32> to vector<1x16x8xf32>
    %155 = tpu.concatenate %148, %150, %152, %154 in 0 : vector<1x16x8xf32>, vector<1x16x8xf32>, vector<1x16x8xf32>, vector<1x16x8xf32> -> vector<4x16x8xf32>
    "tpu.trace_start"() <{level = 10 : i32, message = "bqd,bkd->bqk"}> : () -> ()
    %cst_56 = arith.constant dense<0.000000e+00> : vector<4x16x16xf32>
    %156 = tpu.matmul %137, %146, %cst_56 {dimension_numbers = #tpu.dot_dimension_numbers<[2], [2], [1], [1], [0, 0, 0, 1, 1, 1], [0], [0]>} : vector<4x16x8xf32>, vector<4x16x8xf32>, vector<4x16x16xf32> -> vector<4x16x16xf32>
    "tpu.trace_stop"() : () -> ()
    %cst_57 = arith.constant dense<0xFF800000> : vector<4x16xf32>
    %157 = vector.multi_reduction <maximumf>, %156, %cst_57 [2] : vector<4x16x16xf32> to vector<4x16xf32>
    %158 = vector.shape_cast %157 : vector<4x16xf32> to vector<4x16x1xf32>
    %159 = vector.broadcast %158 : vector<4x16x1xf32> to vector<4x16x16xf32>
    %160 = arith.subf %156, %159 : vector<4x16x16xf32>
    %161 = math.exp %160 : vector<4x16x16xf32>
    %cst_58 = arith.constant dense<0.000000e+00> : vector<4x16xf32>
    %162 = vector.multi_reduction <add>, %161, %cst_58 [2] : vector<4x16x16xf32> to vector<4x16xf32>
    %163 = vector.shape_cast %162 : vector<4x16xf32> to vector<4x16x1xf32>
    %164 = vector.broadcast %163 : vector<4x16x1xf32> to vector<4x16x16xf32>
    %165 = arith.divf %161, %164 : vector<4x16x16xf32>
    "tpu.trace_start"() <{level = 10 : i32, message = "bqk,bkd->bqd"}> : () -> ()
    %cst_59 = arith.constant dense<0.000000e+00> : vector<4x16x8xf32>
    %166 = tpu.matmul %165, %155, %cst_59 {dimension_numbers = #tpu.dot_dimension_numbers<[2], [1], [1], [2], [0, 0, 0, 1, 1, 2], [0], [0]>} : vector<4x16x16xf32>, vector<4x16x8xf32>, vector<4x16x8xf32> -> vector<4x16x8xf32>
    "tpu.trace_stop"() : () -> ()
    %167 = vector.extract_strided_slice %166 {offsets = [0, 0, 0], sizes = [1, 16, 8], strides = [1, 1, 1]} : vector<4x16x8xf32> to vector<1x16x8xf32>
    %168 = vector.shape_cast %167 : vector<1x16x8xf32> to vector<16x8xf32>
    %169 = vector.extract_strided_slice %166 {offsets = [1, 0, 0], sizes = [1, 16, 8], strides = [1, 1, 1]} : vector<4x16x8xf32> to vector<1x16x8xf32>
    %170 = vector.shape_cast %169 : vector<1x16x8xf32> to vector<16x8xf32>
    %171 = vector.extract_strided_slice %166 {offsets = [2, 0, 0], sizes = [1, 16, 8], strides = [1, 1, 1]} : vector<4x16x8xf32> to vector<1x16x8xf32>
    %172 = vector.shape_cast %171 : vector<1x16x8xf32> to vector<16x8xf32>
    %173 = vector.extract_strided_slice %166 {offsets = [3, 0, 0], sizes = [1, 16, 8], strides = [1, 1, 1]} : vector<4x16x8xf32> to vector<1x16x8xf32>
    %174 = vector.shape_cast %173 : vector<1x16x8xf32> to vector<16x8xf32>
    %175 = tpu.concatenate %168, %170, %172, %174 in 1 : vector<16x8xf32>, vector<16x8xf32>, vector<16x8xf32>, vector<16x8xf32> -> vector<16x32xf32>
    %c0_60 = arith.constant 0 : index
    %c0_61 = arith.constant 0 : index
    %176 = vector.load %arg19[%c0_60, %c0_61] : memref<32x32xf32, #tpu.memory_space<vmem>>, vector<32x32xf32>
    %cst_62 = arith.constant dense<0.000000e+00> : vector<16x32xf32>
    %177 = tpu.matmul %128, %176, %cst_62 {dimension_numbers = #tpu.dot_dimension_numbers<[1], [0], [0], [1], [0, 0, 1, 1], [], []>} : vector<16x32xf32>, vector<32x32xf32>, vector<16x32xf32> -> vector<16x32xf32>
    %c0_63 = arith.constant 0 : index
    %c0_64 = arith.constant 0 : index
    %178 = vector.load %arg20[%c0_63, %c0_64] : memref<1x32xf32, #tpu.memory_space<vmem>>, vector<1x32xf32>
    %179 = vector.broadcast %178 : vector<1x32xf32> to vector<16x32xf32>
    %180 = arith.addf %177, %179 : vector<16x32xf32>
    %c0_65 = arith.constant 0 : index
    %c0_66 = arith.constant 0 : index
    %181 = vector.load %arg21[%c0_65, %c0_66] : memref<32x32xf32, #tpu.memory_space<vmem>>, vector<32x32xf32>
    %cst_67 = arith.constant dense<0.000000e+00> : vector<16x32xf32>
    %182 = tpu.matmul %175, %181, %cst_67 {dimension_numbers = #tpu.dot_dimension_numbers<[1], [0], [0], [1], [0, 0, 1, 1], [], []>} : vector<16x32xf32>, vector<32x32xf32>, vector<16x32xf32> -> vector<16x32xf32>
    %c0_68 = arith.constant 0 : index
    %c0_69 = arith.constant 0 : index
    %183 = vector.load %arg22[%c0_68, %c0_69] : memref<1x32xf32, #tpu.memory_space<vmem>>, vector<1x32xf32>
    %184 = vector.broadcast %183 : vector<1x32xf32> to vector<16x32xf32>
    %185 = arith.addf %182, %184 : vector<16x32xf32>
    %186 = vector.shape_cast %180 : vector<16x32xf32> to vector<1x16x32xf32>
    %c0_70 = arith.constant 0 : index
    %c0_71 = arith.constant 0 : index
    %c0_72 = arith.constant 0 : index
    %187 = vector.load %arg23[%c0_70, %c0_71, %c0_72] : memref<1x16x32xf32, #tpu.memory_space<vmem>>, vector<1x16x32xf32>
    tpu.vector_store %arg23[%c0_70, %c0_71, %c0_72], %186 {strides = array<i32>} : memref<1x16x32xf32, #tpu.memory_space<vmem>>, vector<1x16x32xf32>,
    %188 = vector.shape_cast %185 : vector<16x32xf32> to vector<1x16x32xf32>
    %c0_73 = arith.constant 0 : index
    %c0_74 = arith.constant 0 : index
    %c0_75 = arith.constant 0 : index
    %189 = vector.load %arg24[%c0_73, %c0_74, %c0_75] : memref<1x16x32xf32, #tpu.memory_space<vmem>>, vector<1x16x32xf32>
    tpu.vector_store %arg24[%c0_73, %c0_74, %c0_75], %188 {strides = array<i32>} : memref<1x16x32xf32, #tpu.memory_space<vmem>>, vector<1x16x32xf32>,
    return
  }
  func.func @transform_0(%arg0: i32) -> (i32, i32, i32) {
    %c0_i32 = arith.constant 0 : i32
    %c0_i32_0 = arith.constant 0 : i32
    %c0_i32_1 = arith.constant 0 : i32
    return %arg0, %c0_i32, %c0_i32_0 : i32, i32, i32
  }
  func.func @transform_1(%arg0: i32) -> (i32, i32, i32) {
    %c0_i32 = arith.constant 0 : i32
    %c0_i32_0 = arith.constant 0 : i32
    %c0_i32_1 = arith.constant 0 : i32
    return %arg0, %c0_i32, %c0_i32_0 : i32, i32, i32
  }
  func.func @transform_2(%arg0: i32) -> (i32, i32) {
    %c0_i32 = arith.constant 0 : i32
    %c0_i32_0 = arith.constant 0 : i32
    %c0_i32_1 = arith.constant 0 : i32
    return %c0_i32, %c0_i32_0 : i32, i32
  }
  func.func @transform_3(%arg0: i32) -> (i32, i32) {
    %c0_i32 = arith.constant 0 : i32
    %c0_i32_0 = arith.constant 0 : i32
    %c0_i32_1 = arith.constant 0 : i32
    return %c0_i32, %c0_i32_0 : i32, i32
  }
  func.func @transform_4(%arg0: i32) -> (i32, i32) {
    %c0_i32 = arith.constant 0 : i32
    %c0_i32_0 = arith.constant 0 : i32
    %c0_i32_1 = arith.constant 0 : i32
    return %c0_i32, %c0_i32_0 : i32, i32
  }
  func.func @transform_5(%arg0: i32) -> (i32, i32) {
    %c0_i32 = arith.constant 0 : i32
    %c0_i32_0 = arith.constant 0 : i32
    %c0_i32_1 = arith.constant 0 : i32
    return %c0_i32, %c0_i32_0 : i32, i32
  }
  func.func @transform_6(%arg0: i32) -> (i32, i32) {
    %c0_i32 = arith.constant 0 : i32
    %c0_i32_0 = arith.constant 0 : i32
    %c0_i32_1 = arith.constant 0 : i32
    return %c0_i32, %c0_i32_0 : i32, i32
  }
  func.func @transform_7(%arg0: i32) -> (i32, i32) {
    %c0_i32 = arith.constant 0 : i32
    %c0_i32_0 = arith.constant 0 : i32
    %c0_i32_1 = arith.constant 0 : i32
    return %c0_i32, %c0_i32_0 : i32, i32
  }
  func.func @transform_8(%arg0: i32) -> (i32, i32) {
    %c0_i32 = arith.constant 0 : i32
    %c0_i32_0 = arith.constant 0 : i32
    %c0_i32_1 = arith.constant 0 : i32
    return %c0_i32, %c0_i32_0 : i32, i32
  }
  func.func @transform_9(%arg0: i32) -> (i32, i32) {
    %c0_i32 = arith.constant 0 : i32
    %c0_i32_0 = arith.constant 0 : i32
    %c0_i32_1 = arith.constant 0 : i32
    return %c0_i32, %c0_i32_0 : i32, i32
  }
  func.func @transform_10(%arg0: i32) -> (i32, i32) {
    %c0_i32 = arith.constant 0 : i32
    %c0_i32_0 = arith.constant 0 : i32
    %c0_i32_1 = arith.constant 0 : i32
    return %c0_i32, %c0_i32_0 : i32, i32
  }
  func.func @transform_11(%arg0: i32) -> (i32, i32) {
    %c0_i32 = arith.constant 0 : i32
    %c0_i32_0 = arith.constant 0 : i32
    %c0_i32_1 = arith.constant 0 : i32
    return %c0_i32, %c0_i32_0 : i32, i32
  }
  func.func @transform_12(%arg0: i32) -> (i32, i32) {
    %c0_i32 = arith.constant 0 : i32
    %c0_i32_0 = arith.constant 0 : i32
    %c0_i32_1 = arith.constant 0 : i32
    return %c0_i32, %c0_i32_0 : i32, i32
  }
  func.func @transform_13(%arg0: i32) -> (i32, i32) {
    %c0_i32 = arith.constant 0 : i32
    %c0_i32_0 = arith.constant 0 : i32
    %c0_i32_1 = arith.constant 0 : i32
    return %c0_i32, %c0_i32_0 : i32, i32
  }
  func.func @transform_14(%arg0: i32) -> (i32, i32) {
    %c0_i32 = arith.constant 0 : i32
    %c0_i32_0 = arith.constant 0 : i32
    %c0_i32_1 = arith.constant 0 : i32
    return %c0_i32, %c0_i32_0 : i32, i32
  }
  func.func @transform_15(%arg0: i32) -> (i32, i32) {
    %c0_i32 = arith.constant 0 : i32
    %c0_i32_0 = arith.constant 0 : i32
    %c0_i32_1 = arith.constant 0 : i32
    return %c0_i32, %c0_i32_0 : i32, i32
  }
  func.func @transform_16(%arg0: i32) -> (i32, i32) {
    %c0_i32 = arith.constant 0 : i32
    %c0_i32_0 = arith.constant 0 : i32
    %c0_i32_1 = arith.constant 0 : i32
    return %c0_i32, %c0_i32_0 : i32, i32
  }
  func.func @transform_17(%arg0: i32) -> (i32, i32) {
    %c0_i32 = arith.constant 0 : i32
    %c0_i32_0 = arith.constant 0 : i32
    %c0_i32_1 = arith.constant 0 : i32
    return %c0_i32, %c0_i32_0 : i32, i32
  }
  func.func @transform_18(%arg0: i32) -> (i32, i32) {
    %c0_i32 = arith.constant 0 : i32
    %c0_i32_0 = arith.constant 0 : i32
    %c0_i32_1 = arith.constant 0 : i32
    return %c0_i32, %c0_i32_0 : i32, i32
  }
  func.func @transform_19(%arg0: i32) -> (i32, i32) {
    %c0_i32 = arith.constant 0 : i32
    %c0_i32_0 = arith.constant 0 : i32
    %c0_i32_1 = arith.constant 0 : i32
    return %c0_i32, %c0_i32_0 : i32, i32
  }
  func.func @transform_20(%arg0: i32) -> (i32, i32) {
    %c0_i32 = arith.constant 0 : i32
    %c0_i32_0 = arith.constant 0 : i32
    %c0_i32_1 = arith.constant 0 : i32
    return %c0_i32, %c0_i32_0 : i32, i32
  }
  func.func @transform_21(%arg0: i32) -> (i32, i32) {
    %c0_i32 = arith.constant 0 : i32
    %c0_i32_0 = arith.constant 0 : i32
    %c0_i32_1 = arith.constant 0 : i32
    return %c0_i32, %c0_i32_0 : i32, i32
  }
  func.func @transform_22(%arg0: i32) -> (i32, i32, i32) {
    %c0_i32 = arith.constant 0 : i32
    %c0_i32_0 = arith.constant 0 : i32
    %c0_i32_1 = arith.constant 0 : i32
    return %arg0, %c0_i32, %c0_i32_0 : i32, i32, i32
  }
  func.func @transform_23(%arg0: i32) -> (i32, i32, i32) {
    %c0_i32 = arith.constant 0 : i32
    %c0_i32_0 = arith.constant 0 : i32
    %c0_i32_1 = arith.constant 0 : i32
    return %arg0, %c0_i32, %c0_i32_0 : i32, i32, i32
  }
}

</mosaic_0001>

<llo_original>
// kernel: cross_attention_pallas.1
$region0: #{cross_attention_pallas.1}
  #allocation0 [shape = 'u32[]', space=smem, size = 0x4, offset = 0x4, fixed_abs, tag = 'smem constant byte address 0x4 - core index']
  #allocation1 [shape = 'u32[144,128]{1,0:T(1,128)}', space=vmem, size = 0x12000, scoped, tag = 'internal scratch']
  %s0 = inlined_call_operand.hbm [shape: f32[2,16,32], index: 0, kind: input, shape index: {}]
  %s1 = inlined_call_operand.hbm [shape: f32[2,16,32], index: 1, kind: input, shape index: {}]
  %s2 = inlined_call_operand.hbm [shape: f32[1,32], index: 2, kind: input, shape index: {}]
  %s3 = inlined_call_operand.hbm [shape: f32[1,32], index: 3, kind: input, shape index: {}]
  %s4 = inlined_call_operand.hbm [shape: f32[1,32], index: 4, kind: input, shape index: {}]
  %s5 = inlined_call_operand.hbm [shape: f32[1,32], index: 5, kind: input, shape index: {}]
  %s6 = inlined_call_operand.hbm [shape: f32[32,32], index: 6, kind: input, shape index: {}]
  %s7 = inlined_call_operand.hbm [shape: f32[1,32], index: 7, kind: input, shape index: {}]
  %s8 = inlined_call_operand.hbm [shape: f32[32,32], index: 8, kind: input, shape index: {}]
  %s9 = inlined_call_operand.hbm [shape: f32[1,32], index: 9, kind: input, shape index: {}]
  %s10 = inlined_call_operand.hbm [shape: f32[32,32], index: 10, kind: input, shape index: {}]
  %s11 = inlined_call_operand.hbm [shape: f32[1,32], index: 11, kind: input, shape index: {}]
  %s12 = inlined_call_operand.hbm [shape: f32[32,32], index: 12, kind: input, shape index: {}]
  %s13 = inlined_call_operand.hbm [shape: f32[1,32], index: 13, kind: input, shape index: {}]
  %s14 = inlined_call_operand.hbm [shape: f32[32,32], index: 14, kind: input, shape index: {}]
  %s15 = inlined_call_operand.hbm [shape: f32[1,32], index: 15, kind: input, shape index: {}]
  %s16 = inlined_call_operand.hbm [shape: f32[32,32], index: 16, kind: input, shape index: {}]
  %s17 = inlined_call_operand.hbm [shape: f32[1,32], index: 17, kind: input, shape index: {}]
  %s18 = inlined_call_operand.vmem [shape: f32[32,32], index: 18, kind: input, shape index: {}]
  %s19 = inlined_call_operand.vmem [shape: f32[1,32], index: 19, kind: input, shape index: {}]
  %s20 = inlined_call_operand.hbm [shape: f32[32,32], index: 20, kind: input, shape index: {}]
  %s21 = inlined_call_operand.vmem [shape: f32[1,32], index: 21, kind: input, shape index: {}]
  %s22 = inlined_call_operand.hbm [shape: f32[2,16,32], index: 22, kind: output, shape index: {0}]
  %s23 = inlined_call_operand.hbm [shape: f32[2,16,32], index: 23, kind: output, shape index: {1}]
  %24 = xla_tuple %s22, %s23
  %s25 = sld [smem:[#allocation0]]
  $region205: #{cross_attention_pallas.1} parent=0
    _
  %s27 = ssub.s32 1, %s25
  %s28 = scalar_select 0, %s27, %s25
  $region1: #{cross_attention_pallas.1} parent=0
    #allocation2 [shape = 'u8[16384]{0}', space=vmem, size = 0x4000, scoped, tag = 'input window, operand 0']
    #allocation3 [shape = 's32[2]{0}', space=sflag, size = 0x8, scoped, tag = 'scoped memory for cross_attention_pallas.1']
    #allocation4 [shape = 's32[2]{0}', space=sflag, size = 0x8, scoped, tag = 'scoped memory for cross_attention_pallas.1']
    #allocation5 [shape = 'u8[16384]{0}', space=vmem, size = 0x4000, scoped, tag = 'input window, operand 1']
    #allocation6 [shape = 's32[2]{0}', space=sflag, size = 0x8, scoped, tag = 'scoped memory for cross_attention_pallas.1']
    #allocation7 [shape = 'u8[512]{0}', space=vmem, size = 0x400, scoped, tag = 'input window, operand 2, single buffered']
    #allocation8 [shape = 'u8[512]{0}', space=vmem, size = 0x400, scoped, tag = 'input window, operand 3, single buffered']
    #allocation9 [shape = 's32[1]{0}', space=sflag, size = 0x4, scoped, tag = 'scoped memory for cross_attention_pallas.1']
    #allocation10 [shape = 'u8[512]{0}', space=vmem, size = 0x400, scoped, tag = 'input window, operand 4, single buffered']
    #allocation11 [shape = 'u8[512]{0}', space=vmem, size = 0x400, scoped, tag = 'input window, operand 5, single buffered']
    #allocation12 [shape = 's32[1]{0}', space=sflag, size = 0x4, scoped, tag = 'scoped memory for cross_attention_pallas.1']
    #allocation13 [shape = 'u8[16384]{0}', space=vmem, size = 0x4000, scoped, tag = 'input window, operand 6, single buffered']
    #allocation14 [shape = 'u8[512]{0}', space=vmem, size = 0x400, scoped, tag = 'input window, operand 7, single buffered']
    #allocation15 [shape = 's32[1]{0}', space=sflag, size = 0x4, scoped, tag = 'scoped memory for cross_attention_pallas.1']
    #allocation16 [shape = 'u8[16384]{0}', space=vmem, size = 0x4000, scoped, tag = 'input window, operand 8, single buffered']
    #allocation17 [shape = 'u8[512]{0}', space=vmem, size = 0x400, scoped, tag = 'input window, operand 9, single buffered']
    #allocation18 [shape = 's32[1]{0}', space=sflag, size = 0x4, scoped, tag = 'scoped memory for cross_attention_pallas.1']
    #allocation19 [shape = 'u8[16384]{0}', space=vmem, size = 0x4000, scoped, tag = 'input window, operand 10, single buffered']
    #allocation20 [shape = 'u8[512]{0}', space=vmem, size = 0x400, scoped, tag = 'input window, operand 11, single buffered']
    #allocation21 [shape = 's32[1]{0}', space=sflag, size = 0x4, scoped, tag = 'scoped memory for cross_attention_pallas.1']
    #allocation22 [shape = 'u8[16384]{0}', space=vmem, size = 0x4000, scoped, tag = 'input window, operand 12, single buffered']
    #allocation23 [shape = 'u8[512]{0}', space=vmem, size = 0x400, scoped, tag = 'input window, operand 13, single buffered']
    #allocation24 [shape = 's32[1]{0}', space=sflag, size = 0x4, scoped, tag = 'scoped memory for cross_attention_pallas.1']
    #allocation25 [shape = 'u8[16384]{0}', space=vmem, size = 0x4000, scoped, tag = 'input window, operand 14, single buffered']
    #allocation26 [shape = 'u8[512]{0}', space=vmem, size = 0x400, scoped, tag = 'input window, operand 15, single buffered']
    #allocation27 [shape = 's32[1]{0}', space=sflag, size = 0x4, scoped, tag = 'scoped memory for cross_attention_pallas.1']
    #allocation28 [shape = 'u8[16384]{0}', space=vmem, size = 0x4000, scoped, tag = 'input window, operand 16, single buffered']
    #allocation29 [shape = 'u8[512]{0}', space=vmem, size = 0x400, scoped, tag = 'input window, operand 17, single buffered']
    #allocation30 [shape = 's32[1]{0}', space=sflag, size = 0x4, scoped, tag = 'scoped memory for cross_attention_pallas.1']
    #allocation31 [shape = 'u8[16384]{0}', space=vmem, size = 0x4000, scoped, tag = 'input window, operand 20, single buffered']
    #allocation32 [shape = 'u8[16384]{0}', space=vmem, size = 0x4000, scoped, tag = 'output window, operand 0']
    #allocation33 [shape = 'u8[16384]{0}', space=vmem, size = 0x4000, scoped, tag = 'output window, operand 1']
    #allocation34 [shape = 's32[2]{0}', space=sflag, size = 0x8, scoped, tag = 'scoped memory for cross_attention_pallas.1']
    %29 = vsyncpa [#allocation3], 0
    %s30 = scalar_lea.sflag [#allocation3], 1
    %31 = vsyncpa %s30, 0
    %32 = vsyncpa [#allocation6], 0
    %s33 = scalar_lea.sflag [#allocation6], 1
    %34 = vsyncpa %s33, 0
    %35 = vsyncpa [#allocation9], 0
    %36 = vsyncpa [#allocation12], 0
    %37 = vsyncpa [#allocation15], 0
    %38 = vsyncpa [#allocation18], 0
    %39 = vsyncpa [#allocation21], 0
    %40 = vsyncpa [#allocation24], 0
    %41 = vsyncpa [#allocation27], 0
    %42 = vsyncpa [#allocation30], 0
    %43 = vsyncpa [#allocation4], 0
    %s44 = scalar_lea.sflag [#allocation4], 1
    %45 = vsyncpa %s44, 0
    %46 = vsyncpa [#allocation34], 0
    %s47 = scalar_lea.sflag [#allocation34], 1
    %48 = vsyncpa %s47, 0
    loop: start=0, step=1, limit=4
    $region2: #{cross_attention_pallas.1} parent=1 // loop_pre_header
      _
    $region3: #{cross_attention_pallas.1} parent=1 // loop_header
      %s50 = sphi 0, %s54
      %p51 = scmp.ge.s32.totalorder %s50, 4
      %s60 = sphi 0, %s62
      %s63 = sphi 0, %s60
      %s64 = sphi 0, %s63
      %s80 = sphi 0, %s64
      %s86 = sphi 0, %s88
      %s89 = sphi 0, %s86
      %s90 = sphi 0, %s89
      %s106 = sphi 0, %s90
      %s110 = sphi 0, %s110
      %s112 = sphi 0, %s110
      %s113 = sphi 0, %s112
      %s127 = sphi 0, %s113
      %s131 = sphi 0, %s131
      %s133 = sphi 0, %s131
      %s134 = sphi 0, %s133
      %s148 = sphi 0, %s134
      %s152 = sphi 0, %s152
      %s154 = sphi 0, %s152
      %s155 = sphi 0, %s154
      %s169 = sphi 0, %s155
      %s173 = sphi 0, %s173
      %s175 = sphi 0, %s173
      %s176 = sphi 0, %s175
      %s190 = sphi 0, %s176
      %s194 = sphi 0, %s194
      %s196 = sphi 0, %s194
      %s197 = sphi 0, %s196
      %s211 = sphi 0, %s197
      %s215 = sphi 0, %s215
      %s217 = sphi 0, %s215
      %s218 = sphi 0, %s217
      %s232 = sphi 0, %s218
      %s236 = sphi 0, %s236
      %s238 = sphi 0, %s236
      %s239 = sphi 0, %s238
      %s253 = sphi 0, %s239
      %s257 = sphi 0, %s257
      %s259 = sphi 0, %s257
      %s260 = sphi 0, %s259
      %s274 = sphi 0, %s260
      %s278 = sphi 0, %s278
      %s280 = sphi 0, %s278
      %s281 = sphi 0, %s280
      %s295 = sphi 0, %s281
      %s299 = sphi 0, %s299
      %s301 = sphi 0, %s299
      %s302 = sphi 0, %s301
      %s316 = sphi 0, %s302
      %s320 = sphi 0, %s320
      %s322 = sphi 0, %s320
      %s323 = sphi 0, %s322
      %s337 = sphi 0, %s323
      %s341 = sphi 0, %s341
      %s343 = sphi 0, %s341
      %s344 = sphi 0, %s343
      %s358 = sphi 0, %s344
      %s362 = sphi 0, %s362
      %s364 = sphi 0, %s362
      %s365 = sphi 0, %s364
      %s379 = sphi 0, %s365
      %s383 = sphi 0, %s383
      %s385 = sphi 0, %s383
      %s386 = sphi 0, %s385
      %s400 = sphi 0, %s386
      %s404 = sphi 0, %s404
      %s406 = sphi 0, %s404
      %s407 = sphi 0, %s406
      %s421 = sphi 0, %s407
      %s425 = sphi 0, %s425
      %s427 = sphi 0, %s425
      %s428 = sphi 0, %s427
      %s442 = sphi 0, %s428
      %s446 = sphi 0, %s446
      %s448 = sphi 0, %s446
      %s449 = sphi 0, %s448
      %s463 = sphi 0, %s449
      %s467 = sphi 0, %s467
      %s469 = sphi 0, %s467
      %s470 = sphi 0, %s469
      %s484 = sphi 0, %s470
      %s488 = sphi 0, %s488
      %s490 = sphi 0, %s488
      %s491 = sphi 0, %s490
      %s505 = sphi 0, %s491
      %s509 = sphi 0, %s509
      %s511 = sphi 0, %s509
      %s512 = sphi 0, %s511
      %s526 = sphi 0, %s512
      %s532 = sphi 0, %s534
      %s535 = sphi 0, %s532
      %s536 = sphi 0, %s535
      %s552 = sphi 0, %s536
      %s558 = sphi 0, %s560
      %s561 = sphi 0, %s558
      %s562 = sphi 0, %s561
      %s578 = sphi 0, %s562
    $region4: #{cross_attention_pallas.1} parent=1 // loop_header_branch
      %53 = sbr.rel (%p51) target = $region8
    $region5: #{cross_attention_pallas.1} parent=1 // loop_body
      %s55 = ssub.s32 %s50, 1
      %s56 = ssub.s32 %s50, 2
      %s57 = sadd.s32 %s50, 1
      %s58 = ssub.s32 %s50, %s57
      %p59 = scmp.eq.s32.totalorder %s58, 0
      %s61 = sadd.s32 %s60, 1
      %s62 = scalar_select %p59, %s60, %s61
      %p65 = pneg %p59
      %p66 = scmp.eq.s32.totalorder %s50, 1
      %p67 = por %p65, %p66
      %p68 = scmp.ne.s32.totalorder %s60, %s63
      %p69 = scmp.eq.s32.totalorder %s50, 0
      %p70 = por %p68, %p69
      %p71 = scmp.ne.s32.totalorder %s60, %s63
      %p72 = scmp.eq.s32.totalorder %s55, 1
      %p73 = por %p71, %p72
      %p74 = scmp.ne.s32.totalorder %s63, %s64
      %p75 = scmp.eq.s32.totalorder %s55, 0
      %p76 = por %p74, %p75
      %p77 = scmp.ne.s32.totalorder %s63, %s64
      %p78 = scmp.eq.s32.totalorder %s56, 1
      %p79 = por %p77, %p78
      %p81 = scmp.ne.s32.totalorder %s64, %s80
      %p82 = scmp.eq.s32.totalorder %s56, 0
      %p83 = por %p81, %p82
      %s84 = ssub.s32 %s50, %s57
      %p85 = scmp.eq.s32.totalorder %s84, 0
      %s87 = sadd.s32 %s86, 1
      %s88 = scalar_select %p85, %s86, %s87
      %p91 = pneg %p85
      %p92 = scmp.eq.s32.totalorder %s50, 1
      %p93 = por %p91, %p92
      %p94 = scmp.ne.s32.totalorder %s86, %s89
      %p95 = scmp.eq.s32.totalorder %s50, 0
      %p96 = por %p94, %p95
      %p97 = scmp.ne.s32.totalorder %s86, %s89
      %p98 = scmp.eq.s32.totalorder %s55, 1
      %p99 = por %p97, %p98
      %p100 = scmp.ne.s32.totalorder %s89, %s90
      %p101 = scmp.eq.s32.totalorder %s55, 0
      %p102 = por %p100, %p101
      %p103 = scmp.ne.s32.totalorder %s89, %s90
      %p104 = scmp.eq.s32.totalorder %s56, 1
      %p105 = por %p103, %p104
      %p107 = scmp.ne.s32.totalorder %s90, %s106
      %p108 = scmp.eq.s32.totalorder %s56, 0
      %p109 = por %p107, %p108
      %s111 = sadd.s32 %s110, 1
      %p114 = scmp.eq.s32.totalorder %s50, 1
      %p115 = scmp.ne.s32.totalorder %s110, %s112
      %p116 = scmp.eq.s32.totalorder %s50, 0
      %p117 = por %p115, %p116
      %p118 = scmp.ne.s32.totalorder %s110, %s112
      %p119 = scmp.eq.s32.totalorder %s55, 1
      %p120 = por %p118, %p119
      %p121 = scmp.ne.s32.totalorder %s112, %s113
      %p122 = scmp.eq.s32.totalorder %s55, 0
      %p123 = por %p121, %p122
      %p124 = scmp.ne.s32.totalorder %s112, %s113
      %p125 = scmp.eq.s32.totalorder %s56, 1
      %p126 = por %p124, %p125
      %p128 = scmp.ne.s32.totalorder %s113, %s127
      %p129 = scmp.eq.s32.totalorder %s56, 0
      %p130 = por %p128, %p129
      %s132 = sadd.s32 %s131, 1
      %p135 = scmp.eq.s32.totalorder %s50, 1
      %p136 = scmp.ne.s32.totalorder %s131, %s133
      %p137 = scmp.eq.s32.totalorder %s50, 0
      %p138 = por %p136, %p137
      %p139 = scmp.ne.s32.totalorder %s131, %s133
      %p140 = scmp.eq.s32.totalorder %s55, 1
      %p141 = por %p139, %p140
      %p142 = scmp.ne.s32.totalorder %s133, %s134
      %p143 = scmp.eq.s32.totalorder %s55, 0
      %p144 = por %p142, %p143
      %p145 = scmp.ne.s32.totalorder %s133, %s134
      %p146 = scmp.eq.s32.totalorder %s56, 1
      %p147 = por %p145, %p146
      %p149 = scmp.ne.s32.totalorder %s134, %s148
      %p150 = scmp.eq.s32.totalorder %s56, 0
      %p151 = por %p149, %p150
      %s153 = sadd.s32 %s152, 1
      %p156 = scmp.eq.s32.totalorder %s50, 1
      %p157 = scmp.ne.s32.totalorder %s152, %s154
      %p158 = scmp.eq.s32.totalorder %s50, 0
      %p159 = por %p157, %p158
      %p160 = scmp.ne.s32.totalorder %s152, %s154
      %p161 = scmp.eq.s32.totalorder %s55, 1
      %p162 = por %p160, %p161
      %p163 = scmp.ne.s32.totalorder %s154, %s155
      %p164 = scmp.eq.s32.totalorder %s55, 0
      %p165 = por %p163, %p164
      %p166 = scmp.ne.s32.totalorder %s154, %s155
      %p167 = scmp.eq.s32.totalorder %s56, 1
      %p168 = por %p166, %p167
      %p170 = scmp.ne.s32.totalorder %s155, %s169
      %p171 = scmp.eq.s32.totalorder %s56, 0
      %p172 = por %p170, %p171
      %s174 = sadd.s32 %s173, 1
      %p177 = scmp.eq.s32.totalorder %s50, 1
      %p178 = scmp.ne.s32.totalorder %s173, %s175
      %p179 = scmp.eq.s32.totalorder %s50, 0
      %p180 = por %p178, %p179
      %p181 = scmp.ne.s32.totalorder %s173, %s175
      %p182 = scmp.eq.s32.totalorder %s55, 1
      %p183 = por %p181, %p182
      %p184 = scmp.ne.s32.totalorder %s175, %s176
      %p185 = scmp.eq.s32.totalorder %s55, 0
      %p186 = por %p184, %p185
      %p187 = scmp.ne.s32.totalorder %s175, %s176
      %p188 = scmp.eq.s32.totalorder %s56, 1
      %p189 = por %p187, %p188
      %p191 = scmp.ne.s32.totalorder %s176, %s190
      %p192 = scmp.eq.s32.totalorder %s56, 0
      %p193 = por %p191, %p192
      %s195 = sadd.s32 %s194, 1
      %p198 = scmp.eq.s32.totalorder %s50, 1
      %p199 = scmp.ne.s32.totalorder %s194, %s196
      %p200 = scmp.eq.s32.totalorder %s50, 0
      %p201 = por %p199, %p200
      %p202 = scmp.ne.s32.totalorder %s194, %s196
      %p203 = scmp.eq.s32.totalorder %s55, 1
      %p204 = por %p202, %p203
      %p205 = scmp.ne.s32.totalorder %s196, %s197
      %p206 = scmp.eq.s32.totalorder %s55, 0
      %p207 = por %p205, %p206
      %p208 = scmp.ne.s32.totalorder %s196, %s197
      %p209 = scmp.eq.s32.totalorder %s56, 1
      %p210 = por %p208, %p209
      %p212 = scmp.ne.s32.totalorder %s197, %s211
      %p213 = scmp.eq.s32.totalorder %s56, 0
      %p214 = por %p212, %p213
      %s216 = sadd.s32 %s215, 1
      %p219 = scmp.eq.s32.totalorder %s50, 1
      %p220 = scmp.ne.s32.totalorder %s215, %s217
      %p221 = scmp.eq.s32.totalorder %s50, 0
      %p222 = por %p220, %p221
      %p223 = scmp.ne.s32.totalorder %s215, %s217
      %p224 = scmp.eq.s32.totalorder %s55, 1
      %p225 = por %p223, %p224
      %p226 = scmp.ne.s32.totalorder %s217, %s218
      %p227 = scmp.eq.s32.totalorder %s55, 0
      %p228 = por %p226, %p227
      %p229 = scmp.ne.s32.totalorder %s217, %s218
      %p230 = scmp.eq.s32.totalorder %s56, 1
      %p231 = por %p229, %p230
      %p233 = scmp.ne.s32.totalorder %s218, %s232
      %p234 = scmp.eq.s32.totalorder %s56, 0
      %p235 = por %p233, %p234
      %s237 = sadd.s32 %s236, 1
      %p240 = scmp.eq.s32.totalorder %s50, 1
      %p241 = scmp.ne.s32.totalorder %s236, %s238
      %p242 = scmp.eq.s32.totalorder %s50, 0
      %p243 = por %p241, %p242
      %p244 = scmp.ne.s32.totalorder %s236, %s238
      %p245 = scmp.eq.s32.totalorder %s55, 1
      %p246 = por %p244, %p245
      %p247 = scmp.ne.s32.totalorder %s238, %s239
      %p248 = scmp.eq.s32.totalorder %s55, 0
      %p249 = por %p247, %p248
      %p250 = scmp.ne.s32.totalorder %s238, %s239
      %p251 = scmp.eq.s32.totalorder %s56, 1
      %p252 = por %p250, %p251
      %p254 = scmp.ne.s32.totalorder %s239, %s253
      %p255 = scmp.eq.s32.totalorder %s56, 0
      %p256 = por %p254, %p255
      %s258 = sadd.s32 %s257, 1
      %p261 = scmp.eq.s32.totalorder %s50, 1
      %p262 = scmp.ne.s32.totalorder %s257, %s259
      %p263 = scmp.eq.s32.totalorder %s50, 0
      %p264 = por %p262, %p263
      %p265 = scmp.ne.s32.totalorder %s257, %s259
      %p266 = scmp.eq.s32.totalorder %s55, 1
      %p267 = por %p265, %p266
      %p268 = scmp.ne.s32.totalorder %s259, %s260
      %p269 = scmp.eq.s32.totalorder %s55, 0
      %p270 = por %p268, %p269
      %p271 = scmp.ne.s32.totalorder %s259, %s260
      %p272 = scmp.eq.s32.totalorder %s56, 1
      %p273 = por %p271, %p272
      %p275 = scmp.ne.s32.totalorder %s260, %s274
      %p276 = scmp.eq.s32.totalorder %s56, 0
      %p277 = por %p275, %p276
      %s279 = sadd.s32 %s278, 1
      %p282 = scmp.eq.s32.totalorder %s50, 1
      %p283 = scmp.ne.s32.totalorder %s278, %s280
      %p284 = scmp.eq.s32.totalorder %s50, 0
      %p285 = por %p283, %p284
      %p286 = scmp.ne.s32.totalorder %s278, %s280
      %p287 = scmp.eq.s32.totalorder %s55, 1
      %p288 = por %p286, %p287
      %p289 = scmp.ne.s32.totalorder %s280, %s281
      %p290 = scmp.eq.s32.totalorder %s55, 0
      %p291 = por %p289, %p290
      %p292 = scmp.ne.s32.totalorder %s280, %s281
      %p293 = scmp.eq.s32.totalorder %s56, 1
      %p294 = por %p292, %p293
      %p296 = scmp.ne.s32.totalorder %s281, %s295
      %p297 = scmp.eq.s32.totalorder %s56, 0
      %p298 = por %p296, %p297
      %s300 = sadd.s32 %s299, 1
      %p303 = scmp.eq.s32.totalorder %s50, 1
      %p304 = scmp.ne.s32.totalorder %s299, %s301
      %p305 = scmp.eq.s32.totalorder %s50, 0
      %p306 = por %p304, %p305
      %p307 = scmp.ne.s32.totalorder %s299, %s301
      %p308 = scmp.eq.s32.totalorder %s55, 1
      %p309 = por %p307, %p308
      %p310 = scmp.ne.s32.totalorder %s301, %s302
      %p311 = scmp.eq.s32.totalorder %s55, 0
      %p312 = por %p310, %p311
      %p313 = scmp.ne.s32.totalorder %s301, %s302
      %p314 = scmp.eq.s32.totalorder %s56, 1
      %p315 = por %p313, %p314
      %p317 = scmp.ne.s32.totalorder %s302, %s316
      %p318 = scmp.eq.s32.totalorder %s56, 0
      %p319 = por %p317, %p318
      %s321 = sadd.s32 %s320, 1
      %p324 = scmp.eq.s32.totalorder %s50, 1
      %p325 = scmp.ne.s32.totalorder %s320, %s322
      %p326 = scmp.eq.s32.totalorder %s50, 0
      %p327 = por %p325, %p326
      %p328 = scmp.ne.s32.totalorder %s320, %s322
      %p329 = scmp.eq.s32.totalorder %s55, 1
      %p330 = por %p328, %p329
      %p331 = scmp.ne.s32.totalorder %s322, %s323
      %p332 = scmp.eq.s32.totalorder %s55, 0
      %p333 = por %p331, %p332
      %p334 = scmp.ne.s32.totalorder %s322, %s323
      %p335 = scmp.eq.s32.totalorder %s56, 1
      %p336 = por %p334, %p335
      %p338 = scmp.ne.s32.totalorder %s323, %s337
      %p339 = scmp.eq.s32.totalorder %s56, 0
      %p340 = por %p338, %p339
      %s342 = sadd.s32 %s341, 1
      %p345 = scmp.eq.s32.totalorder %s50, 1
      %p346 = scmp.ne.s32.totalorder %s341, %s343
      %p347 = scmp.eq.s32.totalorder %s50, 0
      %p348 = por %p346, %p347
      %p349 = scmp.ne.s32.totalorder %s341, %s343
      %p350 = scmp.eq.s32.totalorder %s55, 1
      %p351 = por %p349, %p350
      %p352 = scmp.ne.s32.totalorder %s343, %s344
      %p353 = scmp.eq.s32.totalorder %s55, 0
      %p354 = por %p352, %p353
      %p355 = scmp.ne.s32.totalorder %s343, %s344
      %p356 = scmp.eq.s32.totalorder %s56, 1
      %p357 = por %p355, %p356
      %p359 = scmp.ne.s32.totalorder %s344, %s358
      %p360 = scmp.eq.s32.totalorder %s56, 0
      %p361 = por %p359, %p360
      %s363 = sadd.s32 %s362, 1
      %p366 = scmp.eq.s32.totalorder %s50, 1
      %p367 = scmp.ne.s32.totalorder %s362, %s364
      %p368 = scmp.eq.s32.totalorder %s50, 0
      %p369 = por %p367, %p368
      %p370 = scmp.ne.s32.totalorder %s362, %s364
      %p371 = scmp.eq.s32.totalorder %s55, 1
      %p372 = por %p370, %p371
      %p373 = scmp.ne.s32.totalorder %s364, %s365
      %p374 = scmp.eq.s32.totalorder %s55, 0
      %p375 = por %p373, %p374
      %p376 = scmp.ne.s32.totalorder %s364, %s365
      %p377 = scmp.eq.s32.totalorder %s56, 1
      %p378 = por %p376, %p377
      %p380 = scmp.ne.s32.totalorder %s365, %s379
      %p381 = scmp.eq.s32.totalorder %s56, 0
      %p382 = por %p380, %p381
      %s384 = sadd.s32 %s383, 1
      %p387 = scmp.eq.s32.totalorder %s50, 1
      %p388 = scmp.ne.s32.totalorder %s383, %s385
      %p389 = scmp.eq.s32.totalorder %s50, 0
      %p390 = por %p388, %p389
      %p391 = scmp.ne.s32.totalorder %s383, %s385
      %p392 = scmp.eq.s32.totalorder %s55, 1
      %p393 = por %p391, %p392
      %p394 = scmp.ne.s32.totalorder %s385, %s386
      %p395 = scmp.eq.s32.totalorder %s55, 0
      %p396 = por %p394, %p395
      %p397 = scmp.ne.s32.totalorder %s385, %s386
      %p398 = scmp.eq.s32.totalorder %s56, 1
      %p399 = por %p397, %p398
      %p401 = scmp.ne.s32.totalorder %s386, %s400
      %p402 = scmp.eq.s32.totalorder %s56, 0
      %p403 = por %p401, %p402
      %s405 = sadd.s32 %s404, 1
      %p408 = scmp.eq.s32.totalorder %s50, 1
      %p409 = scmp.ne.s32.totalorder %s404, %s406
      %p410 = scmp.eq.s32.totalorder %s50, 0
      %p411 = por %p409, %p410
      %p412 = scmp.ne.s32.totalorder %s404, %s406
      %p413 = scmp.eq.s32.totalorder %s55, 1
      %p414 = por %p412, %p413
      %p415 = scmp.ne.s32.totalorder %s406, %s407
      %p416 = scmp.eq.s32.totalorder %s55, 0
      %p417 = por %p415, %p416
      %p418 = scmp.ne.s32.totalorder %s406, %s407
      %p419 = scmp.eq.s32.totalorder %s56, 1
      %p420 = por %p418, %p419
      %p422 = scmp.ne.s32.totalorder %s407, %s421
      %p423 = scmp.eq.s32.totalorder %s56, 0
      %p424 = por %p422, %p423
      %s426 = sadd.s32 %s425, 1
      %p429 = scmp.eq.s32.totalorder %s50, 1
      %p430 = scmp.ne.s32.totalorder %s425, %s427
      %p431 = scmp.eq.s32.totalorder %s50, 0
      %p432 = por %p430, %p431
      %p433 = scmp.ne.s32.totalorder %s425, %s427
      %p434 = scmp.eq.s32.totalorder %s55, 1
      %p435 = por %p433, %p434
      %p436 = scmp.ne.s32.totalorder %s427, %s428
      %p437 = scmp.eq.s32.totalorder %s55, 0
      %p438 = por %p436, %p437
      %p439 = scmp.ne.s32.totalorder %s427, %s428
      %p440 = scmp.eq.s32.totalorder %s56, 1
      %p441 = por %p439, %p440
      %p443 = scmp.ne.s32.totalorder %s428, %s442
      %p444 = scmp.eq.s32.totalorder %s56, 0
      %p445 = por %p443, %p444
      %s447 = sadd.s32 %s446, 1
      %p450 = scmp.eq.s32.totalorder %s50, 1
      %p451 = scmp.ne.s32.totalorder %s446, %s448
      %p452 = scmp.eq.s32.totalorder %s50, 0
      %p453 = por %p451, %p452
      %p454 = scmp.ne.s32.totalorder %s446, %s448
      %p455 = scmp.eq.s32.totalorder %s55, 1
      %p456 = por %p454, %p455
      %p457 = scmp.ne.s32.totalorder %s448, %s449
      %p458 = scmp.eq.s32.totalorder %s55, 0
      %p459 = por %p457, %p458
      %p460 = scmp.ne.s32.totalorder %s448, %s449
      %p461 = scmp.eq.s32.totalorder %s56, 1
      %p462 = por %p460, %p461
      %p464 = scmp.ne.s32.totalorder %s449, %s463
      %p465 = scmp.eq.s32.totalorder %s56, 0
      %p466 = por %p464, %p465
      %s468 = sadd.s32 %s467, 1
      %p471 = scmp.eq.s32.totalorder %s50, 1
      %p472 = scmp.ne.s32.totalorder %s467, %s469
      %p473 = scmp.eq.s32.totalorder %s50, 0
      %p474 = por %p472, %p473
      %p475 = scmp.ne.s32.totalorder %s467, %s469
      %p476 = scmp.eq.s32.totalorder %s55, 1
      %p477 = por %p475, %p476
      %p478 = scmp.ne.s32.totalorder %s469, %s470
      %p479 = scmp.eq.s32.totalorder %s55, 0
      %p480 = por %p478, %p479
      %p481 = scmp.ne.s32.totalorder %s469, %s470
      %p482 = scmp.eq.s32.totalorder %s56, 1
      %p483 = por %p481, %p482
      %p485 = scmp.ne.s32.totalorder %s470, %s484
      %p486 = scmp.eq.s32.totalorder %s56, 0
      %p487 = por %p485, %p486
      %s489 = sadd.s32 %s488, 1
      %p492 = scmp.eq.s32.totalorder %s50, 1
      %p493 = scmp.ne.s32.totalorder %s488, %s490
      %p494 = scmp.eq.s32.totalorder %s50, 0
      %p495 = por %p493, %p494
      %p496 = scmp.ne.s32.totalorder %s488, %s490
      %p497 = scmp.eq.s32.totalorder %s55, 1
      %p498 = por %p496, %p497
      %p499 = scmp.ne.s32.totalorder %s490, %s491
      %p500 = scmp.eq.s32.totalorder %s55, 0
      %p501 = por %p499, %p500
      %p502 = scmp.ne.s32.totalorder %s490, %s491
      %p503 = scmp.eq.s32.totalorder %s56, 1
      %p504 = por %p502, %p503
      %p506 = scmp.ne.s32.totalorder %s491, %s505
      %p507 = scmp.eq.s32.totalorder %s56, 0
      %p508 = por %p506, %p507
      %s510 = sadd.s32 %s509, 1
      %p513 = scmp.eq.s32.totalorder %s50, 1
      %p514 = scmp.ne.s32.totalorder %s509, %s511
      %p515 = scmp.eq.s32.totalorder %s50, 0
      %p516 = por %p514, %p515
      %p517 = scmp.ne.s32.totalorder %s509, %s511
      %p518 = scmp.eq.s32.totalorder %s55, 1
      %p519 = por %p517, %p518
      %p520 = scmp.ne.s32.totalorder %s511, %s512
      %p521 = scmp.eq.s32.totalorder %s55, 0
      %p522 = por %p520, %p521
      %p523 = scmp.ne.s32.totalorder %s511, %s512
      %p524 = scmp.eq.s32.totalorder %s56, 1
      %p525 = por %p523, %p524
      %p527 = scmp.ne.s32.totalorder %s512, %s526
      %p528 = scmp.eq.s32.totalorder %s56, 0
      %p529 = por %p527, %p528
      %s530 = ssub.s32 %s50, %s57
      %p531 = scmp.eq.s32.totalorder %s530, 0
      %s533 = sadd.s32 %s532, 1
      %s534 = scalar_select %p531, %s532, %s533
      %p537 = pneg %p531
      %p538 = scmp.eq.s32.totalorder %s50, 1
      %p539 = por %p537, %p538
      %p540 = scmp.ne.s32.totalorder %s532, %s535
      %p541 = scmp.eq.s32.totalorder %s50, 0
      %p542 = por %p540, %p541
      %p543 = scmp.ne.s32.totalorder %s532, %s535
      %p544 = scmp.eq.s32.totalorder %s55, 1
      %p545 = por %p543, %p544
      %p546 = scmp.ne.s32.totalorder %s535, %s536
      %p547 = scmp.eq.s32.totalorder %s55, 0
      %p548 = por %p546, %p547
      %p549 = scmp.ne.s32.totalorder %s535, %s536
      %p550 = scmp.eq.s32.totalorder %s56, 1
      %p551 = por %p549, %p550
      %p553 = scmp.ne.s32.totalorder %s536, %s552
      %p554 = scmp.eq.s32.totalorder %s56, 0
      %p555 = por %p553, %p554
      %s556 = ssub.s32 %s50, %s57
      %p557 = scmp.eq.s32.totalorder %s556, 0
      %s559 = sadd.s32 %s558, 1
      %s560 = scalar_select %p557, %s558, %s559
      %p563 = pneg %p557
      %p564 = scmp.eq.s32.totalorder %s50, 1
      %p565 = por %p563, %p564
      %p566 = scmp.ne.s32.totalorder %s558, %s561
      %p567 = scmp.eq.s32.totalorder %s50, 0
      %p568 = por %p566, %p567
      %p569 = scmp.ne.s32.totalorder %s558, %s561
      %p570 = scmp.eq.s32.totalorder %s55, 1
      %p571 = por %p569, %p570
      %p572 = scmp.ne.s32.totalorder %s561, %s562
      %p573 = scmp.eq.s32.totalorder %s55, 0
      %p574 = por %p572, %p573
      %p575 = scmp.ne.s32.totalorder %s561, %s562
      %p576 = scmp.eq.s32.totalorder %s56, 1
      %p577 = por %p575, %p576
      %p579 = scmp.ne.s32.totalorder %s562, %s578
      %p580 = scmp.eq.s32.totalorder %s56, 0
      %p581 = por %p579, %p580
      %p582 = scmp.le.s32.totalorder 1, %s50
      %p583 = scmp.lt.s32.totalorder %s50, 3
      %p584 = pnand %p582, %p583
      %p585 = pneg %p584
      // Predicated region
      $region9: #{cross_attention_pallas.1} parent=5 // pred_check
        _
      $region10: #{cross_attention_pallas.1} parent=5 // pred_check_branch
        %587 = sbr.rel (%p584) target = $region12
      $region11: #{cross_attention_pallas.1} parent=5 // pred_region
        %s588 = ssub.s32 %s50, 1
        // Predicated region
        $region13: #{cross_attention_pallas.1} parent=11 // pred_check
          %p589 = pneg %p123
        $region14: #{cross_attention_pallas.1} parent=11 // pred_check_branch
          %591 = sbr.rel (%p589) target = $region16
        $region15: #{cross_attention_pallas.1} parent=11 // pred_region
          %s593 = ssub.s32 16, 16
          %594 = vsyncadd [#allocation6], %s593
          %s596 = sshll.u32 [#allocation7], 4
          %s597 = int_to_ptr.vmem [resolvable:$true] %s596
          %599 = dma.hbm_to_vmem [thread:$0]  %s2, 16, %s597, [#allocation6]
        $region16: #{cross_attention_pallas.1} parent=11 // pred_fallthru
          _
        // Predicated region
        $region17: #{cross_attention_pallas.1} parent=11 // pred_check
          %p600 = pneg %p144
        $region18: #{cross_attention_pallas.1} parent=11 // pred_check_branch
          %602 = sbr.rel (%p600) target = $region20
        $region19: #{cross_attention_pallas.1} parent=11 // pred_region
          %s604 = ssub.s32 16, 16
          %605 = vsyncadd [#allocation9], %s604
          %s607 = sshll.u32 [#allocation8], 4
          %s608 = int_to_ptr.vmem [resolvable:$true] %s607
          %610 = dma.hbm_to_vmem [thread:$0]  %s3, 16, %s608, [#allocation9]
        $region20: #{cross_attention_pallas.1} parent=11 // pred_fallthru
          _
        // Predicated region
        $region21: #{cross_attention_pallas.1} parent=11 // pred_check
          %p611 = pneg %p165
        $region22: #{cross_attention_pallas.1} parent=11 // pred_check_branch
          %613 = sbr.rel (%p611) target = $region24
        $region23: #{cross_attention_pallas.1} parent=11 // pred_region
          %s615 = ssub.s32 16, 16
          %616 = vsyncadd [#allocation9], %s615
          %s618 = sshll.u32 [#allocation10], 4
          %s619 = int_to_ptr.vmem [resolvable:$true] %s618
          %621 = dma.hbm_to_vmem [thread:$0]  %s4, 16, %s619, [#allocation9]
        $region24: #{cross_attention_pallas.1} parent=11 // pred_fallthru
          _
        // Predicated region
        $region25: #{cross_attention_pallas.1} parent=11 // pred_check
          %p622 = pneg %p186
        $region26: #{cross_attention_pallas.1} parent=11 // pred_check_branch
          %624 = sbr.rel (%p622) target = $region28
        $region27: #{cross_attention_pallas.1} parent=11 // pred_region
          %s626 = ssub.s32 16, 16
          %627 = vsyncadd [#allocation12], %s626
          %s629 = sshll.u32 [#allocation11], 4
          %s630 = int_to_ptr.vmem [resolvable:$true] %s629
          %632 = dma.hbm_to_vmem [thread:$0]  %s5, 16, %s630, [#allocation12]
        $region28: #{cross_attention_pallas.1} parent=11 // pred_fallthru
          _
        // Predicated region
        $region29: #{cross_attention_pallas.1} parent=11 // pred_check
          %p633 = pneg %p207
        $region30: #{cross_attention_pallas.1} parent=11 // pred_check_branch
          %635 = sbr.rel (%p633) target = $region32
        $region31: #{cross_attention_pallas.1} parent=11 // pred_region
          %s637 = ssub.s32 512, 512
          %638 = vsyncadd [#allocation12], %s637
          %s639 = sshll.u32 [#allocation13], 4
          %s640 = int_to_ptr.vmem [resolvable:$true] %s639
          %645 = dma.hbm_to_vmem [thread:$0]  %s6, 512, %s640, [#allocation12], 128, 128, 8
        $region32: #{cross_attention_pallas.1} parent=11 // pred_fallthru
          _
        // Predicated region
        $region33: #{cross_attention_pallas.1} parent=11 // pred_check
          %p646 = pneg %p228
        $region34: #{cross_attention_pallas.1} parent=11 // pred_check_branch
          %648 = sbr.rel (%p646) target = $region36
        $region35: #{cross_attention_pallas.1} parent=11 // pred_region
          %s650 = ssub.s32 16, 16
          %651 = vsyncadd [#allocation15], %s650
          %s653 = sshll.u32 [#allocation14], 4
          %s654 = int_to_ptr.vmem [resolvable:$true] %s653
          %656 = dma.hbm_to_vmem [thread:$0]  %s7, 16, %s654, [#allocation15]
        $region36: #{cross_attention_pallas.1} parent=11 // pred_fallthru
          _
        // Predicated region
        $region37: #{cross_attention_pallas.1} parent=11 // pred_check
          %p657 = pneg %p249
        $region38: #{cross_attention_pallas.1} parent=11 // pred_check_branch
          %659 = sbr.rel (%p657) target = $region40
        $region39: #{cross_attention_pallas.1} parent=11 // pred_region
          %s661 = ssub.s32 512, 512
          %662 = vsyncadd [#allocation15], %s661
          %s663 = sshll.u32 [#allocation16], 4
          %s664 = int_to_ptr.vmem [resolvable:$true] %s663
          %669 = dma.hbm_to_vmem [thread:$0]  %s8, 512, %s664, [#allocation15], 128, 128, 8
        $region40: #{cross_attention_pallas.1} parent=11 // pred_fallthru
          _
        // Predicated region
        $region41: #{cross_attention_pallas.1} parent=11 // pred_check
          %p670 = pneg %p270
        $region42: #{cross_attention_pallas.1} parent=11 // pred_check_branch
          %672 = sbr.rel (%p670) target = $region44
        $region43: #{cross_attention_pallas.1} parent=11 // pred_region
          %s674 = ssub.s32 16, 16
          %675 = vsyncadd [#allocation18], %s674
          %s677 = sshll.u32 [#allocation17], 4
          %s678 = int_to_ptr.vmem [resolvable:$true] %s677
          %680 = dma.hbm_to_vmem [thread:$0]  %s9, 16, %s678, [#allocation18]
        $region44: #{cross_attention_pallas.1} parent=11 // pred_fallthru
          _
        // Predicated region
        $region45: #{cross_attention_pallas.1} parent=11 // pred_check
          %p681 = pneg %p291
        $region46: #{cross_attention_pallas.1} parent=11 // pred_check_branch
          %683 = sbr.rel (%p681) target = $region48
        $region47: #{cross_attention_pallas.1} parent=11 // pred_region
          %s685 = ssub.s32 512, 512
          %686 = vsyncadd [#allocation18], %s685
          %s687 = sshll.u32 [#allocation19], 4
          %s688 = int_to_ptr.vmem [resolvable:$true] %s687
          %693 = dma.hbm_to_vmem [thread:$0]  %s10, 512, %s688, [#allocation18], 128, 128, 8
        $region48: #{cross_attention_pallas.1} parent=11 // pred_fallthru
          _
        // Predicated region
        $region49: #{cross_attention_pallas.1} parent=11 // pred_check
          %p694 = pneg %p312
        $region50: #{cross_attention_pallas.1} parent=11 // pred_check_branch
          %696 = sbr.rel (%p694) target = $region52
        $region51: #{cross_attention_pallas.1} parent=11 // pred_region
          %s698 = ssub.s32 16, 16
          %699 = vsyncadd [#allocation21], %s698
          %s701 = sshll.u32 [#allocation20], 4
          %s702 = int_to_ptr.vmem [resolvable:$true] %s701
          %704 = dma.hbm_to_vmem [thread:$0]  %s11, 16, %s702, [#allocation21]
        $region52: #{cross_attention_pallas.1} parent=11 // pred_fallthru
          _
        // Predicated region
        $region53: #{cross_attention_pallas.1} parent=11 // pred_check
          %p705 = pneg %p333
        $region54: #{cross_attention_pallas.1} parent=11 // pred_check_branch
          %707 = sbr.rel (%p705) target = $region56
        $region55: #{cross_attention_pallas.1} parent=11 // pred_region
          %s709 = ssub.s32 512, 512
          %710 = vsyncadd [#allocation21], %s709
          %s711 = sshll.u32 [#allocation22], 4
          %s712 = int_to_ptr.vmem [resolvable:$true] %s711
          %717 = dma.hbm_to_vmem [thread:$0]  %s12, 512, %s712, [#allocation21], 128, 128, 8
        $region56: #{cross_attention_pallas.1} parent=11 // pred_fallthru
          _
        // Predicated region
        $region57: #{cross_attention_pallas.1} parent=11 // pred_check
          %p718 = pneg %p354
        $region58: #{cross_attention_pallas.1} parent=11 // pred_check_branch
          %720 = sbr.rel (%p718) target = $region60
        $region59: #{cross_attention_pallas.1} parent=11 // pred_region
          %s722 = ssub.s32 16, 16
          %723 = vsyncadd [#allocation24], %s722
          %s725 = sshll.u32 [#allocation23], 4
          %s726 = int_to_ptr.vmem [resolvable:$true] %s725
          %728 = dma.hbm_to_vmem [thread:$0]  %s13, 16, %s726, [#allocation24]
        $region60: #{cross_attention_pallas.1} parent=11 // pred_fallthru
          _
        // Predicated region
        $region61: #{cross_attention_pallas.1} parent=11 // pred_check
          %p729 = pneg %p375
        $region62: #{cross_attention_pallas.1} parent=11 // pred_check_branch
          %731 = sbr.rel (%p729) target = $region64
        $region63: #{cross_attention_pallas.1} parent=11 // pred_region
          %s733 = ssub.s32 512, 512
          %734 = vsyncadd [#allocation24], %s733
          %s735 = sshll.u32 [#allocation25], 4
          %s736 = int_to_ptr.vmem [resolvable:$true] %s735
          %741 = dma.hbm_to_vmem [thread:$0]  %s14, 512, %s736, [#allocation24], 128, 128, 8
        $region64: #{cross_attention_pallas.1} parent=11 // pred_fallthru
          _
        // Predicated region
        $region65: #{cross_attention_pallas.1} parent=11 // pred_check
          %p742 = pneg %p396
        $region66: #{cross_attention_pallas.1} parent=11 // pred_check_branch
          %744 = sbr.rel (%p742) target = $region68
        $region67: #{cross_attention_pallas.1} parent=11 // pred_region
          %s746 = ssub.s32 16, 16
          %747 = vsyncadd [#allocation27], %s746
          %s749 = sshll.u32 [#allocation26], 4
          %s750 = int_to_ptr.vmem [resolvable:$true] %s749
          %752 = dma.hbm_to_vmem [thread:$0]  %s15, 16, %s750, [#allocation27]
        $region68: #{cross_attention_pallas.1} parent=11 // pred_fallthru
          _
        // Predicated region
        $region69: #{cross_attention_pallas.1} parent=11 // pred_check
          %p753 = pneg %p417
        $region70: #{cross_attention_pallas.1} parent=11 // pred_check_branch
          %755 = sbr.rel (%p753) target = $region72
        $region71: #{cross_attention_pallas.1} parent=11 // pred_region
          %s757 = ssub.s32 512, 512
          %758 = vsyncadd [#allocation27], %s757
          %s759 = sshll.u32 [#allocation28], 4
          %s760 = int_to_ptr.vmem [resolvable:$true] %s759
          %765 = dma.hbm_to_vmem [thread:$0]  %s16, 512, %s760, [#allocation27], 128, 128, 8
        $region72: #{cross_attention_pallas.1} parent=11 // pred_fallthru
          _
        // Predicated region
        $region73: #{cross_attention_pallas.1} parent=11 // pred_check
          %p766 = pneg %p438
        $region74: #{cross_attention_pallas.1} parent=11 // pred_check_branch
          %768 = sbr.rel (%p766) target = $region76
        $region75: #{cross_attention_pallas.1} parent=11 // pred_region
          %s770 = ssub.s32 16, 16
          %771 = vsyncadd [#allocation30], %s770
          %s773 = sshll.u32 [#allocation29], 4
          %s774 = int_to_ptr.vmem [resolvable:$true] %s773
          %776 = dma.hbm_to_vmem [thread:$0]  %s17, 16, %s774, [#allocation30]
        $region76: #{cross_attention_pallas.1} parent=11 // pred_fallthru
          _
        // Predicated region
        $region77: #{cross_attention_pallas.1} parent=11 // pred_check
          %p777 = pneg %p459
        $region78: #{cross_attention_pallas.1} parent=11 // pred_check_branch
          %779 = sbr.rel (%p777) target = $region80
        $region79: #{cross_attention_pallas.1} parent=11 // pred_region
          _
        $region80: #{cross_attention_pallas.1} parent=11 // pred_fallthru
          _
        // Predicated region
        $region81: #{cross_attention_pallas.1} parent=11 // pred_check
          %p780 = pneg %p480
        $region82: #{cross_attention_pallas.1} parent=11 // pred_check_branch
          %782 = sbr.rel (%p780) target = $region84
        $region83: #{cross_attention_pallas.1} parent=11 // pred_region
          _
        $region84: #{cross_attention_pallas.1} parent=11 // pred_fallthru
          _
        // Predicated region
        $region85: #{cross_attention_pallas.1} parent=11 // pred_check
          %p783 = pneg %p501
        $region86: #{cross_attention_pallas.1} parent=11 // pred_check_branch
          %785 = sbr.rel (%p783) target = $region88
        $region87: #{cross_attention_pallas.1} parent=11 // pred_region
          %s787 = ssub.s32 512, 512
          %788 = vsyncadd [#allocation30], %s787
          %s789 = sshll.u32 [#allocation31], 4
          %s790 = int_to_ptr.vmem [resolvable:$true] %s789
          %795 = dma.hbm_to_vmem [thread:$0]  %s20, 512, %s790, [#allocation30], 128, 128, 8
        $region88: #{cross_attention_pallas.1} parent=11 // pred_fallthru
          _
        // Predicated region
        $region89: #{cross_attention_pallas.1} parent=11 // pred_check
          %p796 = pneg %p522
        $region90: #{cross_attention_pallas.1} parent=11 // pred_check_branch
          %798 = sbr.rel (%p796) target = $region92
        $region91: #{cross_attention_pallas.1} parent=11 // pred_region
          _
        $region92: #{cross_attention_pallas.1} parent=11 // pred_fallthru
          _
      $region12: #{cross_attention_pallas.1} parent=5 // pred_fallthru
        _
      %p799 = scmp.lt.s32.totalorder %s50, 2
      // Predicated region
      $region93: #{cross_attention_pallas.1} parent=5 // pred_check
        %p800 = pneg %p799
      $region94: #{cross_attention_pallas.1} parent=5 // pred_check_branch
        %802 = sbr.rel (%p800) target = $region96
      $region95: #{cross_attention_pallas.1} parent=5 // pred_region
        // Predicated region
        $region97: #{cross_attention_pallas.1} parent=95 // pred_check
          %p803 = pneg %p70
        $region98: #{cross_attention_pallas.1} parent=95 // pred_check_branch
          %805 = sbr.rel (%p803) target = $region100
        $region99: #{cross_attention_pallas.1} parent=95 // pred_region
          %s806 = sand.u32 %s60, 1
          %s807 = scalar_lea.sflag [#allocation3], %s806
          %s808 = sand.u32 %s60, 1
          %s809 = smul.addr %s808, 16
          %s810 = scalar_lea.vmem [#allocation2], %s809
          %s812 = ssub.s32 256, 256
          %813 = vsyncadd %s807, %s812
          %s814 = smul.addr %s50, 2
          %s815 = smul.addr %s814, 128
          %s816 = scalar_lea.hbm %s0, %s815
          %s817 = sshll.u32 %s810, 4
          %s818 = int_to_ptr.vmem [resolvable:$true] %s817
          %823 = dma.hbm_to_vmem [thread:$0]  %s816, 256, %s818, %s807, 128, 128, 8
        $region100: #{cross_attention_pallas.1} parent=95 // pred_fallthru
          _
        // Predicated region
        $region101: #{cross_attention_pallas.1} parent=95 // pred_check
          %p824 = pneg %p96
        $region102: #{cross_attention_pallas.1} parent=95 // pred_check_branch
          %826 = sbr.rel (%p824) target = $region104
        $region103: #{cross_attention_pallas.1} parent=95 // pred_region
          %s827 = sand.u32 %s50, 1
          %s828 = scalar_lea.sflag [#allocation6], %s827
          %s829 = sand.u32 %s86, 1
          %s830 = smul.addr %s829, 16
          %s831 = scalar_lea.vmem [#allocation5], %s830
          %s833 = ssub.s32 256, 256
          %834 = vsyncadd %s828, %s833
          %s835 = smul.addr %s50, 2
          %s836 = smul.addr %s835, 128
          %s837 = scalar_lea.hbm %s1, %s836
          %s838 = sshll.u32 %s831, 4
          %s839 = int_to_ptr.vmem [resolvable:$true] %s838
          %844 = dma.hbm_to_vmem [thread:$0]  %s837, 256, %s839, %s828, 128, 128, 8
        $region104: #{cross_attention_pallas.1} parent=95 // pred_fallthru
          _
      $region96: #{cross_attention_pallas.1} parent=5 // pred_fallthru
        _
      %p845 = scmp.le.s32.totalorder 1, %s50
      %p846 = scmp.lt.s32.totalorder %s50, 3
      %p847 = pnand %p845, %p846
      %p848 = pneg %p847
      // Predicated region
      $region105: #{cross_attention_pallas.1} parent=5 // pred_check
        _
      $region106: #{cross_attention_pallas.1} parent=5 // pred_check_branch
        %850 = sbr.rel (%p847) target = $region108
      $region107: #{cross_attention_pallas.1} parent=5 // pred_region
        %s851 = ssub.s32 %s50, 1
        %s852 = sand.u32 %s63, 1
        %s853 = scalar_lea.sflag [#allocation3], %s852
        %s854 = sand.u32 %s63, 1
        %s855 = smul.addr %s854, 16
        %s856 = scalar_lea.vmem [#allocation2], %s855
        // Predicated region
        $region109: #{cross_attention_pallas.1} parent=107 // pred_check
          %p857 = pneg %p76
        $region110: #{cross_attention_pallas.1} parent=107 // pred_check_branch
          %859 = sbr.rel (%p857) target = $region112
        $region111: #{cross_attention_pallas.1} parent=107 // pred_region
          %860 = dma.done %s853, 256
        $region112: #{cross_attention_pallas.1} parent=107 // pred_fallthru
          _
        %s861 = sand.u32 %s55, 1
        %s862 = scalar_lea.sflag [#allocation6], %s861
        %s863 = sand.u32 %s89, 1
        %s864 = smul.addr %s863, 16
        %s865 = scalar_lea.vmem [#allocation5], %s864
        // Predicated region
        $region113: #{cross_attention_pallas.1} parent=107 // pred_check
          %p866 = pneg %p102
        $region114: #{cross_attention_pallas.1} parent=107 // pred_check_branch
          %868 = sbr.rel (%p866) target = $region116
        $region115: #{cross_attention_pallas.1} parent=107 // pred_region
          %869 = dma.done %s862, 256
        $region116: #{cross_attention_pallas.1} parent=107 // pred_fallthru
          _
        // Predicated region
        $region117: #{cross_attention_pallas.1} parent=107 // pred_check
          %p870 = pneg %p123
        $region118: #{cross_attention_pallas.1} parent=107 // pred_check_branch
          %872 = sbr.rel (%p870) target = $region120
        $region119: #{cross_attention_pallas.1} parent=107 // pred_region
          %873 = dma.done [#allocation6], 16
        $region120: #{cross_attention_pallas.1} parent=107 // pred_fallthru
          _
        // Predicated region
        $region121: #{cross_attention_pallas.1} parent=107 // pred_check
          %p874 = pneg %p144
        $region122: #{cross_attention_pallas.1} parent=107 // pred_check_branch
          %876 = sbr.rel (%p874) target = $region124
        $region123: #{cross_attention_pallas.1} parent=107 // pred_region
          %877 = dma.done [#allocation9], 16
        $region124: #{cross_attention_pallas.1} parent=107 // pred_fallthru
          _
        // Predicated region
        $region125: #{cross_attention_pallas.1} parent=107 // pred_check
          %p878 = pneg %p165
        $region126: #{cross_attention_pallas.1} parent=107 // pred_check_branch
          %880 = sbr.rel (%p878) target = $region128
        $region127: #{cross_attention_pallas.1} parent=107 // pred_region
          %881 = dma.done [#allocation9], 16
        $region128: #{cross_attention_pallas.1} parent=107 // pred_fallthru
          _
        // Predicated region
        $region129: #{cross_attention_pallas.1} parent=107 // pred_check
          %p882 = pneg %p186
        $region130: #{cross_attention_pallas.1} parent=107 // pred_check_branch
          %884 = sbr.rel (%p882) target = $region132
        $region131: #{cross_attention_pallas.1} parent=107 // pred_region
          %885 = dma.done [#allocation12], 16
        $region132: #{cross_attention_pallas.1} parent=107 // pred_fallthru
          _
        // Predicated region
        $region133: #{cross_attention_pallas.1} parent=107 // pred_check
          %p886 = pneg %p207
        $region134: #{cross_attention_pallas.1} parent=107 // pred_check_branch
          %888 = sbr.rel (%p886) target = $region136
        $region135: #{cross_attention_pallas.1} parent=107 // pred_region
          %889 = dma.done [#allocation12], 512
        $region136: #{cross_attention_pallas.1} parent=107 // pred_fallthru
          _
        // Predicated region
        $region137: #{cross_attention_pallas.1} parent=107 // pred_check
          %p890 = pneg %p228
        $region138: #{cross_attention_pallas.1} parent=107 // pred_check_branch
          %892 = sbr.rel (%p890) target = $region140
        $region139: #{cross_attention_pallas.1} parent=107 // pred_region
          %893 = dma.done [#allocation15], 16
        $region140: #{cross_attention_pallas.1} parent=107 // pred_fallthru
          _
        // Predicated region
        $region141: #{cross_attention_pallas.1} parent=107 // pred_check
          %p894 = pneg %p249
        $region142: #{cross_attention_pallas.1} parent=107 // pred_check_branch
          %896 = sbr.rel (%p894) target = $region144
        $region143: #{cross_attention_pallas.1} parent=107 // pred_region
          %897 = dma.done [#allocation15], 512
        $region144: #{cross_attention_pallas.1} parent=107 // pred_fallthru
          _
        // Predicated region
        $region145: #{cross_attention_pallas.1} parent=107 // pred_check
          %p898 = pneg %p270
        $region146: #{cross_attention_pallas.1} parent=107 // pred_check_branch
          %900 = sbr.rel (%p898) target = $region148
        $region147: #{cross_attention_pallas.1} parent=107 // pred_region
          %901 = dma.done [#allocation18], 16
        $region148: #{cross_attention_pallas.1} parent=107 // pred_fallthru
          _
        // Predicated region
        $region149: #{cross_attention_pallas.1} parent=107 // pred_check
          %p902 = pneg %p291
        $region150: #{cross_attention_pallas.1} parent=107 // pred_check_branch
          %904 = sbr.rel (%p902) target = $region152
        $region151: #{cross_attention_pallas.1} parent=107 // pred_region
          %905 = dma.done [#allocation18], 512
        $region152: #{cross_attention_pallas.1} parent=107 // pred_fallthru
          _
        // Predicated region
        $region153: #{cross_attention_pallas.1} parent=107 // pred_check
          %p906 = pneg %p312
        $region154: #{cross_attention_pallas.1} parent=107 // pred_check_branch
          %908 = sbr.rel (%p906) target = $region156
        $region155: #{cross_attention_pallas.1} parent=107 // pred_region
          %909 = dma.done [#allocation21], 16
        $region156: #{cross_attention_pallas.1} parent=107 // pred_fallthru
          _
        // Predicated region
        $region157: #{cross_attention_pallas.1} parent=107 // pred_check
          %p910 = pneg %p333
        $region158: #{cross_attention_pallas.1} parent=107 // pred_check_branch
          %912 = sbr.rel (%p910) target = $region160
        $region159: #{cross_attention_pallas.1} parent=107 // pred_region
          %913 = dma.done [#allocation21], 512
        $region160: #{cross_attention_pallas.1} parent=107 // pred_fallthru
          _
        // Predicated region
        $region161: #{cross_attention_pallas.1} parent=107 // pred_check
          %p914 = pneg %p354
        $region162: #{cross_attention_pallas.1} parent=107 // pred_check_branch
          %916 = sbr.rel (%p914) target = $region164
        $region163: #{cross_attention_pallas.1} parent=107 // pred_region
          %917 = dma.done [#allocation24], 16
        $region164: #{cross_attention_pallas.1} parent=107 // pred_fallthru
          _
        // Predicated region
        $region165: #{cross_attention_pallas.1} parent=107 // pred_check
          %p918 = pneg %p375
        $region166: #{cross_attention_pallas.1} parent=107 // pred_check_branch
          %920 = sbr.rel (%p918) target = $region168
        $region167: #{cross_attention_pallas.1} parent=107 // pred_region
          %921 = dma.done [#allocation24], 512
        $region168: #{cross_attention_pallas.1} parent=107 // pred_fallthru
          _
        // Predicated region
        $region169: #{cross_attention_pallas.1} parent=107 // pred_check
          %p922 = pneg %p396
        $region170: #{cross_attention_pallas.1} parent=107 // pred_check_branch
          %924 = sbr.rel (%p922) target = $region172
        $region171: #{cross_attention_pallas.1} parent=107 // pred_region
          %925 = dma.done [#allocation27], 16
        $region172: #{cross_attention_pallas.1} parent=107 // pred_fallthru
          _
        // Predicated region
        $region173: #{cross_attention_pallas.1} parent=107 // pred_check
          %p926 = pneg %p417
        $region174: #{cross_attention_pallas.1} parent=107 // pred_check_branch
          %928 = sbr.rel (%p926) target = $region176
        $region175: #{cross_attention_pallas.1} parent=107 // pred_region
          %929 = dma.done [#allocation27], 512
        $region176: #{cross_attention_pallas.1} parent=107 // pred_fallthru
          _
        // Predicated region
        $region177: #{cross_attention_pallas.1} parent=107 // pred_check
          %p930 = pneg %p438
        $region178: #{cross_attention_pallas.1} parent=107 // pred_check_branch
          %932 = sbr.rel (%p930) target = $region180
        $region179: #{cross_attention_pallas.1} parent=107 // pred_region
          %933 = dma.done [#allocation30], 16
        $region180: #{cross_attention_pallas.1} parent=107 // pred_fallthru
          _
        // Predicated region
        $region181: #{cross_attention_pallas.1} parent=107 // pred_check
          %p934 = pneg %p501
        $region182: #{cross_attention_pallas.1} parent=107 // pred_check_branch
          %936 = sbr.rel (%p934) target = $region184
        $region183: #{cross_attention_pallas.1} parent=107 // pred_region
          %937 = dma.done [#allocation30], 512
        $region184: #{cross_attention_pallas.1} parent=107 // pred_fallthru
          _
        %s938 = sand.u32 %s63, 1
        %s939 = scalar_lea.sflag [#allocation3], %s938
        %s940 = sand.u32 %s63, 1
        %s941 = smul.addr %s940, 16
        %s942 = scalar_lea.vmem [#allocation2], %s941
        %p943 = pneg %p76
        %p944 = pneg %p73
        %s945 = sand.u32 %s55, 1
        %s946 = scalar_lea.sflag [#allocation6], %s945
        %s947 = sand.u32 %s89, 1
        %s948 = smul.addr %s947, 16
        %s949 = scalar_lea.vmem [#allocation5], %s948
        %p950 = pneg %p102
        %p951 = pneg %p99
        %p952 = pneg %p123
        %p953 = pneg %p120
        %p954 = pneg %p144
        %p955 = pneg %p141
        %p956 = pneg %p165
        %p957 = pneg %p162
        %p958 = pneg %p186
        %p959 = pneg %p183
        %p960 = pneg %p207
        %p961 = pneg %p204
        %p962 = pneg %p228
        %p963 = pneg %p225
        %p964 = pneg %p249
        %p965 = pneg %p246
        %p966 = pneg %p270
        %p967 = pneg %p267
        %p968 = pneg %p291
        %p969 = pneg %p288
        %p970 = pneg %p312
        %p971 = pneg %p309
        %p972 = pneg %p333
        %p973 = pneg %p330
        %p974 = pneg %p354
        %p975 = pneg %p351
        %p976 = pneg %p375
        %p977 = pneg %p372
        %p978 = pneg %p396
        %p979 = pneg %p393
        %p980 = pneg %p417
        %p981 = pneg %p414
        %p982 = pneg %p438
        %p983 = pneg %p435
        %p984 = pneg %p459
        %p985 = pneg %p456
        %p986 = pneg %p480
        %p987 = pneg %p477
        %p988 = pneg %p501
        %p989 = pneg %p498
        %p990 = pneg %p522
        %p991 = pneg %p519
        %p992 = pneg %p548
        %p993 = pneg %p545
        %s994 = sand.u32 %s535, 1
        %s995 = scalar_lea.sflag [#allocation4], %s994
        %s996 = sand.u32 %s535, 1
        %s997 = smul.addr %s996, 16
        %s998 = scalar_lea.vmem [#allocation32], %s997
        %p999 = pneg %p574
        %p1000 = pneg %p571
        %s1001 = sand.u32 %s561, 1
        %s1002 = scalar_lea.sflag [#allocation34], %s1001
        %s1003 = sand.u32 %s561, 1
        %s1004 = smul.addr %s1003, 16
        %s1005 = scalar_lea.vmem [#allocation33], %s1004
        %v1006 = vld [vmem:[%s856] sm:$0xff]
        %v1007 = vld [vmem:[%s856 + $0x8] sm:$0xff]
        %v1008 = vld [vmem:[#allocation7] sm:$0x1]
        %v1009 = vld [vmem:[#allocation8] sm:$0x1]
        %vm1010 = vcmask 261120
        %v1011 = vsel %vm1010, %v1006, 0.0
        %1012 = vadd.xlane.f32.xlu0 %v1011
        %v1013 = vpop.xlane.xlu0 %1012
        %v1014 = vsel %vm1010, %v1007, 0.0
        %1015 = vadd.xlane.f32.xlu0 %v1014
        %v1016 = vpop.xlane.xlu0 %1015
        %v1017 = vrcp.pop 32.0
        %v1018 = vmul.f32 %v1013, %v1017
        %v1019 = vmul.f32 %v1016, %v1017
        %v1020 = vsub.f32 %v1006, %v1018
        %v1021 = vsub.f32 %v1007, %v1019
        %v1022 = vmul.f32 %v1020, %v1020
        %v1023 = vmul.f32 %v1021, %v1021
        %v1024 = vsel %vm1010, %v1022, 0.0
        %1025 = vadd.xlane.f32.xlu0 %v1024
        %v1026 = vpop.xlane.xlu0 %1025
        %v1027 = vsel %vm1010, %v1023, 0.0
        %1028 = vadd.xlane.f32.xlu0 %v1027
        %v1029 = vpop.xlane.xlu0 %1028
        %v1030 = vmul.f32 %v1026, %v1017
        %v1031 = vmul.f32 %v1029, %v1017
        %v1032 = vadd.f32 %v1030, 1e-05
        %v1033 = vadd.f32 %v1031, 1e-05
        %v1034 = vrsqrt.pop %v1032
        %v1035 = vrsqrt.pop %v1033
        %v1036 = vmul.f32 %v1020, %v1034
        %v1037 = vmul.f32 %v1021, %v1035
        %v1039 = vlaneseq
        %v1040 = vshrl.u32 %v1039, 7
        %v1041 = vsub.s32 0, %v1040
        %v1042 = vrot.slane %v1008, %v1041
        %v1044 = vmul.f32 %v1036, %v1042
        %v1045 = vmul.f32 %v1037, %v1042
        %v1047 = vlaneseq
        %v1048 = vshrl.u32 %v1047, 7
        %v1049 = vsub.s32 0, %v1048
        %v1050 = vrot.slane %v1009, %v1049
        %v1052 = vadd.f32 %v1044, %v1050
        %v1053 = vadd.f32 %v1045, %v1050
        %v1054 = vld [vmem:[%s865] sm:$0xff]
        %v1055 = vld [vmem:[%s865 + $0x8] sm:$0xff]
        %v1056 = vld [vmem:[#allocation10] sm:$0x1]
        %v1057 = vld [vmem:[#allocation11] sm:$0x1]
        %v1058 = vsel %vm1010, %v1054, 0.0
        %1059 = vadd.xlane.f32.xlu0 %v1058
        %v1060 = vpop.xlane.xlu0 %1059
        %v1061 = vsel %vm1010, %v1055, 0.0
        %1062 = vadd.xlane.f32.xlu0 %v1061
        %v1063 = vpop.xlane.xlu0 %1062
        %v1064 = vmul.f32 %v1060, %v1017
        %v1065 = vmul.f32 %v1063, %v1017
        %v1066 = vsub.f32 %v1054, %v1064
        %v1067 = vsub.f32 %v1055, %v1065
        %v1068 = vmul.f32 %v1066, %v1066
        %v1069 = vmul.f32 %v1067, %v1067
        %v1070 = vsel %vm1010, %v1068, 0.0
        %1071 = vadd.xlane.f32.xlu0 %v1070
        %v1072 = vpop.xlane.xlu0 %1071
        %v1073 = vsel %vm1010, %v1069, 0.0
        %1074 = vadd.xlane.f32.xlu0 %v1073
        %v1075 = vpop.xlane.xlu0 %1074
        %v1076 = vmul.f32 %v1072, %v1017
        %v1077 = vmul.f32 %v1075, %v1017
        %v1078 = vadd.f32 %v1076, 1e-05
        %v1079 = vadd.f32 %v1077, 1e-05
        %v1080 = vrsqrt.pop %v1078
        %v1081 = vrsqrt.pop %v1079
        %v1082 = vmul.f32 %v1066, %v1080
        %v1083 = vmul.f32 %v1067, %v1081
        %v1085 = vlaneseq
        %v1086 = vshrl.u32 %v1085, 7
        %v1087 = vsub.s32 0, %v1086
        %v1088 = vrot.slane %v1056, %v1087
        %v1090 = vmul.f32 %v1082, %v1088
        %v1091 = vmul.f32 %v1083, %v1088
        %v1093 = vlaneseq
        %v1094 = vshrl.u32 %v1093, 7
        %v1095 = vsub.s32 0, %v1094
        %v1096 = vrot.slane %v1057, %v1095
        %v1098 = vadd.f32 %v1090, %v1096
        %v1099 = vadd.f32 %v1091, %v1096
        %v1100 = vld [vmem:[#allocation13] sm:$0xff]
        %v1101 = vld [vmem:[#allocation13 + $0x8] sm:$0xff]
        %v1102 = vld [vmem:[#allocation13 + $0x10] sm:$0xff]
        %v1103 = vld [vmem:[#allocation13 + $0x18] sm:$0xff]
        %v1104 = vld [vmem:[#allocation14] sm:$0x1]
        %v1106 = vlaneseq
        %v1107 = vshrl.u32 %v1106, 7
        %v1108 = vsub.s32 0, %v1107
        %v1109 = vrot.slane %v1104, %v1108
        %v1112 = vsel %vm1010, %v1052, 0
        %v1115 = vsel %vm1010, %v1053, 0
        %1117 = vmatprep.subr.mxu0 0.0
        %1118 = vmatpush1.msra.mxu0 0.0
        %1119 = vmatprep.subr.mxu0 0.0
        %1120 = vmatpush1.msra.mxu0 0.0
        %1121 = vmatprep.subr.mxu0 0.0
        %1122 = vmatpush1.msra.mxu0 0.0
        %1123 = vmatprep.subr.mxu0 0.0
        %1124 = vmatpush1.msra.mxu0 0.0
        %1125 = vmatprep.subr.mxu0 0.0
        %1126 = vmatpush1.msra.mxu0 0.0
        %1127 = vmatprep.subr.mxu0 0.0
        %1128 = vmatpush1.msra.mxu0 0.0
        %1129 = vmatprep.subr.mxu0 0.0
        %1130 = vmatpush1.msra.mxu0 0.0
        %1131 = vmatprep.subr.mxu0 0.0
        %1132 = vmatpush1.msra.mxu0 0.0
        %1133 = vmatprep.subr.mxu0 0.0
        %1134 = vmatpush1.msra.mxu0 0.0
        %1135 = vmatprep.subr.mxu0 0.0
        %1136 = vmatpush1.msra.mxu0 0.0
        %1137 = vmatprep.subr.mxu0 0.0
        %1138 = vmatpush1.msra.mxu0 0.0
        %1139 = vmatprep.subr.mxu0 0.0
        %1140 = vmatpush1.msra.mxu0 0.0
        %1141 = vmatprep.subr.mxu0 0.0
        %1142 = vmatpush1.msra.mxu0 %v1103
        %1143 = vmatprep.subr.mxu0 0.0
        %1144 = vmatpush1.msra.mxu0 %v1102
        %1145 = vmatprep.subr.mxu0 0.0
        %1146 = vmatpush1.msra.mxu0 %v1101
        %1147 = vmatprep.subr.mxu0 0.0
        %1148 = vmatpush1.msra.mxu0 %v1100
        %1149 = vmatprep.subr.mxu0 0.0
        %1150 = vmatpush2.msra.mxu0 0.0
        %1151 = vmatprep.subr.mxu0 0.0
        %1152 = vmatpush2.msra.mxu0 0.0
        %1153 = vmatprep.subr.mxu0 0.0
        %1154 = vmatpush2.msra.mxu0 0.0
        %1155 = vmatprep.subr.mxu0 0.0
        %1156 = vmatpush2.msra.mxu0 0.0
        %1157 = vmatprep.subr.mxu0 0.0
        %1158 = vmatpush2.msra.mxu0 0.0
        %1159 = vmatprep.subr.mxu0 0.0
        %1160 = vmatpush2.msra.mxu0 0.0
        %1161 = vmatprep.subr.mxu0 0.0
        %1162 = vmatpush2.msra.mxu0 0.0
        %1163 = vmatprep.subr.mxu0 0.0
        %1164 = vmatpush2.msra.mxu0 0.0
        %1165 = vmatprep.subr.mxu0 0.0
        %1166 = vmatpush2.msra.mxu0 0.0
        %1167 = vmatprep.subr.mxu0 0.0
        %1168 = vmatpush2.msra.mxu0 0.0
        %1169 = vmatprep.subr.mxu0 0.0
        %1170 = vmatpush2.msra.mxu0 0.0
        %1171 = vmatprep.subr.mxu0 0.0
        %1172 = vmatpush2.msra.mxu0 0.0
        %1173 = vmatprep.subr.mxu0 0.0
        %1174 = vmatpush2.msra.mxu0 0.0
        %1175 = vmatprep.subr.mxu0 0.0
        %1176 = vmatpush2.msra.mxu0 0.0
        %1177 = vmatprep.subr.mxu0 0.0
        %1178 = vmatpush2.msra.mxu0 0.0
        %1179 = vmatprep.subr.mxu0 0.0
        %1180 = vmatpush2.msra.mxu0 0.0
        %1181 = vmatprep.mubr.f32.mxu0 0.0
        %1182 = vmatmul.mubr.f32.gmra.mxu0 %v1112
        %v1183 = vpop.f32.mrf.mxu0
        %v1184 = vadd.f32 %v1109, %v1183
        %v1185 = vpop.f32.mrf.mxu0
        %1186 = vmatprep.mubr.f32.mxu0 0.0
        %1187 = vmatmul.mubr.f32.gmra.mxu0 %v1115
        %v1188 = vpop.f32.mrf.mxu0
        %v1189 = vadd.f32 %v1109, %v1188
        %v1190 = vpop.f32.mrf.mxu0
        %1191 = vdwg.mxu0
        %v1192 = vld [vmem:[#allocation16] sm:$0xff]
        %v1193 = vld [vmem:[#allocation16 + $0x8] sm:$0xff]
        %v1194 = vld [vmem:[#allocation16 + $0x10] sm:$0xff]
        %v1195 = vld [vmem:[#allocation16 + $0x18] sm:$0xff]
        %v1196 = vld [vmem:[#allocation17] sm:$0x1]
        %v1198 = vlaneseq
        %v1199 = vshrl.u32 %v1198, 7
        %v1200 = vsub.s32 0, %v1199
        %v1201 = vrot.slane %v1196, %v1200
        %1203 = vmatprep.subr.mxu0 0.0
        %1204 = vmatpush1.msra.mxu0 0.0
        %1205 = vmatprep.subr.mxu0 0.0
        %1206 = vmatpush1.msra.mxu0 0.0
        %1207 = vmatprep.subr.mxu0 0.0
        %1208 = vmatpush1.msra.mxu0 0.0
        %1209 = vmatprep.subr.mxu0 0.0
        %1210 = vmatpush1.msra.mxu0 0.0
        %1211 = vmatprep.subr.mxu0 0.0
        %1212 = vmatpush1.msra.mxu0 0.0
        %1213 = vmatprep.subr.mxu0 0.0
        %1214 = vmatpush1.msra.mxu0 0.0
        %1215 = vmatprep.subr.mxu0 0.0
        %1216 = vmatpush1.msra.mxu0 0.0
        %1217 = vmatprep.subr.mxu0 0.0
        %1218 = vmatpush1.msra.mxu0 0.0
        %1219 = vmatprep.subr.mxu0 0.0
        %1220 = vmatpush1.msra.mxu0 0.0
        %1221 = vmatprep.subr.mxu0 0.0
        %1222 = vmatpush1.msra.mxu0 0.0
        %1223 = vmatprep.subr.mxu0 0.0
        %1224 = vmatpush1.msra.mxu0 0.0
        %1225 = vmatprep.subr.mxu0 0.0
        %1226 = vmatpush1.msra.mxu0 0.0
        %1227 = vmatprep.subr.mxu0 0.0
        %1228 = vmatpush1.msra.mxu0 %v1195
        %1229 = vmatprep.subr.mxu0 0.0
        %1230 = vmatpush1.msra.mxu0 %v1194
        %1231 = vmatprep.subr.mxu0 0.0
        %1232 = vmatpush1.msra.mxu0 %v1193
        %1233 = vmatprep.subr.mxu0 0.0
        %1234 = vmatpush1.msra.mxu0 %v1192
        %1235 = vmatprep.subr.mxu0 0.0
        %1236 = vmatpush2.msra.mxu0 0.0
        %1237 = vmatprep.subr.mxu0 0.0
        %1238 = vmatpush2.msra.mxu0 0.0
        %1239 = vmatprep.subr.mxu0 0.0
        %1240 = vmatpush2.msra.mxu0 0.0
        %1241 = vmatprep.subr.mxu0 0.0
        %1242 = vmatpush2.msra.mxu0 0.0
        %1243 = vmatprep.subr.mxu0 0.0
        %1244 = vmatpush2.msra.mxu0 0.0
        %1245 = vmatprep.subr.mxu0 0.0
        %1246 = vmatpush2.msra.mxu0 0.0
        %1247 = vmatprep.subr.mxu0 0.0
        %1248 = vmatpush2.msra.mxu0 0.0
        %1249 = vmatprep.subr.mxu0 0.0
        %1250 = vmatpush2.msra.mxu0 0.0
        %1251 = vmatprep.subr.mxu0 0.0
        %1252 = vmatpush2.msra.mxu0 0.0
        %1253 = vmatprep.subr.mxu0 0.0
        %1254 = vmatpush2.msra.mxu0 0.0
        %1255 = vmatprep.subr.mxu0 0.0
        %1256 = vmatpush2.msra.mxu0 0.0
        %1257 = vmatprep.subr.mxu0 0.0
        %1258 = vmatpush2.msra.mxu0 0.0
        %1259 = vmatprep.subr.mxu0 0.0
        %1260 = vmatpush2.msra.mxu0 0.0
        %1261 = vmatprep.subr.mxu0 0.0
        %1262 = vmatpush2.msra.mxu0 0.0
        %1263 = vmatprep.subr.mxu0 0.0
        %1264 = vmatpush2.msra.mxu0 0.0
        %1265 = vmatprep.subr.mxu0 0.0
        %1266 = vmatpush2.msra.mxu0 0.0
        %1267 = vmatprep.mubr.f32.mxu0 0.0
        %1268 = vmatmul.mubr.f32.gmra.mxu0 %v1112
        %v1269 = vpop.f32.mrf.mxu0
        %v1270 = vadd.f32 %v1201, %v1269
        %v1271 = vpop.f32.mrf.mxu0
        %1272 = vmatprep.mubr.f32.mxu0 0.0
        %1273 = vmatmul.mubr.f32.gmra.mxu0 %v1115
        %v1274 = vpop.f32.mrf.mxu0
        %v1275 = vadd.f32 %v1201, %v1274
        %v1276 = vpop.f32.mrf.mxu0
        %1277 = vdwg.mxu0
        %v1278 = vld [vmem:[#allocation19] sm:$0xff]
        %v1279 = vld [vmem:[#allocation19 + $0x8] sm:$0xff]
        %v1280 = vld [vmem:[#allocation19 + $0x10] sm:$0xff]
        %v1281 = vld [vmem:[#allocation19 + $0x18] sm:$0xff]
        %v1282 = vld [vmem:[#allocation20] sm:$0x1]
        %v1284 = vlaneseq
        %v1285 = vshrl.u32 %v1284, 7
        %v1286 = vsub.s32 0, %v1285
        %v1287 = vrot.slane %v1282, %v1286
        %1289 = vmatprep.subr.mxu0 0.0
        %1290 = vmatpush1.msra.mxu0 0.0
        %1291 = vmatprep.subr.mxu0 0.0
        %1292 = vmatpush1.msra.mxu0 0.0
        %1293 = vmatprep.subr.mxu0 0.0
        %1294 = vmatpush1.msra.mxu0 0.0
        %1295 = vmatprep.subr.mxu0 0.0
        %1296 = vmatpush1.msra.mxu0 0.0
        %1297 = vmatprep.subr.mxu0 0.0
        %1298 = vmatpush1.msra.mxu0 0.0
        %1299 = vmatprep.subr.mxu0 0.0
        %1300 = vmatpush1.msra.mxu0 0.0
        %1301 = vmatprep.subr.mxu0 0.0
        %1302 = vmatpush1.msra.mxu0 0.0
        %1303 = vmatprep.subr.mxu0 0.0
        %1304 = vmatpush1.msra.mxu0 0.0
        %1305 = vmatprep.subr.mxu0 0.0
        %1306 = vmatpush1.msra.mxu0 0.0
        %1307 = vmatprep.subr.mxu0 0.0
        %1308 = vmatpush1.msra.mxu0 0.0
        %1309 = vmatprep.subr.mxu0 0.0
        %1310 = vmatpush1.msra.mxu0 0.0
        %1311 = vmatprep.subr.mxu0 0.0
        %1312 = vmatpush1.msra.mxu0 0.0
        %1313 = vmatprep.subr.mxu0 0.0
        %1314 = vmatpush1.msra.mxu0 %v1281
        %1315 = vmatprep.subr.mxu0 0.0
        %1316 = vmatpush1.msra.mxu0 %v1280
        %1317 = vmatprep.subr.mxu0 0.0
        %1318 = vmatpush1.msra.mxu0 %v1279
        %1319 = vmatprep.subr.mxu0 0.0
        %1320 = vmatpush1.msra.mxu0 %v1278
        %1321 = vmatprep.subr.mxu0 0.0
        %1322 = vmatpush2.msra.mxu0 0.0
        %1323 = vmatprep.subr.mxu0 0.0
        %1324 = vmatpush2.msra.mxu0 0.0
        %1325 = vmatprep.subr.mxu0 0.0
        %1326 = vmatpush2.msra.mxu0 0.0
        %1327 = vmatprep.subr.mxu0 0.0
        %1328 = vmatpush2.msra.mxu0 0.0
        %1329 = vmatprep.subr.mxu0 0.0
        %1330 = vmatpush2.msra.mxu0 0.0
        %1331 = vmatprep.subr.mxu0 0.0
        %1332 = vmatpush2.msra.mxu0 0.0
        %1333 = vmatprep.subr.mxu0 0.0
        %1334 = vmatpush2.msra.mxu0 0.0
        %1335 = vmatprep.subr.mxu0 0.0
        %1336 = vmatpush2.msra.mxu0 0.0
        %1337 = vmatprep.subr.mxu0 0.0
        %1338 = vmatpush2.msra.mxu0 0.0
        %1339 = vmatprep.subr.mxu0 0.0
        %1340 = vmatpush2.msra.mxu0 0.0
        %1341 = vmatprep.subr.mxu0 0.0
        %1342 = vmatpush2.msra.mxu0 0.0
        %1343 = vmatprep.subr.mxu0 0.0
        %1344 = vmatpush2.msra.mxu0 0.0
        %1345 = vmatprep.subr.mxu0 0.0
        %1346 = vmatpush2.msra.mxu0 0.0
        %1347 = vmatprep.subr.mxu0 0.0
        %1348 = vmatpush2.msra.mxu0 0.0
        %1349 = vmatprep.subr.mxu0 0.0
        %1350 = vmatpush2.msra.mxu0 0.0
        %1351 = vmatprep.subr.mxu0 0.0
        %1352 = vmatpush2.msra.mxu0 0.0
        %1353 = vmatprep.mubr.f32.mxu0 0.0
        %1354 = vmatmul.mubr.f32.gmra.mxu0 %v1112
        %v1355 = vpop.f32.mrf.mxu0
        %v1356 = vadd.f32 %v1287, %v1355
        %v1357 = vpop.f32.mrf.mxu0
        %1358 = vmatprep.mubr.f32.mxu0 0.0
        %1359 = vmatmul.mubr.f32.gmra.mxu0 %v1115
        %v1360 = vpop.f32.mrf.mxu0
        %v1361 = vadd.f32 %v1287, %v1360
        %v1362 = vpop.f32.mrf.mxu0
        %1363 = vdwg.mxu0
        %v1364 = vld [vmem:[#allocation22] sm:$0xff]
        %v1365 = vld [vmem:[#allocation22 + $0x8] sm:$0xff]
        %v1366 = vld [vmem:[#allocation22 + $0x10] sm:$0xff]
        %v1367 = vld [vmem:[#allocation22 + $0x18] sm:$0xff]
        %v1368 = vld [vmem:[#allocation23] sm:$0x1]
        %v1370 = vlaneseq
        %v1371 = vshrl.u32 %v1370, 7
        %v1372 = vsub.s32 0, %v1371
        %v1373 = vrot.slane %v1368, %v1372
        %v1376 = vsel %vm1010, %v1098, 0
        %v1379 = vsel %vm1010, %v1099, 0
        %1381 = vmatprep.subr.mxu0 0.0
        %1382 = vmatpush1.msra.mxu0 0.0
        %1383 = vmatprep.subr.mxu0 0.0
        %1384 = vmatpush1.msra.mxu0 0.0
        %1385 = vmatprep.subr.mxu0 0.0
        %1386 = vmatpush1.msra.mxu0 0.0
        %1387 = vmatprep.subr.mxu0 0.0
        %1388 = vmatpush1.msra.mxu0 0.0
        %1389 = vmatprep.subr.mxu0 0.0
        %1390 = vmatpush1.msra.mxu0 0.0
        %1391 = vmatprep.subr.mxu0 0.0
        %1392 = vmatpush1.msra.mxu0 0.0
        %1393 = vmatprep.subr.mxu0 0.0
        %1394 = vmatpush1.msra.mxu0 0.0
        %1395 = vmatprep.subr.mxu0 0.0
        %1396 = vmatpush1.msra.mxu0 0.0
        %1397 = vmatprep.subr.mxu0 0.0
        %1398 = vmatpush1.msra.mxu0 0.0
        %1399 = vmatprep.subr.mxu0 0.0
        %1400 = vmatpush1.msra.mxu0 0.0
        %1401 = vmatprep.subr.mxu0 0.0
        %1402 = vmatpush1.msra.mxu0 0.0
        %1403 = vmatprep.subr.mxu0 0.0
        %1404 = vmatpush1.msra.mxu0 0.0
        %1405 = vmatprep.subr.mxu0 0.0
        %1406 = vmatpush1.msra.mxu0 %v1367
        %1407 = vmatprep.subr.mxu0 0.0
        %1408 = vmatpush1.msra.mxu0 %v1366
        %1409 = vmatprep.subr.mxu0 0.0
        %1410 = vmatpush1.msra.mxu0 %v1365
        %1411 = vmatprep.subr.mxu0 0.0
        %1412 = vmatpush1.msra.mxu0 %v1364
        %1413 = vmatprep.subr.mxu0 0.0
        %1414 = vmatpush2.msra.mxu0 0.0
        %1415 = vmatprep.subr.mxu0 0.0
        %1416 = vmatpush2.msra.mxu0 0.0
        %1417 = vmatprep.subr.mxu0 0.0
        %1418 = vmatpush2.msra.mxu0 0.0
        %1419 = vmatprep.subr.mxu0 0.0
        %1420 = vmatpush2.msra.mxu0 0.0
        %1421 = vmatprep.subr.mxu0 0.0
        %1422 = vmatpush2.msra.mxu0 0.0
        %1423 = vmatprep.subr.mxu0 0.0
        %1424 = vmatpush2.msra.mxu0 0.0
        %1425 = vmatprep.subr.mxu0 0.0
        %1426 = vmatpush2.msra.mxu0 0.0
        %1427 = vmatprep.subr.mxu0 0.0
        %1428 = vmatpush2.msra.mxu0 0.0
        %1429 = vmatprep.subr.mxu0 0.0
        %1430 = vmatpush2.msra.mxu0 0.0
        %1431 = vmatprep.subr.mxu0 0.0
        %1432 = vmatpush2.msra.mxu0 0.0
        %1433 = vmatprep.subr.mxu0 0.0
        %1434 = vmatpush2.msra.mxu0 0.0
        %1435 = vmatprep.subr.mxu0 0.0
        %1436 = vmatpush2.msra.mxu0 0.0
        %1437 = vmatprep.subr.mxu0 0.0
        %1438 = vmatpush2.msra.mxu0 0.0
        %1439 = vmatprep.subr.mxu0 0.0
        %1440 = vmatpush2.msra.mxu0 0.0
        %1441 = vmatprep.subr.mxu0 0.0
        %1442 = vmatpush2.msra.mxu0 0.0
        %1443 = vmatprep.subr.mxu0 0.0
        %1444 = vmatpush2.msra.mxu0 0.0
        %1445 = vmatprep.mubr.f32.mxu0 0.0
        %1446 = vmatmul.mubr.f32.gmra.mxu0 %v1376
        %v1447 = vpop.f32.mrf.mxu0
        %v1448 = vadd.f32 %v1373, %v1447
        %v1449 = vpop.f32.mrf.mxu0
        %1450 = vmatprep.mubr.f32.mxu0 0.0
        %1451 = vmatmul.mubr.f32.gmra.mxu0 %v1379
        %v1452 = vpop.f32.mrf.mxu0
        %v1453 = vadd.f32 %v1373, %v1452
        %v1454 = vpop.f32.mrf.mxu0
        %1455 = vdwg.mxu0
        %v1456 = vld [vmem:[#allocation25] sm:$0xff]
        %v1457 = vld [vmem:[#allocation25 + $0x8] sm:$0xff]
        %v1458 = vld [vmem:[#allocation25 + $0x10] sm:$0xff]
        %v1459 = vld [vmem:[#allocation25 + $0x18] sm:$0xff]
        %v1460 = vld [vmem:[#allocation26] sm:$0x1]
        %v1462 = vlaneseq
        %v1463 = vshrl.u32 %v1462, 7
        %v1464 = vsub.s32 0, %v1463
        %v1465 = vrot.slane %v1460, %v1464
        %1467 = vmatprep.subr.mxu0 0.0
        %1468 = vmatpush1.msra.mxu0 0.0
        %1469 = vmatprep.subr.mxu0 0.0
        %1470 = vmatpush1.msra.mxu0 0.0
        %1471 = vmatprep.subr.mxu0 0.0
        %1472 = vmatpush1.msra.mxu0 0.0
        %1473 = vmatprep.subr.mxu0 0.0
        %1474 = vmatpush1.msra.mxu0 0.0
        %1475 = vmatprep.subr.mxu0 0.0
        %1476 = vmatpush1.msra.mxu0 0.0
        %1477 = vmatprep.subr.mxu0 0.0
        %1478 = vmatpush1.msra.mxu0 0.0
        %1479 = vmatprep.subr.mxu0 0.0
        %1480 = vmatpush1.msra.mxu0 0.0
        %1481 = vmatprep.subr.mxu0 0.0
        %1482 = vmatpush1.msra.mxu0 0.0
        %1483 = vmatprep.subr.mxu0 0.0
        %1484 = vmatpush1.msra.mxu0 0.0
        %1485 = vmatprep.subr.mxu0 0.0
        %1486 = vmatpush1.msra.mxu0 0.0
        %1487 = vmatprep.subr.mxu0 0.0
        %1488 = vmatpush1.msra.mxu0 0.0
        %1489 = vmatprep.subr.mxu0 0.0
        %1490 = vmatpush1.msra.mxu0 0.0
        %1491 = vmatprep.subr.mxu0 0.0
        %1492 = vmatpush1.msra.mxu0 %v1459
        %1493 = vmatprep.subr.mxu0 0.0
        %1494 = vmatpush1.msra.mxu0 %v1458
        %1495 = vmatprep.subr.mxu0 0.0
        %1496 = vmatpush1.msra.mxu0 %v1457
        %1497 = vmatprep.subr.mxu0 0.0
        %1498 = vmatpush1.msra.mxu0 %v1456
        %1499 = vmatprep.subr.mxu0 0.0
        %1500 = vmatpush2.msra.mxu0 0.0
        %1501 = vmatprep.subr.mxu0 0.0
        %1502 = vmatpush2.msra.mxu0 0.0
        %1503 = vmatprep.subr.mxu0 0.0
        %1504 = vmatpush2.msra.mxu0 0.0
        %1505 = vmatprep.subr.mxu0 0.0
        %1506 = vmatpush2.msra.mxu0 0.0
        %1507 = vmatprep.subr.mxu0 0.0
        %1508 = vmatpush2.msra.mxu0 0.0
        %1509 = vmatprep.subr.mxu0 0.0
        %1510 = vmatpush2.msra.mxu0 0.0
        %1511 = vmatprep.subr.mxu0 0.0
        %1512 = vmatpush2.msra.mxu0 0.0
        %1513 = vmatprep.subr.mxu0 0.0
        %1514 = vmatpush2.msra.mxu0 0.0
        %1515 = vmatprep.subr.mxu0 0.0
        %1516 = vmatpush2.msra.mxu0 0.0
        %1517 = vmatprep.subr.mxu0 0.0
        %1518 = vmatpush2.msra.mxu0 0.0
        %1519 = vmatprep.subr.mxu0 0.0
        %1520 = vmatpush2.msra.mxu0 0.0
        %1521 = vmatprep.subr.mxu0 0.0
        %1522 = vmatpush2.msra.mxu0 0.0
        %1523 = vmatprep.subr.mxu0 0.0
        %1524 = vmatpush2.msra.mxu0 0.0
        %1525 = vmatprep.subr.mxu0 0.0
        %1526 = vmatpush2.msra.mxu0 0.0
        %1527 = vmatprep.subr.mxu0 0.0
        %1528 = vmatpush2.msra.mxu0 0.0
        %1529 = vmatprep.subr.mxu0 0.0
        %1530 = vmatpush2.msra.mxu0 0.0
        %1531 = vmatprep.mubr.f32.mxu0 0.0
        %1532 = vmatmul.mubr.f32.gmra.mxu0 %v1376
        %v1533 = vpop.f32.mrf.mxu0
        %v1534 = vadd.f32 %v1465, %v1533
        %v1535 = vpop.f32.mrf.mxu0
        %1536 = vmatprep.mubr.f32.mxu0 0.0
        %1537 = vmatmul.mubr.f32.gmra.mxu0 %v1379
        %v1538 = vpop.f32.mrf.mxu0
        %v1539 = vadd.f32 %v1465, %v1538
        %v1540 = vpop.f32.mrf.mxu0
        %1541 = vdwg.mxu0
        %v1542 = vld [vmem:[#allocation28] sm:$0xff]
        %v1543 = vld [vmem:[#allocation28 + $0x8] sm:$0xff]
        %v1544 = vld [vmem:[#allocation28 + $0x10] sm:$0xff]
        %v1545 = vld [vmem:[#allocation28 + $0x18] sm:$0xff]
        %v1546 = vld [vmem:[#allocation29] sm:$0x1]
        %v1548 = vlaneseq
        %v1549 = vshrl.u32 %v1548, 7
        %v1550 = vsub.s32 0, %v1549
        %v1551 = vrot.slane %v1546, %v1550
        %1553 = vmatprep.subr.mxu0 0.0
        %1554 = vmatpush1.msra.mxu0 0.0
        %1555 = vmatprep.subr.mxu0 0.0
        %1556 = vmatpush1.msra.mxu0 0.0
        %1557 = vmatprep.subr.mxu0 0.0
        %1558 = vmatpush1.msra.mxu0 0.0
        %1559 = vmatprep.subr.mxu0 0.0
        %1560 = vmatpush1.msra.mxu0 0.0
        %1561 = vmatprep.subr.mxu0 0.0
        %1562 = vmatpush1.msra.mxu0 0.0
        %1563 = vmatprep.subr.mxu0 0.0
        %1564 = vmatpush1.msra.mxu0 0.0
        %1565 = vmatprep.subr.mxu0 0.0
        %1566 = vmatpush1.msra.mxu0 0.0
        %1567 = vmatprep.subr.mxu0 0.0
        %1568 = vmatpush1.msra.mxu0 0.0
        %1569 = vmatprep.subr.mxu0 0.0
        %1570 = vmatpush1.msra.mxu0 0.0
        %1571 = vmatprep.subr.mxu0 0.0
        %1572 = vmatpush1.msra.mxu0 0.0
        %1573 = vmatprep.subr.mxu0 0.0
        %1574 = vmatpush1.msra.mxu0 0.0
        %1575 = vmatprep.subr.mxu0 0.0
        %1576 = vmatpush1.msra.mxu0 0.0
        %1577 = vmatprep.subr.mxu0 0.0
        %1578 = vmatpush1.msra.mxu0 %v1545
        %1579 = vmatprep.subr.mxu0 0.0
        %1580 = vmatpush1.msra.mxu0 %v1544
        %1581 = vmatprep.subr.mxu0 0.0
        %1582 = vmatpush1.msra.mxu0 %v1543
        %1583 = vmatprep.subr.mxu0 0.0
        %1584 = vmatpush1.msra.mxu0 %v1542
        %1585 = vmatprep.subr.mxu0 0.0
        %1586 = vmatpush2.msra.mxu0 0.0
        %1587 = vmatprep.subr.mxu0 0.0
        %1588 = vmatpush2.msra.mxu0 0.0
        %1589 = vmatprep.subr.mxu0 0.0
        %1590 = vmatpush2.msra.mxu0 0.0
        %1591 = vmatprep.subr.mxu0 0.0
        %1592 = vmatpush2.msra.mxu0 0.0
        %1593 = vmatprep.subr.mxu0 0.0
        %1594 = vmatpush2.msra.mxu0 0.0
        %1595 = vmatprep.subr.mxu0 0.0
        %1596 = vmatpush2.msra.mxu0 0.0
        %1597 = vmatprep.subr.mxu0 0.0
        %1598 = vmatpush2.msra.mxu0 0.0
        %1599 = vmatprep.subr.mxu0 0.0
        %1600 = vmatpush2.msra.mxu0 0.0
        %1601 = vmatprep.subr.mxu0 0.0
        %1602 = vmatpush2.msra.mxu0 0.0
        %1603 = vmatprep.subr.mxu0 0.0
        %1604 = vmatpush2.msra.mxu0 0.0
        %1605 = vmatprep.subr.mxu0 0.0
        %1606 = vmatpush2.msra.mxu0 0.0
        %1607 = vmatprep.subr.mxu0 0.0
        %1608 = vmatpush2.msra.mxu0 0.0
        %1609 = vmatprep.subr.mxu0 0.0
        %1610 = vmatpush2.msra.mxu0 0.0
        %1611 = vmatprep.subr.mxu0 0.0
        %1612 = vmatpush2.msra.mxu0 0.0
        %1613 = vmatprep.subr.mxu0 0.0
        %1614 = vmatpush2.msra.mxu0 0.0
        %1615 = vmatprep.subr.mxu0 0.0
        %1616 = vmatpush2.msra.mxu0 0.0
        %1617 = vmatprep.mubr.f32.mxu0 0.0
        %1618 = vmatmul.mubr.f32.gmra.mxu0 %v1376
        %v1619 = vpop.f32.mrf.mxu0
        %v1620 = vadd.f32 %v1551, %v1619
        %v1621 = vpop.f32.mrf.mxu0
        %1622 = vmatprep.mubr.f32.mxu0 0.0
        %1623 = vmatmul.mubr.f32.gmra.mxu0 %v1379
        %v1624 = vpop.f32.mrf.mxu0
        %v1625 = vadd.f32 %v1551, %v1624
        %v1626 = vpop.f32.mrf.mxu0
        %1627 = vdwg.mxu0
        %1630 = vrot.lane.b32.xlu0 %v1448, 120
        %v1631 = vpop.permute.xlu0 %1630
        %1632 = vrot.lane.b32.xlu0 %v1453, 120
        %v1633 = vpop.permute.xlu0 %1632
        %1634 = vrot.lane.b32.xlu0 %v1448, 112
        %v1635 = vpop.permute.xlu0 %1634
        %1636 = vrot.lane.b32.xlu0 %v1453, 112
        %v1637 = vpop.permute.xlu0 %1636
        %1638 = vrot.lane.b32.xlu0 %v1448, 104
        %v1639 = vpop.permute.xlu0 %1638
        %1640 = vrot.lane.b32.xlu0 %v1453, 104
        %v1641 = vpop.permute.xlu0 %1640
        %1644 = vrot.lane.b32.xlu0 %v1270, 120
        %v1645 = vpop.permute.xlu0 %1644
        %1646 = vrot.lane.b32.xlu0 %v1275, 120
        %v1647 = vpop.permute.xlu0 %1646
        %1648 = vrot.lane.b32.xlu0 %v1270, 112
        %v1649 = vpop.permute.xlu0 %1648
        %1650 = vrot.lane.b32.xlu0 %v1275, 112
        %v1651 = vpop.permute.xlu0 %1650
        %1652 = vrot.lane.b32.xlu0 %v1270, 104
        %v1653 = vpop.permute.xlu0 %1652
        %1654 = vrot.lane.b32.xlu0 %v1275, 104
        %v1655 = vpop.permute.xlu0 %1654
        %1658 = vrot.lane.b32.xlu0 %v1356, 120
        %v1659 = vpop.permute.xlu0 %1658
        %1660 = vrot.lane.b32.xlu0 %v1361, 120
        %v1661 = vpop.permute.xlu0 %1660
        %1664 = vrot.lane.b32.xlu0 %v1356, 112
        %v1665 = vpop.permute.xlu0 %1664
        %1666 = vrot.lane.b32.xlu0 %v1361, 112
        %v1667 = vpop.permute.xlu0 %1666
        %1670 = vrot.lane.b32.xlu0 %v1356, 104
        %v1671 = vpop.permute.xlu0 %1670
        %1672 = vrot.lane.b32.xlu0 %v1361, 104
        %v1673 = vpop.permute.xlu0 %1672
        %vm1676 = vcmask 64512
        %v1677 = vsel %vm1676, %v1448, 0
        %v1679 = vsel %vm1676, %v1453, 0
        %v1681 = vsel %vm1676, %v1270, 0
        %v1683 = vsel %vm1676, %v1275, 0
        %1685 = vmatprep.subr.mxu0 0.0
        %1686 = vmatpush1.xpose.msra.mxu0 0.0
        %1687 = vmatprep.subr.mxu0 0.0
        %1688 = vmatpush1.xpose.msra.mxu0 0.0
        %1689 = vmatprep.subr.mxu0 0.0
        %1690 = vmatpush1.xpose.msra.mxu0 0.0
        %1691 = vmatprep.subr.mxu0 0.0
        %1692 = vmatpush1.xpose.msra.mxu0 0.0
        %1693 = vmatprep.subr.mxu0 0.0
        %1694 = vmatpush1.xpose.msra.mxu0 0.0
        %1695 = vmatprep.subr.mxu0 0.0
        %1696 = vmatpush1.xpose.msra.mxu0 0.0
        %1697 = vmatprep.subr.mxu0 0.0
        %1698 = vmatpush1.xpose.msra.mxu0 0.0
        %1699 = vmatprep.subr.mxu0 0.0
        %1700 = vmatpush1.xpose.msra.mxu0 0.0
        %1701 = vmatprep.subr.mxu0 0.0
        %1702 = vmatpush1.xpose.msra.mxu0 0.0
        %1703 = vmatprep.subr.mxu0 0.0
        %1704 = vmatpush1.xpose.msra.mxu0 0.0
        %1705 = vmatprep.subr.mxu0 0.0
        %1706 = vmatpush1.xpose.msra.mxu0 0.0
        %1707 = vmatprep.subr.mxu0 0.0
        %1708 = vmatpush1.xpose.msra.mxu0 0.0
        %1709 = vmatprep.subr.mxu0 0.0
        %1710 = vmatpush1.xpose.msra.mxu0 0.0
        %1711 = vmatprep.subr.mxu0 0.0
        %1712 = vmatpush1.xpose.msra.mxu0 0.0
        %1713 = vmatprep.subr.mxu0 0.0
        %1714 = vmatpush1.xpose.msra.mxu0 %v1683
        %1715 = vmatprep.subr.mxu0 0.0
        %1716 = vmatpush1.xpose.msra.mxu0 %v1681
        %1717 = vmatprep.subr.mxu0 0.0
        %1718 = vmatpush2.xpose.msra.mxu0 0.0
        %1719 = vmatprep.subr.mxu0 0.0
        %1720 = vmatpush2.xpose.msra.mxu0 0.0
        %1721 = vmatprep.subr.mxu0 0.0
        %1722 = vmatpush2.xpose.msra.mxu0 0.0
        %1723 = vmatprep.subr.mxu0 0.0
        %1724 = vmatpush2.xpose.msra.mxu0 0.0
        %1725 = vmatprep.subr.mxu0 0.0
        %1726 = vmatpush2.xpose.msra.mxu0 0.0
        %1727 = vmatprep.subr.mxu0 0.0
        %1728 = vmatpush2.xpose.msra.mxu0 0.0
        %1729 = vmatprep.subr.mxu0 0.0
        %1730 = vmatpush2.xpose.msra.mxu0 0.0
        %1731 = vmatprep.subr.mxu0 0.0
        %1732 = vmatpush2.xpose.msra.mxu0 0.0
        %1733 = vmatprep.subr.mxu0 0.0
        %1734 = vmatpush2.xpose.msra.mxu0 0.0
        %1735 = vmatprep.subr.mxu0 0.0
        %1736 = vmatpush2.xpose.msra.mxu0 0.0
        %1737 = vmatprep.subr.mxu0 0.0
        %1738 = vmatpush2.xpose.msra.mxu0 0.0
        %1739 = vmatprep.subr.mxu0 0.0
        %1740 = vmatpush2.xpose.msra.mxu0 0.0
        %1741 = vmatprep.subr.mxu0 0.0
        %1742 = vmatpush2.xpose.msra.mxu0 0.0
        %1743 = vmatprep.subr.mxu0 0.0
        %1744 = vmatpush2.xpose.msra.mxu0 0.0
        %1745 = vmatprep.subr.mxu0 0.0
        %1746 = vmatpush2.xpose.msra.mxu0 0.0
        %1747 = vmatprep.subr.mxu0 0.0
        %1748 = vmatpush2.xpose.msra.mxu0 0.0
        %1749 = vmatprep.mubr.f32.mxu0 0.0
        %1750 = vmatmul.mubr.f32.gmra.mxu0 %v1677
        %v1751 = vpop.f32.mrf.mxu0
        %v1752 = vadd.f32 0.0, %v1751
        %v1753 = vpop.f32.mrf.mxu0
        %1754 = vmatprep.mubr.f32.mxu0 0.0
        %1755 = vmatmul.mubr.f32.gmra.mxu0 %v1679
        %v1756 = vpop.f32.mrf.mxu0
        %v1757 = vadd.f32 0.0, %v1756
        %v1758 = vpop.f32.mrf.mxu0
        %1759 = vdwg.mxu0
        %v1760 = vsel %vm1676, %v1631, 0
        %v1762 = vsel %vm1676, %v1633, 0
        %v1764 = vsel %vm1676, %v1645, 0
        %v1766 = vsel %vm1676, %v1647, 0
        %1768 = vmatprep.subr.mxu0 0.0
        %1769 = vmatpush1.xpose.msra.mxu0 0.0
        %1770 = vmatprep.subr.mxu0 0.0
        %1771 = vmatpush1.xpose.msra.mxu0 0.0
        %1772 = vmatprep.subr.mxu0 0.0
        %1773 = vmatpush1.xpose.msra.mxu0 0.0
        %1774 = vmatprep.subr.mxu0 0.0
        %1775 = vmatpush1.xpose.msra.mxu0 0.0
        %1776 = vmatprep.subr.mxu0 0.0
        %1777 = vmatpush1.xpose.msra.mxu0 0.0
        %1778 = vmatprep.subr.mxu0 0.0
        %1779 = vmatpush1.xpose.msra.mxu0 0.0
        %1780 = vmatprep.subr.mxu0 0.0
        %1781 = vmatpush1.xpose.msra.mxu0 0.0
        %1782 = vmatprep.subr.mxu0 0.0
        %1783 = vmatpush1.xpose.msra.mxu0 0.0
        %1784 = vmatprep.subr.mxu0 0.0
        %1785 = vmatpush1.xpose.msra.mxu0 0.0
        %1786 = vmatprep.subr.mxu0 0.0
        %1787 = vmatpush1.xpose.msra.mxu0 0.0
        %1788 = vmatprep.subr.mxu0 0.0
        %1789 = vmatpush1.xpose.msra.mxu0 0.0
        %1790 = vmatprep.subr.mxu0 0.0
        %1791 = vmatpush1.xpose.msra.mxu0 0.0
        %1792 = vmatprep.subr.mxu0 0.0
        %1793 = vmatpush1.xpose.msra.mxu0 0.0
        %1794 = vmatprep.subr.mxu0 0.0
        %1795 = vmatpush1.xpose.msra.mxu0 0.0
        %1796 = vmatprep.subr.mxu0 0.0
        %1797 = vmatpush1.xpose.msra.mxu0 %v1766
        %1798 = vmatprep.subr.mxu0 0.0
        %1799 = vmatpush1.xpose.msra.mxu0 %v1764
        %1800 = vmatprep.subr.mxu0 0.0
        %1801 = vmatpush2.xpose.msra.mxu0 0.0
        %1802 = vmatprep.subr.mxu0 0.0
        %1803 = vmatpush2.xpose.msra.mxu0 0.0
        %1804 = vmatprep.subr.mxu0 0.0
        %1805 = vmatpush2.xpose.msra.mxu0 0.0
        %1806 = vmatprep.subr.mxu0 0.0
        %1807 = vmatpush2.xpose.msra.mxu0 0.0
        %1808 = vmatprep.subr.mxu0 0.0
        %1809 = vmatpush2.xpose.msra.mxu0 0.0
        %1810 = vmatprep.subr.mxu0 0.0
        %1811 = vmatpush2.xpose.msra.mxu0 0.0
        %1812 = vmatprep.subr.mxu0 0.0
        %1813 = vmatpush2.xpose.msra.mxu0 0.0
        %1814 = vmatprep.subr.mxu0 0.0
        %1815 = vmatpush2.xpose.msra.mxu0 0.0
        %1816 = vmatprep.subr.mxu0 0.0
        %1817 = vmatpush2.xpose.msra.mxu0 0.0
        %1818 = vmatprep.subr.mxu0 0.0
        %1819 = vmatpush2.xpose.msra.mxu0 0.0
        %1820 = vmatprep.subr.mxu0 0.0
        %1821 = vmatpush2.xpose.msra.mxu0 0.0
        %1822 = vmatprep.subr.mxu0 0.0
        %1823 = vmatpush2.xpose.msra.mxu0 0.0
        %1824 = vmatprep.subr.mxu0 0.0
        %1825 = vmatpush2.xpose.msra.mxu0 0.0
        %1826 = vmatprep.subr.mxu0 0.0
        %1827 = vmatpush2.xpose.msra.mxu0 0.0
        %1828 = vmatprep.subr.mxu0 0.0
        %1829 = vmatpush2.xpose.msra.mxu0 0.0
        %1830 = vmatprep.subr.mxu0 0.0
        %1831 = vmatpush2.xpose.msra.mxu0 0.0
        %1832 = vmatprep.mubr.f32.mxu0 0.0
        %1833 = vmatmul.mubr.f32.gmra.mxu0 %v1760
        %v1834 = vpop.f32.mrf.mxu0
        %v1835 = vadd.f32 0.0, %v1834
        %v1836 = vpop.f32.mrf.mxu0
        %1837 = vmatprep.mubr.f32.mxu0 0.0
        %1838 = vmatmul.mubr.f32.gmra.mxu0 %v1762
        %v1839 = vpop.f32.mrf.mxu0
        %v1840 = vadd.f32 0.0, %v1839
        %v1841 = vpop.f32.mrf.mxu0
        %1842 = vdwg.mxu0
        %v1843 = vsel %vm1676, %v1635, 0
        %v1845 = vsel %vm1676, %v1637, 0
        %v1847 = vsel %vm1676, %v1649, 0
        %v1849 = vsel %vm1676, %v1651, 0
        %1851 = vmatprep.subr.mxu0 0.0
        %1852 = vmatpush1.xpose.msra.mxu0 0.0
        %1853 = vmatprep.subr.mxu0 0.0
        %1854 = vmatpush1.xpose.msra.mxu0 0.0
        %1855 = vmatprep.subr.mxu0 0.0
        %1856 = vmatpush1.xpose.msra.mxu0 0.0
        %1857 = vmatprep.subr.mxu0 0.0
        %1858 = vmatpush1.xpose.msra.mxu0 0.0
        %1859 = vmatprep.subr.mxu0 0.0
        %1860 = vmatpush1.xpose.msra.mxu0 0.0
        %1861 = vmatprep.subr.mxu0 0.0
        %1862 = vmatpush1.xpose.msra.mxu0 0.0
        %1863 = vmatprep.subr.mxu0 0.0
        %1864 = vmatpush1.xpose.msra.mxu0 0.0
        %1865 = vmatprep.subr.mxu0 0.0
        %1866 = vmatpush1.xpose.msra.mxu0 0.0
        %1867 = vmatprep.subr.mxu0 0.0
        %1868 = vmatpush1.xpose.msra.mxu0 0.0
        %1869 = vmatprep.subr.mxu0 0.0
        %1870 = vmatpush1.xpose.msra.mxu0 0.0
        %1871 = vmatprep.subr.mxu0 0.0
        %1872 = vmatpush1.xpose.msra.mxu0 0.0
        %1873 = vmatprep.subr.mxu0 0.0
        %1874 = vmatpush1.xpose.msra.mxu0 0.0
        %1875 = vmatprep.subr.mxu0 0.0
        %1876 = vmatpush1.xpose.msra.mxu0 0.0
        %1877 = vmatprep.subr.mxu0 0.0
        %1878 = vmatpush1.xpose.msra.mxu0 0.0
        %1879 = vmatprep.subr.mxu0 0.0
        %1880 = vmatpush1.xpose.msra.mxu0 %v1849
        %1881 = vmatprep.subr.mxu0 0.0
        %1882 = vmatpush1.xpose.msra.mxu0 %v1847
        %1883 = vmatprep.subr.mxu0 0.0
        %1884 = vmatpush2.xpose.msra.mxu0 0.0
        %1885 = vmatprep.subr.mxu0 0.0
        %1886 = vmatpush2.xpose.msra.mxu0 0.0
        %1887 = vmatprep.subr.mxu0 0.0
        %1888 = vmatpush2.xpose.msra.mxu0 0.0
        %1889 = vmatprep.subr.mxu0 0.0
        %1890 = vmatpush2.xpose.msra.mxu0 0.0
        %1891 = vmatprep.subr.mxu0 0.0
        %1892 = vmatpush2.xpose.msra.mxu0 0.0
        %1893 = vmatprep.subr.mxu0 0.0
        %1894 = vmatpush2.xpose.msra.mxu0 0.0
        %1895 = vmatprep.subr.mxu0 0.0
        %1896 = vmatpush2.xpose.msra.mxu0 0.0
        %1897 = vmatprep.subr.mxu0 0.0
        %1898 = vmatpush2.xpose.msra.mxu0 0.0
        %1899 = vmatprep.subr.mxu0 0.0
        %1900 = vmatpush2.xpose.msra.mxu0 0.0
        %1901 = vmatprep.subr.mxu0 0.0
        %1902 = vmatpush2.xpose.msra.mxu0 0.0
        %1903 = vmatprep.subr.mxu0 0.0
        %1904 = vmatpush2.xpose.msra.mxu0 0.0
        %1905 = vmatprep.subr.mxu0 0.0
        %1906 = vmatpush2.xpose.msra.mxu0 0.0
        %1907 = vmatprep.subr.mxu0 0.0
        %1908 = vmatpush2.xpose.msra.mxu0 0.0
        %1909 = vmatprep.subr.mxu0 0.0
        %1910 = vmatpush2.xpose.msra.mxu0 0.0
        %1911 = vmatprep.subr.mxu0 0.0
        %1912 = vmatpush2.xpose.msra.mxu0 0.0
        %1913 = vmatprep.subr.mxu0 0.0
        %1914 = vmatpush2.xpose.msra.mxu0 0.0
        %1915 = vmatprep.mubr.f32.mxu0 0.0
        %1916 = vmatmul.mubr.f32.gmra.mxu0 %v1843
        %v1917 = vpop.f32.mrf.mxu0
        %v1918 = vadd.f32 0.0, %v1917
        %v1919 = vpop.f32.mrf.mxu0
        %1920 = vmatprep.mubr.f32.mxu0 0.0
        %1921 = vmatmul.mubr.f32.gmra.mxu0 %v1845
        %v1922 = vpop.f32.mrf.mxu0
        %v1923 = vadd.f32 0.0, %v1922
        %v1924 = vpop.f32.mrf.mxu0
        %1925 = vdwg.mxu0
        %v1926 = vsel %vm1676, %v1639, 0
        %v1928 = vsel %vm1676, %v1641, 0
        %v1930 = vsel %vm1676, %v1653, 0
        %v1932 = vsel %vm1676, %v1655, 0
        %1934 = vmatprep.subr.mxu0 0.0
        %1935 = vmatpush1.xpose.msra.mxu0 0.0
        %1936 = vmatprep.subr.mxu0 0.0
        %1937 = vmatpush1.xpose.msra.mxu0 0.0
        %1938 = vmatprep.subr.mxu0 0.0
        %1939 = vmatpush1.xpose.msra.mxu0 0.0
        %1940 = vmatprep.subr.mxu0 0.0
        %1941 = vmatpush1.xpose.msra.mxu0 0.0
        %1942 = vmatprep.subr.mxu0 0.0
        %1943 = vmatpush1.xpose.msra.mxu0 0.0
        %1944 = vmatprep.subr.mxu0 0.0
        %1945 = vmatpush1.xpose.msra.mxu0 0.0
        %1946 = vmatprep.subr.mxu0 0.0
        %1947 = vmatpush1.xpose.msra.mxu0 0.0
        %1948 = vmatprep.subr.mxu0 0.0
        %1949 = vmatpush1.xpose.msra.mxu0 0.0
        %1950 = vmatprep.subr.mxu0 0.0
        %1951 = vmatpush1.xpose.msra.mxu0 0.0
        %1952 = vmatprep.subr.mxu0 0.0
        %1953 = vmatpush1.xpose.msra.mxu0 0.0
        %1954 = vmatprep.subr.mxu0 0.0
        %1955 = vmatpush1.xpose.msra.mxu0 0.0
        %1956 = vmatprep.subr.mxu0 0.0
        %1957 = vmatpush1.xpose.msra.mxu0 0.0
        %1958 = vmatprep.subr.mxu0 0.0
        %1959 = vmatpush1.xpose.msra.mxu0 0.0
        %1960 = vmatprep.subr.mxu0 0.0
        %1961 = vmatpush1.xpose.msra.mxu0 0.0
        %1962 = vmatprep.subr.mxu0 0.0
        %1963 = vmatpush1.xpose.msra.mxu0 %v1932
        %1964 = vmatprep.subr.mxu0 0.0
        %1965 = vmatpush1.xpose.msra.mxu0 %v1930
        %1966 = vmatprep.subr.mxu0 0.0
        %1967 = vmatpush2.xpose.msra.mxu0 0.0
        %1968 = vmatprep.subr.mxu0 0.0
        %1969 = vmatpush2.xpose.msra.mxu0 0.0
        %1970 = vmatprep.subr.mxu0 0.0
        %1971 = vmatpush2.xpose.msra.mxu0 0.0
        %1972 = vmatprep.subr.mxu0 0.0
        %1973 = vmatpush2.xpose.msra.mxu0 0.0
        %1974 = vmatprep.subr.mxu0 0.0
        %1975 = vmatpush2.xpose.msra.mxu0 0.0
        %1976 = vmatprep.subr.mxu0 0.0
        %1977 = vmatpush2.xpose.msra.mxu0 0.0
        %1978 = vmatprep.subr.mxu0 0.0
        %1979 = vmatpush2.xpose.msra.mxu0 0.0
        %1980 = vmatprep.subr.mxu0 0.0
        %1981 = vmatpush2.xpose.msra.mxu0 0.0
        %1982 = vmatprep.subr.mxu0 0.0
        %1983 = vmatpush2.xpose.msra.mxu0 0.0
        %1984 = vmatprep.subr.mxu0 0.0
        %1985 = vmatpush2.xpose.msra.mxu0 0.0
        %1986 = vmatprep.subr.mxu0 0.0
        %1987 = vmatpush2.xpose.msra.mxu0 0.0
        %1988 = vmatprep.subr.mxu0 0.0
        %1989 = vmatpush2.xpose.msra.mxu0 0.0
        %1990 = vmatprep.subr.mxu0 0.0
        %1991 = vmatpush2.xpose.msra.mxu0 0.0
        %1992 = vmatprep.subr.mxu0 0.0
        %1993 = vmatpush2.xpose.msra.mxu0 0.0
        %1994 = vmatprep.subr.mxu0 0.0
        %1995 = vmatpush2.xpose.msra.mxu0 0.0
        %1996 = vmatprep.subr.mxu0 0.0
        %1997 = vmatpush2.xpose.msra.mxu0 0.0
        %1998 = vmatprep.mubr.f32.mxu0 0.0
        %1999 = vmatmul.mubr.f32.gmra.mxu0 %v1926
        %v2000 = vpop.f32.mrf.mxu0
        %v2001 = vadd.f32 0.0, %v2000
        %v2002 = vpop.f32.mrf.mxu0
        %2003 = vmatprep.mubr.f32.mxu0 0.0
        %2004 = vmatmul.mubr.f32.gmra.mxu0 %v1928
        %v2005 = vpop.f32.mrf.mxu0
        %v2006 = vadd.f32 0.0, %v2005
        %v2007 = vpop.f32.mrf.mxu0
        %2008 = vdwg.mxu0
        %vm2009 = vcmask 130048
        %v2010 = vsel %vm2009, %v1752, -inf
        %2011 = vmax.xlane.f32.xlu0 %v2010
        %v2012 = vpop.xlane.xlu0 %2011
        %v2013 = vsel %vm2009, %v1757, -inf
        %2014 = vmax.xlane.f32.xlu0 %v2013
        %v2015 = vpop.xlane.xlu0 %2014
        %v2016 = vsel %vm2009, %v1835, -inf
        %2017 = vmax.xlane.f32.xlu0 %v2016
        %v2018 = vpop.xlane.xlu0 %2017
        %v2019 = vsel %vm2009, %v1840, -inf
        %2020 = vmax.xlane.f32.xlu0 %v2019
        %v2021 = vpop.xlane.xlu0 %2020
        %v2022 = vsel %vm2009, %v1918, -inf
        %2023 = vmax.xlane.f32.xlu0 %v2022
        %v2024 = vpop.xlane.xlu0 %2023
        %v2025 = vsel %vm2009, %v1923, -inf
        %2026 = vmax.xlane.f32.xlu0 %v2025
        %v2027 = vpop.xlane.xlu0 %2026
        %v2028 = vsel %vm2009, %v2001, -inf
        %2029 = vmax.xlane.f32.xlu0 %v2028
        %v2030 = vpop.xlane.xlu0 %2029
        %v2031 = vsel %vm2009, %v2006, -inf
        %2032 = vmax.xlane.f32.xlu0 %v2031
        %v2033 = vpop.xlane.xlu0 %2032
        %v2034 = vsub.f32 %v1752, %v2012
        %v2035 = vsub.f32 %v1757, %v2015
        %v2036 = vsub.f32 %v1835, %v2018
        %v2037 = vsub.f32 %v1840, %v2021
        %v2038 = vsub.f32 %v1918, %v2024
        %v2039 = vsub.f32 %v1923, %v2027
        %v2040 = vsub.f32 %v2001, %v2030
        %v2041 = vsub.f32 %v2006, %v2033
        %v2042 = vmul.f32 %v2034, 1.442695
        %v2043 = vpow.pop %v2042
        %v2044 = vmul.f32 %v2035, 1.442695
        %v2045 = vpow.pop %v2044
        %v2046 = vmul.f32 %v2036, 1.442695
        %v2047 = vpow.pop %v2046
        %v2048 = vmul.f32 %v2037, 1.442695
        %v2049 = vpow.pop %v2048
        %v2050 = vmul.f32 %v2038, 1.442695
        %v2051 = vpow.pop %v2050
        %v2052 = vmul.f32 %v2039, 1.442695
        %v2053 = vpow.pop %v2052
        %v2054 = vmul.f32 %v2040, 1.442695
        %v2055 = vpow.pop %v2054
        %v2056 = vmul.f32 %v2041, 1.442695
        %v2057 = vpow.pop %v2056
        %v2058 = vsel %vm2009, %v2043, 0.0
        %2059 = vadd.xlane.f32.xlu0 %v2058
        %v2060 = vpop.xlane.xlu0 %2059
        %v2061 = vsel %vm2009, %v2045, 0.0
        %2062 = vadd.xlane.f32.xlu0 %v2061
        %v2063 = vpop.xlane.xlu0 %2062
        %v2064 = vsel %vm2009, %v2047, 0.0
        %2065 = vadd.xlane.f32.xlu0 %v2064
        %v2066 = vpop.xlane.xlu0 %2065
        %v2067 = vsel %vm2009, %v2049, 0.0
        %2068 = vadd.xlane.f32.xlu0 %v2067
        %v2069 = vpop.xlane.xlu0 %2068
        %v2070 = vsel %vm2009, %v2051, 0.0
        %2071 = vadd.xlane.f32.xlu0 %v2070
        %v2072 = vpop.xlane.xlu0 %2071
        %v2073 = vsel %vm2009, %v2053, 0.0
        %2074 = vadd.xlane.f32.xlu0 %v2073
        %v2075 = vpop.xlane.xlu0 %2074
        %v2076 = vsel %vm2009, %v2055, 0.0
        %2077 = vadd.xlane.f32.xlu0 %v2076
        %v2078 = vpop.xlane.xlu0 %2077
        %v2079 = vsel %vm2009, %v2057, 0.0
        %2080 = vadd.xlane.f32.xlu0 %v2079
        %v2081 = vpop.xlane.xlu0 %2080
        %v2082 = vrcp.pop %v2060
        %v2083 = vmul.f32 %v2043, %v2082
        %v2084 = vrcp.pop %v2063
        %v2085 = vmul.f32 %v2045, %v2084
        %v2086 = vrcp.pop %v2066
        %v2087 = vmul.f32 %v2047, %v2086
        %v2088 = vrcp.pop %v2069
        %v2089 = vmul.f32 %v2049, %v2088
        %v2090 = vrcp.pop %v2072
        %v2091 = vmul.f32 %v2051, %v2090
        %v2092 = vrcp.pop %v2075
        %v2093 = vmul.f32 %v2053, %v2092
        %v2094 = vrcp.pop %v2078
        %v2095 = vmul.f32 %v2055, %v2094
        %v2096 = vrcp.pop %v2081
        %v2097 = vmul.f32 %v2057, %v2096
        %v2099 = vsel %vm2009, %v2083, 0
        %v2102 = vsel %vm2009, %v2085, 0
        %2104 = vmatprep.subr.mxu0 0.0
        %2105 = vmatpush1.msra.mxu0 0.0
        %2106 = vmatprep.subr.mxu0 0.0
        %2107 = vmatpush1.msra.mxu0 0.0
        %2108 = vmatprep.subr.mxu0 0.0
        %2109 = vmatpush1.msra.mxu0 0.0
        %2110 = vmatprep.subr.mxu0 0.0
        %2111 = vmatpush1.msra.mxu0 0.0
        %2112 = vmatprep.subr.mxu0 0.0
        %2113 = vmatpush1.msra.mxu0 0.0
        %2114 = vmatprep.subr.mxu0 0.0
        %2115 = vmatpush1.msra.mxu0 0.0
        %2116 = vmatprep.subr.mxu0 0.0
        %2117 = vmatpush1.msra.mxu0 0.0
        %2118 = vmatprep.subr.mxu0 0.0
        %2119 = vmatpush1.msra.mxu0 0.0
        %2120 = vmatprep.subr.mxu0 0.0
        %2121 = vmatpush1.msra.mxu0 0.0
        %2122 = vmatprep.subr.mxu0 0.0
        %2123 = vmatpush1.msra.mxu0 0.0
        %2124 = vmatprep.subr.mxu0 0.0
        %2125 = vmatpush1.msra.mxu0 0.0
        %2126 = vmatprep.subr.mxu0 0.0
        %2127 = vmatpush1.msra.mxu0 0.0
        %2128 = vmatprep.subr.mxu0 0.0
        %2129 = vmatpush1.msra.mxu0 0.0
        %2130 = vmatprep.subr.mxu0 0.0
        %2131 = vmatpush1.msra.mxu0 0.0
        %2132 = vmatprep.subr.mxu0 0.0
        %2133 = vmatpush1.msra.mxu0 %v1361
        %2134 = vmatprep.subr.mxu0 0.0
        %2135 = vmatpush1.msra.mxu0 %v1356
        %2136 = vmatprep.subr.mxu0 0.0
        %2137 = vmatpush2.msra.mxu0 0.0
        %2138 = vmatprep.subr.mxu0 0.0
        %2139 = vmatpush2.msra.mxu0 0.0
        %2140 = vmatprep.subr.mxu0 0.0
        %2141 = vmatpush2.msra.mxu0 0.0
        %2142 = vmatprep.subr.mxu0 0.0
        %2143 = vmatpush2.msra.mxu0 0.0
        %2144 = vmatprep.subr.mxu0 0.0
        %2145 = vmatpush2.msra.mxu0 0.0
        %2146 = vmatprep.subr.mxu0 0.0
        %2147 = vmatpush2.msra.mxu0 0.0
        %2148 = vmatprep.subr.mxu0 0.0
        %2149 = vmatpush2.msra.mxu0 0.0
        %2150 = vmatprep.subr.mxu0 0.0
        %2151 = vmatpush2.msra.mxu0 0.0
        %2152 = vmatprep.subr.mxu0 0.0
        %2153 = vmatpush2.msra.mxu0 0.0
        %2154 = vmatprep.subr.mxu0 0.0
        %2155 = vmatpush2.msra.mxu0 0.0
        %2156 = vmatprep.subr.mxu0 0.0
        %2157 = vmatpush2.msra.mxu0 0.0
        %2158 = vmatprep.subr.mxu0 0.0
        %2159 = vmatpush2.msra.mxu0 0.0
        %2160 = vmatprep.subr.mxu0 0.0
        %2161 = vmatpush2.msra.mxu0 0.0
        %2162 = vmatprep.subr.mxu0 0.0
        %2163 = vmatpush2.msra.mxu0 0.0
        %2164 = vmatprep.subr.mxu0 0.0
        %2165 = vmatpush2.msra.mxu0 0.0
        %2166 = vmatprep.subr.mxu0 0.0
        %2167 = vmatpush2.msra.mxu0 0.0
        %2168 = vmatprep.mubr.f32.mxu0 0.0
        %2169 = vmatmul.mubr.f32.gmra.mxu0 %v2099
        %v2170 = vpop.f32.mrf.mxu0
        %v2171 = vadd.f32 0.0, %v2170
        %v2172 = vpop.f32.mrf.mxu0
        %2173 = vmatprep.mubr.f32.mxu0 0.0
        %2174 = vmatmul.mubr.f32.gmra.mxu0 %v2102
        %v2175 = vpop.f32.mrf.mxu0
        %v2176 = vadd.f32 0.0, %v2175
        %v2177 = vpop.f32.mrf.mxu0
        %2178 = vdwg.mxu0
        %v2180 = vsel %vm2009, %v2087, 0
        %v2183 = vsel %vm2009, %v2089, 0
        %2185 = vmatprep.subr.mxu0 0.0
        %2186 = vmatpush1.msra.mxu0 0.0
        %2187 = vmatprep.subr.mxu0 0.0
        %2188 = vmatpush1.msra.mxu0 0.0
        %2189 = vmatprep.subr.mxu0 0.0
        %2190 = vmatpush1.msra.mxu0 0.0
        %2191 = vmatprep.subr.mxu0 0.0
        %2192 = vmatpush1.msra.mxu0 0.0
        %2193 = vmatprep.subr.mxu0 0.0
        %2194 = vmatpush1.msra.mxu0 0.0
        %2195 = vmatprep.subr.mxu0 0.0
        %2196 = vmatpush1.msra.mxu0 0.0
        %2197 = vmatprep.subr.mxu0 0.0
        %2198 = vmatpush1.msra.mxu0 0.0
        %2199 = vmatprep.subr.mxu0 0.0
        %2200 = vmatpush1.msra.mxu0 0.0
        %2201 = vmatprep.subr.mxu0 0.0
        %2202 = vmatpush1.msra.mxu0 0.0
        %2203 = vmatprep.subr.mxu0 0.0
        %2204 = vmatpush1.msra.mxu0 0.0
        %2205 = vmatprep.subr.mxu0 0.0
        %2206 = vmatpush1.msra.mxu0 0.0
        %2207 = vmatprep.subr.mxu0 0.0
        %2208 = vmatpush1.msra.mxu0 0.0
        %2209 = vmatprep.subr.mxu0 0.0
        %2210 = vmatpush1.msra.mxu0 0.0
        %2211 = vmatprep.subr.mxu0 0.0
        %2212 = vmatpush1.msra.mxu0 0.0
        %2213 = vmatprep.subr.mxu0 0.0
        %2214 = vmatpush1.msra.mxu0 %v1661
        %2215 = vmatprep.subr.mxu0 0.0
        %2216 = vmatpush1.msra.mxu0 %v1659
        %2217 = vmatprep.subr.mxu0 0.0
        %2218 = vmatpush2.msra.mxu0 0.0
        %2219 = vmatprep.subr.mxu0 0.0
        %2220 = vmatpush2.msra.mxu0 0.0
        %2221 = vmatprep.subr.mxu0 0.0
        %2222 = vmatpush2.msra.mxu0 0.0
        %2223 = vmatprep.subr.mxu0 0.0
        %2224 = vmatpush2.msra.mxu0 0.0
        %2225 = vmatprep.subr.mxu0 0.0
        %2226 = vmatpush2.msra.mxu0 0.0
        %2227 = vmatprep.subr.mxu0 0.0
        %2228 = vmatpush2.msra.mxu0 0.0
        %2229 = vmatprep.subr.mxu0 0.0
        %2230 = vmatpush2.msra.mxu0 0.0
        %2231 = vmatprep.subr.mxu0 0.0
        %2232 = vmatpush2.msra.mxu0 0.0
        %2233 = vmatprep.subr.mxu0 0.0
        %2234 = vmatpush2.msra.mxu0 0.0
        %2235 = vmatprep.subr.mxu0 0.0
        %2236 = vmatpush2.msra.mxu0 0.0
        %2237 = vmatprep.subr.mxu0 0.0
        %2238 = vmatpush2.msra.mxu0 0.0
        %2239 = vmatprep.subr.mxu0 0.0
        %2240 = vmatpush2.msra.mxu0 0.0
        %2241 = vmatprep.subr.mxu0 0.0
        %2242 = vmatpush2.msra.mxu0 0.0
        %2243 = vmatprep.subr.mxu0 0.0
        %2244 = vmatpush2.msra.mxu0 0.0
        %2245 = vmatprep.subr.mxu0 0.0
        %2246 = vmatpush2.msra.mxu0 0.0
        %2247 = vmatprep.subr.mxu0 0.0
        %2248 = vmatpush2.msra.mxu0 0.0
        %2249 = vmatprep.mubr.f32.mxu0 0.0
        %2250 = vmatmul.mubr.f32.gmra.mxu0 %v2180
        %v2251 = vpop.f32.mrf.mxu0
        %v2252 = vadd.f32 0.0, %v2251
        %v2253 = vpop.f32.mrf.mxu0
        %2254 = vmatprep.mubr.f32.mxu0 0.0
        %2255 = vmatmul.mubr.f32.gmra.mxu0 %v2183
        %v2256 = vpop.f32.mrf.mxu0
        %v2257 = vadd.f32 0.0, %v2256
        %v2258 = vpop.f32.mrf.mxu0
        %2259 = vdwg.mxu0
        %v2261 = vsel %vm2009, %v2091, 0
        %v2264 = vsel %vm2009, %v2093, 0
        %2266 = vmatprep.subr.mxu0 0.0
        %2267 = vmatpush1.msra.mxu0 0.0
        %2268 = vmatprep.subr.mxu0 0.0
        %2269 = vmatpush1.msra.mxu0 0.0
        %2270 = vmatprep.subr.mxu0 0.0
        %2271 = vmatpush1.msra.mxu0 0.0
        %2272 = vmatprep.subr.mxu0 0.0
        %2273 = vmatpush1.msra.mxu0 0.0
        %2274 = vmatprep.subr.mxu0 0.0
        %2275 = vmatpush1.msra.mxu0 0.0
        %2276 = vmatprep.subr.mxu0 0.0
        %2277 = vmatpush1.msra.mxu0 0.0
        %2278 = vmatprep.subr.mxu0 0.0
        %2279 = vmatpush1.msra.mxu0 0.0
        %2280 = vmatprep.subr.mxu0 0.0
        %2281 = vmatpush1.msra.mxu0 0.0
        %2282 = vmatprep.subr.mxu0 0.0
        %2283 = vmatpush1.msra.mxu0 0.0
        %2284 = vmatprep.subr.mxu0 0.0
        %2285 = vmatpush1.msra.mxu0 0.0
        %2286 = vmatprep.subr.mxu0 0.0
        %2287 = vmatpush1.msra.mxu0 0.0
        %2288 = vmatprep.subr.mxu0 0.0
        %2289 = vmatpush1.msra.mxu0 0.0
        %2290 = vmatprep.subr.mxu0 0.0
        %2291 = vmatpush1.msra.mxu0 0.0
        %2292 = vmatprep.subr.mxu0 0.0
        %2293 = vmatpush1.msra.mxu0 0.0
        %2294 = vmatprep.subr.mxu0 0.0
        %2295 = vmatpush1.msra.mxu0 %v1667
        %2296 = vmatprep.subr.mxu0 0.0
        %2297 = vmatpush1.msra.mxu0 %v1665
        %2298 = vmatprep.subr.mxu0 0.0
        %2299 = vmatpush2.msra.mxu0 0.0
        %2300 = vmatprep.subr.mxu0 0.0
        %2301 = vmatpush2.msra.mxu0 0.0
        %2302 = vmatprep.subr.mxu0 0.0
        %2303 = vmatpush2.msra.mxu0 0.0
        %2304 = vmatprep.subr.mxu0 0.0
        %2305 = vmatpush2.msra.mxu0 0.0
        %2306 = vmatprep.subr.mxu0 0.0
        %2307 = vmatpush2.msra.mxu0 0.0
        %2308 = vmatprep.subr.mxu0 0.0
        %2309 = vmatpush2.msra.mxu0 0.0
        %2310 = vmatprep.subr.mxu0 0.0
        %2311 = vmatpush2.msra.mxu0 0.0
        %2312 = vmatprep.subr.mxu0 0.0
        %2313 = vmatpush2.msra.mxu0 0.0
        %2314 = vmatprep.subr.mxu0 0.0
        %2315 = vmatpush2.msra.mxu0 0.0
        %2316 = vmatprep.subr.mxu0 0.0
        %2317 = vmatpush2.msra.mxu0 0.0
        %2318 = vmatprep.subr.mxu0 0.0
        %2319 = vmatpush2.msra.mxu0 0.0
        %2320 = vmatprep.subr.mxu0 0.0
        %2321 = vmatpush2.msra.mxu0 0.0
        %2322 = vmatprep.subr.mxu0 0.0
        %2323 = vmatpush2.msra.mxu0 0.0
        %2324 = vmatprep.subr.mxu0 0.0
        %2325 = vmatpush2.msra.mxu0 0.0
        %2326 = vmatprep.subr.mxu0 0.0
        %2327 = vmatpush2.msra.mxu0 0.0
        %2328 = vmatprep.subr.mxu0 0.0
        %2329 = vmatpush2.msra.mxu0 0.0
        %2330 = vmatprep.mubr.f32.mxu0 0.0
        %2331 = vmatmul.mubr.f32.gmra.mxu0 %v2261
        %v2332 = vpop.f32.mrf.mxu0
        %v2333 = vadd.f32 0.0, %v2332
        %v2334 = vpop.f32.mrf.mxu0
        %2335 = vmatprep.mubr.f32.mxu0 0.0
        %2336 = vmatmul.mubr.f32.gmra.mxu0 %v2264
        %v2337 = vpop.f32.mrf.mxu0
        %v2338 = vadd.f32 0.0, %v2337
        %v2339 = vpop.f32.mrf.mxu0
        %2340 = vdwg.mxu0
        %v2342 = vsel %vm2009, %v2095, 0
        %v2345 = vsel %vm2009, %v2097, 0
        %2347 = vmatprep.subr.mxu0 0.0
        %2348 = vmatpush1.msra.mxu0 0.0
        %2349 = vmatprep.subr.mxu0 0.0
        %2350 = vmatpush1.msra.mxu0 0.0
        %2351 = vmatprep.subr.mxu0 0.0
        %2352 = vmatpush1.msra.mxu0 0.0
        %2353 = vmatprep.subr.mxu0 0.0
        %2354 = vmatpush1.msra.mxu0 0.0
        %2355 = vmatprep.subr.mxu0 0.0
        %2356 = vmatpush1.msra.mxu0 0.0
        %2357 = vmatprep.subr.mxu0 0.0
        %2358 = vmatpush1.msra.mxu0 0.0
        %2359 = vmatprep.subr.mxu0 0.0
        %2360 = vmatpush1.msra.mxu0 0.0
        %2361 = vmatprep.subr.mxu0 0.0
        %2362 = vmatpush1.msra.mxu0 0.0
        %2363 = vmatprep.subr.mxu0 0.0
        %2364 = vmatpush1.msra.mxu0 0.0
        %2365 = vmatprep.subr.mxu0 0.0
        %2366 = vmatpush1.msra.mxu0 0.0
        %2367 = vmatprep.subr.mxu0 0.0
        %2368 = vmatpush1.msra.mxu0 0.0
        %2369 = vmatprep.subr.mxu0 0.0
        %2370 = vmatpush1.msra.mxu0 0.0
        %2371 = vmatprep.subr.mxu0 0.0
        %2372 = vmatpush1.msra.mxu0 0.0
        %2373 = vmatprep.subr.mxu0 0.0
        %2374 = vmatpush1.msra.mxu0 0.0
        %2375 = vmatprep.subr.mxu0 0.0
        %2376 = vmatpush1.msra.mxu0 %v1673
        %2377 = vmatprep.subr.mxu0 0.0
        %2378 = vmatpush1.msra.mxu0 %v1671
        %2379 = vmatprep.subr.mxu0 0.0
        %2380 = vmatpush2.msra.mxu0 0.0
        %2381 = vmatprep.subr.mxu0 0.0
        %2382 = vmatpush2.msra.mxu0 0.0
        %2383 = vmatprep.subr.mxu0 0.0
        %2384 = vmatpush2.msra.mxu0 0.0
        %2385 = vmatprep.subr.mxu0 0.0
        %2386 = vmatpush2.msra.mxu0 0.0
        %2387 = vmatprep.subr.mxu0 0.0
        %2388 = vmatpush2.msra.mxu0 0.0
        %2389 = vmatprep.subr.mxu0 0.0
        %2390 = vmatpush2.msra.mxu0 0.0
        %2391 = vmatprep.subr.mxu0 0.0
        %2392 = vmatpush2.msra.mxu0 0.0
        %2393 = vmatprep.subr.mxu0 0.0
        %2394 = vmatpush2.msra.mxu0 0.0
        %2395 = vmatprep.subr.mxu0 0.0
        %2396 = vmatpush2.msra.mxu0 0.0
        %2397 = vmatprep.subr.mxu0 0.0
        %2398 = vmatpush2.msra.mxu0 0.0
        %2399 = vmatprep.subr.mxu0 0.0
        %2400 = vmatpush2.msra.mxu0 0.0
        %2401 = vmatprep.subr.mxu0 0.0
        %2402 = vmatpush2.msra.mxu0 0.0
        %2403 = vmatprep.subr.mxu0 0.0
        %2404 = vmatpush2.msra.mxu0 0.0
        %2405 = vmatprep.subr.mxu0 0.0
        %2406 = vmatpush2.msra.mxu0 0.0
        %2407 = vmatprep.subr.mxu0 0.0
        %2408 = vmatpush2.msra.mxu0 0.0
        %2409 = vmatprep.subr.mxu0 0.0
        %2410 = vmatpush2.msra.mxu0 0.0
        %2411 = vmatprep.mubr.f32.mxu0 0.0
        %2412 = vmatmul.mubr.f32.gmra.mxu0 %v2342
        %v2413 = vpop.f32.mrf.mxu0
        %v2414 = vadd.f32 0.0, %v2413
        %v2415 = vpop.f32.mrf.mxu0
        %2416 = vmatprep.mubr.f32.mxu0 0.0
        %2417 = vmatmul.mubr.f32.gmra.mxu0 %v2345
        %v2418 = vpop.f32.mrf.mxu0
        %v2419 = vadd.f32 0.0, %v2418
        %v2420 = vpop.f32.mrf.mxu0
        %2421 = vdwg.mxu0
        %2424 = vrot.lane.b32.xlu0 %v2252, 8
        %v2425 = vpop.permute.xlu0 %2424
        %2426 = vrot.lane.b32.xlu0 %v2257, 8
        %v2427 = vpop.permute.xlu0 %2426
        %2432 = vrot.lane.b32.xlu0 %v2333, 16
        %v2433 = vpop.permute.xlu0 %2432
        %2434 = vrot.lane.b32.xlu0 %v2338, 16
        %v2435 = vpop.permute.xlu0 %2434
        %2440 = vrot.lane.b32.xlu0 %v2414, 24
        %v2441 = vpop.permute.xlu0 %2440
        %2442 = vrot.lane.b32.xlu0 %v2419, 24
        %v2443 = vpop.permute.xlu0 %2442
        %v2446 = vsel %vm1676, %v2171, %v2425
        %v2447 = vsel %vm1676, %v2176, %v2427
        %v2448 = vsel %vm2009, %v2446, %v2433
        %v2449 = vsel %vm2009, %v2447, %v2435
        %vm2450 = vcmask 195584
        %v2451 = vsel %vm2450, %v2448, %v2441
        %v2452 = vsel %vm2450, %v2449, %v2443
        %2455 = vrot.lane.b32.xlu0 %v1184, 120
        %v2456 = vpop.permute.xlu0 %2455
        %2457 = vrot.lane.b32.xlu0 %v1189, 120
        %v2458 = vpop.permute.xlu0 %2457
        %2459 = vrot.lane.b32.xlu0 %v1184, 112
        %v2460 = vpop.permute.xlu0 %2459
        %2461 = vrot.lane.b32.xlu0 %v1189, 112
        %v2462 = vpop.permute.xlu0 %2461
        %2463 = vrot.lane.b32.xlu0 %v1184, 104
        %v2464 = vpop.permute.xlu0 %2463
        %2465 = vrot.lane.b32.xlu0 %v1189, 104
        %v2466 = vpop.permute.xlu0 %2465
        %2469 = vrot.lane.b32.xlu0 %v1534, 120
        %v2470 = vpop.permute.xlu0 %2469
        %2471 = vrot.lane.b32.xlu0 %v1539, 120
        %v2472 = vpop.permute.xlu0 %2471
        %2473 = vrot.lane.b32.xlu0 %v1534, 112
        %v2474 = vpop.permute.xlu0 %2473
        %2475 = vrot.lane.b32.xlu0 %v1539, 112
        %v2476 = vpop.permute.xlu0 %2475
        %2477 = vrot.lane.b32.xlu0 %v1534, 104
        %v2478 = vpop.permute.xlu0 %2477
        %2479 = vrot.lane.b32.xlu0 %v1539, 104
        %v2480 = vpop.permute.xlu0 %2479
        %2483 = vrot.lane.b32.xlu0 %v1620, 120
        %v2484 = vpop.permute.xlu0 %2483
        %2485 = vrot.lane.b32.xlu0 %v1625, 120
        %v2486 = vpop.permute.xlu0 %2485
        %2489 = vrot.lane.b32.xlu0 %v1620, 112
        %v2490 = vpop.permute.xlu0 %2489
        %2491 = vrot.lane.b32.xlu0 %v1625, 112
        %v2492 = vpop.permute.xlu0 %2491
        %2495 = vrot.lane.b32.xlu0 %v1620, 104
        %v2496 = vpop.permute.xlu0 %2495
        %2497 = vrot.lane.b32.xlu0 %v1625, 104
        %v2498 = vpop.permute.xlu0 %2497
        %v2501 = vsel %vm1676, %v1184, 0
        %v2503 = vsel %vm1676, %v1189, 0
        %v2505 = vsel %vm1676, %v1534, 0
        %v2507 = vsel %vm1676, %v1539, 0
        %2509 = vmatprep.subr.mxu0 0.0
        %2510 = vmatpush1.xpose.msra.mxu0 0.0
        %2511 = vmatprep.subr.mxu0 0.0
        %2512 = vmatpush1.xpose.msra.mxu0 0.0
        %2513 = vmatprep.subr.mxu0 0.0
        %2514 = vmatpush1.xpose.msra.mxu0 0.0
        %2515 = vmatprep.subr.mxu0 0.0
        %2516 = vmatpush1.xpose.msra.mxu0 0.0
        %2517 = vmatprep.subr.mxu0 0.0
        %2518 = vmatpush1.xpose.msra.mxu0 0.0
        %2519 = vmatprep.subr.mxu0 0.0
        %2520 = vmatpush1.xpose.msra.mxu0 0.0
        %2521 = vmatprep.subr.mxu0 0.0
        %2522 = vmatpush1.xpose.msra.mxu0 0.0
        %2523 = vmatprep.subr.mxu0 0.0
        %2524 = vmatpush1.xpose.msra.mxu0 0.0
        %2525 = vmatprep.subr.mxu0 0.0
        %2526 = vmatpush1.xpose.msra.mxu0 0.0
        %2527 = vmatprep.subr.mxu0 0.0
        %2528 = vmatpush1.xpose.msra.mxu0 0.0
        %2529 = vmatprep.subr.mxu0 0.0
        %2530 = vmatpush1.xpose.msra.mxu0 0.0
        %2531 = vmatprep.subr.mxu0 0.0
        %2532 = vmatpush1.xpose.msra.mxu0 0.0
        %2533 = vmatprep.subr.mxu0 0.0
        %2534 = vmatpush1.xpose.msra.mxu0 0.0
        %2535 = vmatprep.subr.mxu0 0.0
        %2536 = vmatpush1.xpose.msra.mxu0 0.0
        %2537 = vmatprep.subr.mxu0 0.0
        %2538 = vmatpush1.xpose.msra.mxu0 %v2507
        %2539 = vmatprep.subr.mxu0 0.0
        %2540 = vmatpush1.xpose.msra.mxu0 %v2505
        %2541 = vmatprep.subr.mxu0 0.0
        %2542 = vmatpush2.xpose.msra.mxu0 0.0
        %2543 = vmatprep.subr.mxu0 0.0
        %2544 = vmatpush2.xpose.msra.mxu0 0.0
        %2545 = vmatprep.subr.mxu0 0.0
        %2546 = vmatpush2.xpose.msra.mxu0 0.0
        %2547 = vmatprep.subr.mxu0 0.0
        %2548 = vmatpush2.xpose.msra.mxu0 0.0
        %2549 = vmatprep.subr.mxu0 0.0
        %2550 = vmatpush2.xpose.msra.mxu0 0.0
        %2551 = vmatprep.subr.mxu0 0.0
        %2552 = vmatpush2.xpose.msra.mxu0 0.0
        %2553 = vmatprep.subr.mxu0 0.0
        %2554 = vmatpush2.xpose.msra.mxu0 0.0
        %2555 = vmatprep.subr.mxu0 0.0
        %2556 = vmatpush2.xpose.msra.mxu0 0.0
        %2557 = vmatprep.subr.mxu0 0.0
        %2558 = vmatpush2.xpose.msra.mxu0 0.0
        %2559 = vmatprep.subr.mxu0 0.0
        %2560 = vmatpush2.xpose.msra.mxu0 0.0
        %2561 = vmatprep.subr.mxu0 0.0
        %2562 = vmatpush2.xpose.msra.mxu0 0.0
        %2563 = vmatprep.subr.mxu0 0.0
        %2564 = vmatpush2.xpose.msra.mxu0 0.0
        %2565 = vmatprep.subr.mxu0 0.0
        %2566 = vmatpush2.xpose.msra.mxu0 0.0
        %2567 = vmatprep.subr.mxu0 0.0
        %2568 = vmatpush2.xpose.msra.mxu0 0.0
        %2569 = vmatprep.subr.mxu0 0.0
        %2570 = vmatpush2.xpose.msra.mxu0 0.0
        %2571 = vmatprep.subr.mxu0 0.0
        %2572 = vmatpush2.xpose.msra.mxu0 0.0
        %2573 = vmatprep.mubr.f32.mxu0 0.0
        %2574 = vmatmul.mubr.f32.gmra.mxu0 %v2501
        %v2575 = vpop.f32.mrf.mxu0
        %v2576 = vadd.f32 0.0, %v2575
        %v2577 = vpop.f32.mrf.mxu0
        %2578 = vmatprep.mubr.f32.mxu0 0.0
        %2579 = vmatmul.mubr.f32.gmra.mxu0 %v2503
        %v2580 = vpop.f32.mrf.mxu0
        %v2581 = vadd.f32 0.0, %v2580
        %v2582 = vpop.f32.mrf.mxu0
        %2583 = vdwg.mxu0
        %v2584 = vsel %vm1676, %v2456, 0
        %v2586 = vsel %vm1676, %v2458, 0
        %v2588 = vsel %vm1676, %v2470, 0
        %v2590 = vsel %vm1676, %v2472, 0
        %2592 = vmatprep.subr.mxu0 0.0
        %2593 = vmatpush1.xpose.msra.mxu0 0.0
        %2594 = vmatprep.subr.mxu0 0.0
        %2595 = vmatpush1.xpose.msra.mxu0 0.0
        %2596 = vmatprep.subr.mxu0 0.0
        %2597 = vmatpush1.xpose.msra.mxu0 0.0
        %2598 = vmatprep.subr.mxu0 0.0
        %2599 = vmatpush1.xpose.msra.mxu0 0.0
        %2600 = vmatprep.subr.mxu0 0.0
        %2601 = vmatpush1.xpose.msra.mxu0 0.0
        %2602 = vmatprep.subr.mxu0 0.0
        %2603 = vmatpush1.xpose.msra.mxu0 0.0
        %2604 = vmatprep.subr.mxu0 0.0
        %2605 = vmatpush1.xpose.msra.mxu0 0.0
        %2606 = vmatprep.subr.mxu0 0.0
        %2607 = vmatpush1.xpose.msra.mxu0 0.0
        %2608 = vmatprep.subr.mxu0 0.0
        %2609 = vmatpush1.xpose.msra.mxu0 0.0
        %2610 = vmatprep.subr.mxu0 0.0
        %2611 = vmatpush1.xpose.msra.mxu0 0.0
        %2612 = vmatprep.subr.mxu0 0.0
        %2613 = vmatpush1.xpose.msra.mxu0 0.0
        %2614 = vmatprep.subr.mxu0 0.0
        %2615 = vmatpush1.xpose.msra.mxu0 0.0
        %2616 = vmatprep.subr.mxu0 0.0
        %2617 = vmatpush1.xpose.msra.mxu0 0.0
        %2618 = vmatprep.subr.mxu0 0.0
        %2619 = vmatpush1.xpose.msra.mxu0 0.0
        %2620 = vmatprep.subr.mxu0 0.0
        %2621 = vmatpush1.xpose.msra.mxu0 %v2590
        %2622 = vmatprep.subr.mxu0 0.0
        %2623 = vmatpush1.xpose.msra.mxu0 %v2588
        %2624 = vmatprep.subr.mxu0 0.0
        %2625 = vmatpush2.xpose.msra.mxu0 0.0
        %2626 = vmatprep.subr.mxu0 0.0
        %2627 = vmatpush2.xpose.msra.mxu0 0.0
        %2628 = vmatprep.subr.mxu0 0.0
        %2629 = vmatpush2.xpose.msra.mxu0 0.0
        %2630 = vmatprep.subr.mxu0 0.0
        %2631 = vmatpush2.xpose.msra.mxu0 0.0
        %2632 = vmatprep.subr.mxu0 0.0
        %2633 = vmatpush2.xpose.msra.mxu0 0.0
        %2634 = vmatprep.subr.mxu0 0.0
        %2635 = vmatpush2.xpose.msra.mxu0 0.0
        %2636 = vmatprep.subr.mxu0 0.0
        %2637 = vmatpush2.xpose.msra.mxu0 0.0
        %2638 = vmatprep.subr.mxu0 0.0
        %2639 = vmatpush2.xpose.msra.mxu0 0.0
        %2640 = vmatprep.subr.mxu0 0.0
        %2641 = vmatpush2.xpose.msra.mxu0 0.0
        %2642 = vmatprep.subr.mxu0 0.0
        %2643 = vmatpush2.xpose.msra.mxu0 0.0
        %2644 = vmatprep.subr.mxu0 0.0
        %2645 = vmatpush2.xpose.msra.mxu0 0.0
        %2646 = vmatprep.subr.mxu0 0.0
        %2647 = vmatpush2.xpose.msra.mxu0 0.0
        %2648 = vmatprep.subr.mxu0 0.0
        %2649 = vmatpush2.xpose.msra.mxu0 0.0
        %2650 = vmatprep.subr.mxu0 0.0
        %2651 = vmatpush2.xpose.msra.mxu0 0.0
        %2652 = vmatprep.subr.mxu0 0.0
        %2653 = vmatpush2.xpose.msra.mxu0 0.0
        %2654 = vmatprep.subr.mxu0 0.0
        %2655 = vmatpush2.xpose.msra.mxu0 0.0
        %2656 = vmatprep.mubr.f32.mxu0 0.0
        %2657 = vmatmul.mubr.f32.gmra.mxu0 %v2584
        %v2658 = vpop.f32.mrf.mxu0
        %v2659 = vadd.f32 0.0, %v2658
        %v2660 = vpop.f32.mrf.mxu0
        %2661 = vmatprep.mubr.f32.mxu0 0.0
        %2662 = vmatmul.mubr.f32.gmra.mxu0 %v2586
        %v2663 = vpop.f32.mrf.mxu0
        %v2664 = vadd.f32 0.0, %v2663
        %v2665 = vpop.f32.mrf.mxu0
        %2666 = vdwg.mxu0
        %v2667 = vsel %vm1676, %v2460, 0
        %v2669 = vsel %vm1676, %v2462, 0
        %v2671 = vsel %vm1676, %v2474, 0
        %v2673 = vsel %vm1676, %v2476, 0
        %2675 = vmatprep.subr.mxu0 0.0
        %2676 = vmatpush1.xpose.msra.mxu0 0.0
        %2677 = vmatprep.subr.mxu0 0.0
        %2678 = vmatpush1.xpose.msra.mxu0 0.0
        %2679 = vmatprep.subr.mxu0 0.0
        %2680 = vmatpush1.xpose.msra.mxu0 0.0
        %2681 = vmatprep.subr.mxu0 0.0
        %2682 = vmatpush1.xpose.msra.mxu0 0.0
        %2683 = vmatprep.subr.mxu0 0.0
        %2684 = vmatpush1.xpose.msra.mxu0 0.0
        %2685 = vmatprep.subr.mxu0 0.0
        %2686 = vmatpush1.xpose.msra.mxu0 0.0
        %2687 = vmatprep.subr.mxu0 0.0
        %2688 = vmatpush1.xpose.msra.mxu0 0.0
        %2689 = vmatprep.subr.mxu0 0.0
        %2690 = vmatpush1.xpose.msra.mxu0 0.0
        %2691 = vmatprep.subr.mxu0 0.0
        %2692 = vmatpush1.xpose.msra.mxu0 0.0
        %2693 = vmatprep.subr.mxu0 0.0
        %2694 = vmatpush1.xpose.msra.mxu0 0.0
        %2695 = vmatprep.subr.mxu0 0.0
        %2696 = vmatpush1.xpose.msra.mxu0 0.0
        %2697 = vmatprep.subr.mxu0 0.0
        %2698 = vmatpush1.xpose.msra.mxu0 0.0
        %2699 = vmatprep.subr.mxu0 0.0
        %2700 = vmatpush1.xpose.msra.mxu0 0.0
        %2701 = vmatprep.subr.mxu0 0.0
        %2702 = vmatpush1.xpose.msra.mxu0 0.0
        %2703 = vmatprep.subr.mxu0 0.0
        %2704 = vmatpush1.xpose.msra.mxu0 %v2673
        %2705 = vmatprep.subr.mxu0 0.0
        %2706 = vmatpush1.xpose.msra.mxu0 %v2671
        %2707 = vmatprep.subr.mxu0 0.0
        %2708 = vmatpush2.xpose.msra.mxu0 0.0
        %2709 = vmatprep.subr.mxu0 0.0
        %2710 = vmatpush2.xpose.msra.mxu0 0.0
        %2711 = vmatprep.subr.mxu0 0.0
        %2712 = vmatpush2.xpose.msra.mxu0 0.0
        %2713 = vmatprep.subr.mxu0 0.0
        %2714 = vmatpush2.xpose.msra.mxu0 0.0
        %2715 = vmatprep.subr.mxu0 0.0
        %2716 = vmatpush2.xpose.msra.mxu0 0.0
        %2717 = vmatprep.subr.mxu0 0.0
        %2718 = vmatpush2.xpose.msra.mxu0 0.0
        %2719 = vmatprep.subr.mxu0 0.0
        %2720 = vmatpush2.xpose.msra.mxu0 0.0
        %2721 = vmatprep.subr.mxu0 0.0
        %2722 = vmatpush2.xpose.msra.mxu0 0.0
        %2723 = vmatprep.subr.mxu0 0.0
        %2724 = vmatpush2.xpose.msra.mxu0 0.0
        %2725 = vmatprep.subr.mxu0 0.0
        %2726 = vmatpush2.xpose.msra.mxu0 0.0
        %2727 = vmatprep.subr.mxu0 0.0
        %2728 = vmatpush2.xpose.msra.mxu0 0.0
        %2729 = vmatprep.subr.mxu0 0.0
        %2730 = vmatpush2.xpose.msra.mxu0 0.0
        %2731 = vmatprep.subr.mxu0 0.0
        %2732 = vmatpush2.xpose.msra.mxu0 0.0
        %2733 = vmatprep.subr.mxu0 0.0
        %2734 = vmatpush2.xpose.msra.mxu0 0.0
        %2735 = vmatprep.subr.mxu0 0.0
        %2736 = vmatpush2.xpose.msra.mxu0 0.0
        %2737 = vmatprep.subr.mxu0 0.0
        %2738 = vmatpush2.xpose.msra.mxu0 0.0
        %2739 = vmatprep.mubr.f32.mxu0 0.0
        %2740 = vmatmul.mubr.f32.gmra.mxu0 %v2667
        %v2741 = vpop.f32.mrf.mxu0
        %v2742 = vadd.f32 0.0, %v2741
        %v2743 = vpop.f32.mrf.mxu0
        %2744 = vmatprep.mubr.f32.mxu0 0.0
        %2745 = vmatmul.mubr.f32.gmra.mxu0 %v2669
        %v2746 = vpop.f32.mrf.mxu0
        %v2747 = vadd.f32 0.0, %v2746
        %v2748 = vpop.f32.mrf.mxu0
        %2749 = vdwg.mxu0
        %v2750 = vsel %vm1676, %v2464, 0
        %v2752 = vsel %vm1676, %v2466, 0
        %v2754 = vsel %vm1676, %v2478, 0
        %v2756 = vsel %vm1676, %v2480, 0
        %2758 = vmatprep.subr.mxu0 0.0
        %2759 = vmatpush1.xpose.msra.mxu0 0.0
        %2760 = vmatprep.subr.mxu0 0.0
        %2761 = vmatpush1.xpose.msra.mxu0 0.0
        %2762 = vmatprep.subr.mxu0 0.0
        %2763 = vmatpush1.xpose.msra.mxu0 0.0
        %2764 = vmatprep.subr.mxu0 0.0
        %2765 = vmatpush1.xpose.msra.mxu0 0.0
        %2766 = vmatprep.subr.mxu0 0.0
        %2767 = vmatpush1.xpose.msra.mxu0 0.0
        %2768 = vmatprep.subr.mxu0 0.0
        %2769 = vmatpush1.xpose.msra.mxu0 0.0
        %2770 = vmatprep.subr.mxu0 0.0
        %2771 = vmatpush1.xpose.msra.mxu0 0.0
        %2772 = vmatprep.subr.mxu0 0.0
        %2773 = vmatpush1.xpose.msra.mxu0 0.0
        %2774 = vmatprep.subr.mxu0 0.0
        %2775 = vmatpush1.xpose.msra.mxu0 0.0
        %2776 = vmatprep.subr.mxu0 0.0
        %2777 = vmatpush1.xpose.msra.mxu0 0.0
        %2778 = vmatprep.subr.mxu0 0.0
        %2779 = vmatpush1.xpose.msra.mxu0 0.0
        %2780 = vmatprep.subr.mxu0 0.0
        %2781 = vmatpush1.xpose.msra.mxu0 0.0
        %2782 = vmatprep.subr.mxu0 0.0
        %2783 = vmatpush1.xpose.msra.mxu0 0.0
        %2784 = vmatprep.subr.mxu0 0.0
        %2785 = vmatpush1.xpose.msra.mxu0 0.0
        %2786 = vmatprep.subr.mxu0 0.0
        %2787 = vmatpush1.xpose.msra.mxu0 %v2756
        %2788 = vmatprep.subr.mxu0 0.0
        %2789 = vmatpush1.xpose.msra.mxu0 %v2754
        %2790 = vmatprep.subr.mxu0 0.0
        %2791 = vmatpush2.xpose.msra.mxu0 0.0
        %2792 = vmatprep.subr.mxu0 0.0
        %2793 = vmatpush2.xpose.msra.mxu0 0.0
        %2794 = vmatprep.subr.mxu0 0.0
        %2795 = vmatpush2.xpose.msra.mxu0 0.0
        %2796 = vmatprep.subr.mxu0 0.0
        %2797 = vmatpush2.xpose.msra.mxu0 0.0
        %2798 = vmatprep.subr.mxu0 0.0
        %2799 = vmatpush2.xpose.msra.mxu0 0.0
        %2800 = vmatprep.subr.mxu0 0.0
        %2801 = vmatpush2.xpose.msra.mxu0 0.0
        %2802 = vmatprep.subr.mxu0 0.0
        %2803 = vmatpush2.xpose.msra.mxu0 0.0
        %2804 = vmatprep.subr.mxu0 0.0
        %2805 = vmatpush2.xpose.msra.mxu0 0.0
        %2806 = vmatprep.subr.mxu0 0.0
        %2807 = vmatpush2.xpose.msra.mxu0 0.0
        %2808 = vmatprep.subr.mxu0 0.0
        %2809 = vmatpush2.xpose.msra.mxu0 0.0
        %2810 = vmatprep.subr.mxu0 0.0
        %2811 = vmatpush2.xpose.msra.mxu0 0.0
        %2812 = vmatprep.subr.mxu0 0.0
        %2813 = vmatpush2.xpose.msra.mxu0 0.0
        %2814 = vmatprep.subr.mxu0 0.0
        %2815 = vmatpush2.xpose.msra.mxu0 0.0
        %2816 = vmatprep.subr.mxu0 0.0
        %2817 = vmatpush2.xpose.msra.mxu0 0.0
        %2818 = vmatprep.subr.mxu0 0.0
        %2819 = vmatpush2.xpose.msra.mxu0 0.0
        %2820 = vmatprep.subr.mxu0 0.0
        %2821 = vmatpush2.xpose.msra.mxu0 0.0
        %2822 = vmatprep.mubr.f32.mxu0 0.0
        %2823 = vmatmul.mubr.f32.gmra.mxu0 %v2750
        %v2824 = vpop.f32.mrf.mxu0
        %v2825 = vadd.f32 0.0, %v2824
        %v2826 = vpop.f32.mrf.mxu0
        %2827 = vmatprep.mubr.f32.mxu0 0.0
        %2828 = vmatmul.mubr.f32.gmra.mxu0 %v2752
        %v2829 = vpop.f32.mrf.mxu0
        %v2830 = vadd.f32 0.0, %v2829
        %v2831 = vpop.f32.mrf.mxu0
        %2832 = vdwg.mxu0
        %v2833 = vsel %vm2009, %v2576, -inf
        %2834 = vmax.xlane.f32.xlu0 %v2833
        %v2835 = vpop.xlane.xlu0 %2834
        %v2836 = vsel %vm2009, %v2581, -inf
        %2837 = vmax.xlane.f32.xlu0 %v2836
        %v2838 = vpop.xlane.xlu0 %2837
        %v2839 = vsel %vm2009, %v2659, -inf
        %2840 = vmax.xlane.f32.xlu0 %v2839
        %v2841 = vpop.xlane.xlu0 %2840
        %v2842 = vsel %vm2009, %v2664, -inf
        %2843 = vmax.xlane.f32.xlu0 %v2842
        %v2844 = vpop.xlane.xlu0 %2843
        %v2845 = vsel %vm2009, %v2742, -inf
        %2846 = vmax.xlane.f32.xlu0 %v2845
        %v2847 = vpop.xlane.xlu0 %2846
        %v2848 = vsel %vm2009, %v2747, -inf
        %2849 = vmax.xlane.f32.xlu0 %v2848
        %v2850 = vpop.xlane.xlu0 %2849
        %v2851 = vsel %vm2009, %v2825, -inf
        %2852 = vmax.xlane.f32.xlu0 %v2851
        %v2853 = vpop.xlane.xlu0 %2852
        %v2854 = vsel %vm2009, %v2830, -inf
        %2855 = vmax.xlane.f32.xlu0 %v2854
        %v2856 = vpop.xlane.xlu0 %2855
        %v2857 = vsub.f32 %v2576, %v2835
        %v2858 = vsub.f32 %v2581, %v2838
        %v2859 = vsub.f32 %v2659, %v2841
        %v2860 = vsub.f32 %v2664, %v2844
        %v2861 = vsub.f32 %v2742, %v2847
        %v2862 = vsub.f32 %v2747, %v2850
        %v2863 = vsub.f32 %v2825, %v2853
        %v2864 = vsub.f32 %v2830, %v2856
        %v2865 = vmul.f32 %v2857, 1.442695
        %v2866 = vpow.pop %v2865
        %v2867 = vmul.f32 %v2858, 1.442695
        %v2868 = vpow.pop %v2867
        %v2869 = vmul.f32 %v2859, 1.442695
        %v2870 = vpow.pop %v2869
        %v2871 = vmul.f32 %v2860, 1.442695
        %v2872 = vpow.pop %v2871
        %v2873 = vmul.f32 %v2861, 1.442695
        %v2874 = vpow.pop %v2873
        %v2875 = vmul.f32 %v2862, 1.442695
        %v2876 = vpow.pop %v2875
        %v2877 = vmul.f32 %v2863, 1.442695
        %v2878 = vpow.pop %v2877
        %v2879 = vmul.f32 %v2864, 1.442695
        %v2880 = vpow.pop %v2879
        %v2881 = vsel %vm2009, %v2866, 0.0
        %2882 = vadd.xlane.f32.xlu0 %v2881
        %v2883 = vpop.xlane.xlu0 %2882
        %v2884 = vsel %vm2009, %v2868, 0.0
        %2885 = vadd.xlane.f32.xlu0 %v2884
        %v2886 = vpop.xlane.xlu0 %2885
        %v2887 = vsel %vm2009, %v2870, 0.0
        %2888 = vadd.xlane.f32.xlu0 %v2887
        %v2889 = vpop.xlane.xlu0 %2888
        %v2890 = vsel %vm2009, %v2872, 0.0
        %2891 = vadd.xlane.f32.xlu0 %v2890
        %v2892 = vpop.xlane.xlu0 %2891
        %v2893 = vsel %vm2009, %v2874, 0.0
        %2894 = vadd.xlane.f32.xlu0 %v2893
        %v2895 = vpop.xlane.xlu0 %2894
        %v2896 = vsel %vm2009, %v2876, 0.0
        %2897 = vadd.xlane.f32.xlu0 %v2896
        %v2898 = vpop.xlane.xlu0 %2897
        %v2899 = vsel %vm2009, %v2878, 0.0
        %2900 = vadd.xlane.f32.xlu0 %v2899
        %v2901 = vpop.xlane.xlu0 %2900
        %v2902 = vsel %vm2009, %v2880, 0.0
        %2903 = vadd.xlane.f32.xlu0 %v2902
        %v2904 = vpop.xlane.xlu0 %2903
        %v2905 = vrcp.pop %v2883
        %v2906 = vmul.f32 %v2866, %v2905
        %v2907 = vrcp.pop %v2886
        %v2908 = vmul.f32 %v2868, %v2907
        %v2909 = vrcp.pop %v2889
        %v2910 = vmul.f32 %v2870, %v2909
        %v2911 = vrcp.pop %v2892
        %v2912 = vmul.f32 %v2872, %v2911
        %v2913 = vrcp.pop %v2895
        %v2914 = vmul.f32 %v2874, %v2913
        %v2915 = vrcp.pop %v2898
        %v2916 = vmul.f32 %v2876, %v2915
        %v2917 = vrcp.pop %v2901
        %v2918 = vmul.f32 %v2878, %v2917
        %v2919 = vrcp.pop %v2904
        %v2920 = vmul.f32 %v2880, %v2919
        %v2922 = vsel %vm2009, %v2906, 0
        %v2925 = vsel %vm2009, %v2908, 0
        %2927 = vmatprep.subr.mxu0 0.0
        %2928 = vmatpush1.msra.mxu0 0.0
        %2929 = vmatprep.subr.mxu0 0.0
        %2930 = vmatpush1.msra.mxu0 0.0
        %2931 = vmatprep.subr.mxu0 0.0
        %2932 = vmatpush1.msra.mxu0 0.0
        %2933 = vmatprep.subr.mxu0 0.0
        %2934 = vmatpush1.msra.mxu0 0.0
        %2935 = vmatprep.subr.mxu0 0.0
        %2936 = vmatpush1.msra.mxu0 0.0
        %2937 = vmatprep.subr.mxu0 0.0
        %2938 = vmatpush1.msra.mxu0 0.0
        %2939 = vmatprep.subr.mxu0 0.0
        %2940 = vmatpush1.msra.mxu0 0.0
        %2941 = vmatprep.subr.mxu0 0.0
        %2942 = vmatpush1.msra.mxu0 0.0
        %2943 = vmatprep.subr.mxu0 0.0
        %2944 = vmatpush1.msra.mxu0 0.0
        %2945 = vmatprep.subr.mxu0 0.0
        %2946 = vmatpush1.msra.mxu0 0.0
        %2947 = vmatprep.subr.mxu0 0.0
        %2948 = vmatpush1.msra.mxu0 0.0
        %2949 = vmatprep.subr.mxu0 0.0
        %2950 = vmatpush1.msra.mxu0 0.0
        %2951 = vmatprep.subr.mxu0 0.0
        %2952 = vmatpush1.msra.mxu0 0.0
        %2953 = vmatprep.subr.mxu0 0.0
        %2954 = vmatpush1.msra.mxu0 0.0
        %2955 = vmatprep.subr.mxu0 0.0
        %2956 = vmatpush1.msra.mxu0 %v1625
        %2957 = vmatprep.subr.mxu0 0.0
        %2958 = vmatpush1.msra.mxu0 %v1620
        %2959 = vmatprep.subr.mxu0 0.0
        %2960 = vmatpush2.msra.mxu0 0.0
        %2961 = vmatprep.subr.mxu0 0.0
        %2962 = vmatpush2.msra.mxu0 0.0
        %2963 = vmatprep.subr.mxu0 0.0
        %2964 = vmatpush2.msra.mxu0 0.0
        %2965 = vmatprep.subr.mxu0 0.0
        %2966 = vmatpush2.msra.mxu0 0.0
        %2967 = vmatprep.subr.mxu0 0.0
        %2968 = vmatpush2.msra.mxu0 0.0
        %2969 = vmatprep.subr.mxu0 0.0
        %2970 = vmatpush2.msra.mxu0 0.0
        %2971 = vmatprep.subr.mxu0 0.0
        %2972 = vmatpush2.msra.mxu0 0.0
        %2973 = vmatprep.subr.mxu0 0.0
        %2974 = vmatpush2.msra.mxu0 0.0
        %2975 = vmatprep.subr.mxu0 0.0
        %2976 = vmatpush2.msra.mxu0 0.0
        %2977 = vmatprep.subr.mxu0 0.0
        %2978 = vmatpush2.msra.mxu0 0.0
        %2979 = vmatprep.subr.mxu0 0.0
        %2980 = vmatpush2.msra.mxu0 0.0
        %2981 = vmatprep.subr.mxu0 0.0
        %2982 = vmatpush2.msra.mxu0 0.0
        %2983 = vmatprep.subr.mxu0 0.0
        %2984 = vmatpush2.msra.mxu0 0.0
        %2985 = vmatprep.subr.mxu0 0.0
        %2986 = vmatpush2.msra.mxu0 0.0
        %2987 = vmatprep.subr.mxu0 0.0
        %2988 = vmatpush2.msra.mxu0 0.0
        %2989 = vmatprep.subr.mxu0 0.0
        %2990 = vmatpush2.msra.mxu0 0.0
        %2991 = vmatprep.mubr.f32.mxu0 0.0
        %2992 = vmatmul.mubr.f32.gmra.mxu0 %v2922
        %v2993 = vpop.f32.mrf.mxu0
        %v2994 = vadd.f32 0.0, %v2993
        %v2995 = vpop.f32.mrf.mxu0
        %2996 = vmatprep.mubr.f32.mxu0 0.0
        %2997 = vmatmul.mubr.f32.gmra.mxu0 %v2925
        %v2998 = vpop.f32.mrf.mxu0
        %v2999 = vadd.f32 0.0, %v2998
        %v3000 = vpop.f32.mrf.mxu0
        %3001 = vdwg.mxu0
        %v3003 = vsel %vm2009, %v2910, 0
        %v3006 = vsel %vm2009, %v2912, 0
        %3008 = vmatprep.subr.mxu0 0.0
        %3009 = vmatpush1.msra.mxu0 0.0
        %3010 = vmatprep.subr.mxu0 0.0
        %3011 = vmatpush1.msra.mxu0 0.0
        %3012 = vmatprep.subr.mxu0 0.0
        %3013 = vmatpush1.msra.mxu0 0.0
        %3014 = vmatprep.subr.mxu0 0.0
        %3015 = vmatpush1.msra.mxu0 0.0
        %3016 = vmatprep.subr.mxu0 0.0
        %3017 = vmatpush1.msra.mxu0 0.0
        %3018 = vmatprep.subr.mxu0 0.0
        %3019 = vmatpush1.msra.mxu0 0.0
        %3020 = vmatprep.subr.mxu0 0.0
        %3021 = vmatpush1.msra.mxu0 0.0
        %3022 = vmatprep.subr.mxu0 0.0
        %3023 = vmatpush1.msra.mxu0 0.0
        %3024 = vmatprep.subr.mxu0 0.0
        %3025 = vmatpush1.msra.mxu0 0.0
        %3026 = vmatprep.subr.mxu0 0.0
        %3027 = vmatpush1.msra.mxu0 0.0
        %3028 = vmatprep.subr.mxu0 0.0
        %3029 = vmatpush1.msra.mxu0 0.0
        %3030 = vmatprep.subr.mxu0 0.0
        %3031 = vmatpush1.msra.mxu0 0.0
        %3032 = vmatprep.subr.mxu0 0.0
        %3033 = vmatpush1.msra.mxu0 0.0
        %3034 = vmatprep.subr.mxu0 0.0
        %3035 = vmatpush1.msra.mxu0 0.0
        %3036 = vmatprep.subr.mxu0 0.0
        %3037 = vmatpush1.msra.mxu0 %v2486
        %3038 = vmatprep.subr.mxu0 0.0
        %3039 = vmatpush1.msra.mxu0 %v2484
        %3040 = vmatprep.subr.mxu0 0.0
        %3041 = vmatpush2.msra.mxu0 0.0
        %3042 = vmatprep.subr.mxu0 0.0
        %3043 = vmatpush2.msra.mxu0 0.0
        %3044 = vmatprep.subr.mxu0 0.0
        %3045 = vmatpush2.msra.mxu0 0.0
        %3046 = vmatprep.subr.mxu0 0.0
        %3047 = vmatpush2.msra.mxu0 0.0
        %3048 = vmatprep.subr.mxu0 0.0
        %3049 = vmatpush2.msra.mxu0 0.0
        %3050 = vmatprep.subr.mxu0 0.0
        %3051 = vmatpush2.msra.mxu0 0.0
        %3052 = vmatprep.subr.mxu0 0.0
        %3053 = vmatpush2.msra.mxu0 0.0
        %3054 = vmatprep.subr.mxu0 0.0
        %3055 = vmatpush2.msra.mxu0 0.0
        %3056 = vmatprep.subr.mxu0 0.0
        %3057 = vmatpush2.msra.mxu0 0.0
        %3058 = vmatprep.subr.mxu0 0.0
        %3059 = vmatpush2.msra.mxu0 0.0
        %3060 = vmatprep.subr.mxu0 0.0
        %3061 = vmatpush2.msra.mxu0 0.0
        %3062 = vmatprep.subr.mxu0 0.0
        %3063 = vmatpush2.msra.mxu0 0.0
        %3064 = vmatprep.subr.mxu0 0.0
        %3065 = vmatpush2.msra.mxu0 0.0
        %3066 = vmatprep.subr.mxu0 0.0
        %3067 = vmatpush2.msra.mxu0 0.0
        %3068 = vmatprep.subr.mxu0 0.0
        %3069 = vmatpush2.msra.mxu0 0.0
        %3070 = vmatprep.subr.mxu0 0.0
        %3071 = vmatpush2.msra.mxu0 0.0
        %3072 = vmatprep.mubr.f32.mxu0 0.0
        %3073 = vmatmul.mubr.f32.gmra.mxu0 %v3003
        %v3074 = vpop.f32.mrf.mxu0
        %v3075 = vadd.f32 0.0, %v3074
        %v3076 = vpop.f32.mrf.mxu0
        %3077 = vmatprep.mubr.f32.mxu0 0.0
        %3078 = vmatmul.mubr.f32.gmra.mxu0 %v3006
        %v3079 = vpop.f32.mrf.mxu0
        %v3080 = vadd.f32 0.0, %v3079
        %v3081 = vpop.f32.mrf.mxu0
        %3082 = vdwg.mxu0
        %v3084 = vsel %vm2009, %v2914, 0
        %v3087 = vsel %vm2009, %v2916, 0
        %3089 = vmatprep.subr.mxu0 0.0
        %3090 = vmatpush1.msra.mxu0 0.0
        %3091 = vmatprep.subr.mxu0 0.0
        %3092 = vmatpush1.msra.mxu0 0.0
        %3093 = vmatprep.subr.mxu0 0.0
        %3094 = vmatpush1.msra.mxu0 0.0
        %3095 = vmatprep.subr.mxu0 0.0
        %3096 = vmatpush1.msra.mxu0 0.0
        %3097 = vmatprep.subr.mxu0 0.0
        %3098 = vmatpush1.msra.mxu0 0.0
        %3099 = vmatprep.subr.mxu0 0.0
        %3100 = vmatpush1.msra.mxu0 0.0
        %3101 = vmatprep.subr.mxu0 0.0
        %3102 = vmatpush1.msra.mxu0 0.0
        %3103 = vmatprep.subr.mxu0 0.0
        %3104 = vmatpush1.msra.mxu0 0.0
        %3105 = vmatprep.subr.mxu0 0.0
        %3106 = vmatpush1.msra.mxu0 0.0
        %3107 = vmatprep.subr.mxu0 0.0
        %3108 = vmatpush1.msra.mxu0 0.0
        %3109 = vmatprep.subr.mxu0 0.0
        %3110 = vmatpush1.msra.mxu0 0.0
        %3111 = vmatprep.subr.mxu0 0.0
        %3112 = vmatpush1.msra.mxu0 0.0
        %3113 = vmatprep.subr.mxu0 0.0
        %3114 = vmatpush1.msra.mxu0 0.0
        %3115 = vmatprep.subr.mxu0 0.0
        %3116 = vmatpush1.msra.mxu0 0.0
        %3117 = vmatprep.subr.mxu0 0.0
        %3118 = vmatpush1.msra.mxu0 %v2492
        %3119 = vmatprep.subr.mxu0 0.0
        %3120 = vmatpush1.msra.mxu0 %v2490
        %3121 = vmatprep.subr.mxu0 0.0
        %3122 = vmatpush2.msra.mxu0 0.0
        %3123 = vmatprep.subr.mxu0 0.0
        %3124 = vmatpush2.msra.mxu0 0.0
        %3125 = vmatprep.subr.mxu0 0.0
        %3126 = vmatpush2.msra.mxu0 0.0
        %3127 = vmatprep.subr.mxu0 0.0
        %3128 = vmatpush2.msra.mxu0 0.0
        %3129 = vmatprep.subr.mxu0 0.0
        %3130 = vmatpush2.msra.mxu0 0.0
        %3131 = vmatprep.subr.mxu0 0.0
        %3132 = vmatpush2.msra.mxu0 0.0
        %3133 = vmatprep.subr.mxu0 0.0
        %3134 = vmatpush2.msra.mxu0 0.0
        %3135 = vmatprep.subr.mxu0 0.0
        %3136 = vmatpush2.msra.mxu0 0.0
        %3137 = vmatprep.subr.mxu0 0.0
        %3138 = vmatpush2.msra.mxu0 0.0
        %3139 = vmatprep.subr.mxu0 0.0
        %3140 = vmatpush2.msra.mxu0 0.0
        %3141 = vmatprep.subr.mxu0 0.0
        %3142 = vmatpush2.msra.mxu0 0.0
        %3143 = vmatprep.subr.mxu0 0.0
        %3144 = vmatpush2.msra.mxu0 0.0
        %3145 = vmatprep.subr.mxu0 0.0
        %3146 = vmatpush2.msra.mxu0 0.0
        %3147 = vmatprep.subr.mxu0 0.0
        %3148 = vmatpush2.msra.mxu0 0.0
        %3149 = vmatprep.subr.mxu0 0.0
        %3150 = vmatpush2.msra.mxu0 0.0
        %3151 = vmatprep.subr.mxu0 0.0
        %3152 = vmatpush2.msra.mxu0 0.0
        %3153 = vmatprep.mubr.f32.mxu0 0.0
        %3154 = vmatmul.mubr.f32.gmra.mxu0 %v3084
        %v3155 = vpop.f32.mrf.mxu0
        %v3156 = vadd.f32 0.0, %v3155
        %v3157 = vpop.f32.mrf.mxu0
        %3158 = vmatprep.mubr.f32.mxu0 0.0
        %3159 = vmatmul.mubr.f32.gmra.mxu0 %v3087
        %v3160 = vpop.f32.mrf.mxu0
        %v3161 = vadd.f32 0.0, %v3160
        %v3162 = vpop.f32.mrf.mxu0
        %3163 = vdwg.mxu0
        %v3165 = vsel %vm2009, %v2918, 0
        %v3168 = vsel %vm2009, %v2920, 0
        %3170 = vmatprep.subr.mxu0 0.0
        %3171 = vmatpush1.msra.mxu0 0.0
        %3172 = vmatprep.subr.mxu0 0.0
        %3173 = vmatpush1.msra.mxu0 0.0
        %3174 = vmatprep.subr.mxu0 0.0
        %3175 = vmatpush1.msra.mxu0 0.0
        %3176 = vmatprep.subr.mxu0 0.0
        %3177 = vmatpush1.msra.mxu0 0.0
        %3178 = vmatprep.subr.mxu0 0.0
        %3179 = vmatpush1.msra.mxu0 0.0
        %3180 = vmatprep.subr.mxu0 0.0
        %3181 = vmatpush1.msra.mxu0 0.0
        %3182 = vmatprep.subr.mxu0 0.0
        %3183 = vmatpush1.msra.mxu0 0.0
        %3184 = vmatprep.subr.mxu0 0.0
        %3185 = vmatpush1.msra.mxu0 0.0
        %3186 = vmatprep.subr.mxu0 0.0
        %3187 = vmatpush1.msra.mxu0 0.0
        %3188 = vmatprep.subr.mxu0 0.0
        %3189 = vmatpush1.msra.mxu0 0.0
        %3190 = vmatprep.subr.mxu0 0.0
        %3191 = vmatpush1.msra.mxu0 0.0
        %3192 = vmatprep.subr.mxu0 0.0
        %3193 = vmatpush1.msra.mxu0 0.0
        %3194 = vmatprep.subr.mxu0 0.0
        %3195 = vmatpush1.msra.mxu0 0.0
        %3196 = vmatprep.subr.mxu0 0.0
        %3197 = vmatpush1.msra.mxu0 0.0
        %3198 = vmatprep.subr.mxu0 0.0
        %3199 = vmatpush1.msra.mxu0 %v2498
        %3200 = vmatprep.subr.mxu0 0.0
        %3201 = vmatpush1.msra.mxu0 %v2496
        %3202 = vmatprep.subr.mxu0 0.0
        %3203 = vmatpush2.msra.mxu0 0.0
        %3204 = vmatprep.subr.mxu0 0.0
        %3205 = vmatpush2.msra.mxu0 0.0
        %3206 = vmatprep.subr.mxu0 0.0
        %3207 = vmatpush2.msra.mxu0 0.0
        %3208 = vmatprep.subr.mxu0 0.0
        %3209 = vmatpush2.msra.mxu0 0.0
        %3210 = vmatprep.subr.mxu0 0.0
        %3211 = vmatpush2.msra.mxu0 0.0
        %3212 = vmatprep.subr.mxu0 0.0
        %3213 = vmatpush2.msra.mxu0 0.0
        %3214 = vmatprep.subr.mxu0 0.0
        %3215 = vmatpush2.msra.mxu0 0.0
        %3216 = vmatprep.subr.mxu0 0.0
        %3217 = vmatpush2.msra.mxu0 0.0
        %3218 = vmatprep.subr.mxu0 0.0
        %3219 = vmatpush2.msra.mxu0 0.0
        %3220 = vmatprep.subr.mxu0 0.0
        %3221 = vmatpush2.msra.mxu0 0.0
        %3222 = vmatprep.subr.mxu0 0.0
        %3223 = vmatpush2.msra.mxu0 0.0
        %3224 = vmatprep.subr.mxu0 0.0
        %3225 = vmatpush2.msra.mxu0 0.0
        %3226 = vmatprep.subr.mxu0 0.0
        %3227 = vmatpush2.msra.mxu0 0.0
        %3228 = vmatprep.subr.mxu0 0.0
        %3229 = vmatpush2.msra.mxu0 0.0
        %3230 = vmatprep.subr.mxu0 0.0
        %3231 = vmatpush2.msra.mxu0 0.0
        %3232 = vmatprep.subr.mxu0 0.0
        %3233 = vmatpush2.msra.mxu0 0.0
        %3234 = vmatprep.mubr.f32.mxu0 0.0
        %3235 = vmatmul.mubr.f32.gmra.mxu0 %v3165
        %v3236 = vpop.f32.mrf.mxu0
        %v3237 = vadd.f32 0.0, %v3236
        %v3238 = vpop.f32.mrf.mxu0
        %3239 = vmatprep.mubr.f32.mxu0 0.0
        %3240 = vmatmul.mubr.f32.gmra.mxu0 %v3168
        %v3241 = vpop.f32.mrf.mxu0
        %v3242 = vadd.f32 0.0, %v3241
        %v3243 = vpop.f32.mrf.mxu0
        %3244 = vdwg.mxu0
        %3247 = vrot.lane.b32.xlu0 %v3075, 8
        %v3248 = vpop.permute.xlu0 %3247
        %3249 = vrot.lane.b32.xlu0 %v3080, 8
        %v3250 = vpop.permute.xlu0 %3249
        %3255 = vrot.lane.b32.xlu0 %v3156, 16
        %v3256 = vpop.permute.xlu0 %3255
        %3257 = vrot.lane.b32.xlu0 %v3161, 16
        %v3258 = vpop.permute.xlu0 %3257
        %3263 = vrot.lane.b32.xlu0 %v3237, 24
        %v3264 = vpop.permute.xlu0 %3263
        %3265 = vrot.lane.b32.xlu0 %v3242, 24
        %v3266 = vpop.permute.xlu0 %3265
        %v3269 = vsel %vm1676, %v2994, %v3248
        %v3270 = vsel %vm1676, %v2999, %v3250
        %v3271 = vsel %vm2009, %v3269, %v3256
        %v3272 = vsel %vm2009, %v3270, %v3258
        %v3273 = vsel %vm2450, %v3271, %v3264
        %v3274 = vsel %vm2450, %v3272, %v3266
        %v3275 = vld [vmem:[%s18] sm:$0xff]
        %v3276 = vld [vmem:[%s18 + $0x8] sm:$0xff]
        %v3277 = vld [vmem:[%s18 + $0x10] sm:$0xff]
        %v3278 = vld [vmem:[%s18 + $0x18] sm:$0xff]
        %v3279 = vld [vmem:[%s19] sm:$0x1]
        %v3281 = vlaneseq
        %v3282 = vshrl.u32 %v3281, 7
        %v3283 = vsub.s32 0, %v3282
        %v3284 = vrot.slane %v3279, %v3283
        %v3287 = vsel %vm1010, %v2451, 0
        %v3290 = vsel %vm1010, %v2452, 0
        %3292 = vmatprep.subr.mxu0 0.0
        %3293 = vmatpush1.msra.mxu0 0.0
        %3294 = vmatprep.subr.mxu0 0.0
        %3295 = vmatpush1.msra.mxu0 0.0
        %3296 = vmatprep.subr.mxu0 0.0
        %3297 = vmatpush1.msra.mxu0 0.0
        %3298 = vmatprep.subr.mxu0 0.0
        %3299 = vmatpush1.msra.mxu0 0.0
        %3300 = vmatprep.subr.mxu0 0.0
        %3301 = vmatpush1.msra.mxu0 0.0
        %3302 = vmatprep.subr.mxu0 0.0
        %3303 = vmatpush1.msra.mxu0 0.0
        %3304 = vmatprep.subr.mxu0 0.0
        %3305 = vmatpush1.msra.mxu0 0.0
        %3306 = vmatprep.subr.mxu0 0.0
        %3307 = vmatpush1.msra.mxu0 0.0
        %3308 = vmatprep.subr.mxu0 0.0
        %3309 = vmatpush1.msra.mxu0 0.0
        %3310 = vmatprep.subr.mxu0 0.0
        %3311 = vmatpush1.msra.mxu0 0.0
        %3312 = vmatprep.subr.mxu0 0.0
        %3313 = vmatpush1.msra.mxu0 0.0
        %3314 = vmatprep.subr.mxu0 0.0
        %3315 = vmatpush1.msra.mxu0 0.0
        %3316 = vmatprep.subr.mxu0 0.0
        %3317 = vmatpush1.msra.mxu0 %v3278
        %3318 = vmatprep.subr.mxu0 0.0
        %3319 = vmatpush1.msra.mxu0 %v3277
        %3320 = vmatprep.subr.mxu0 0.0
        %3321 = vmatpush1.msra.mxu0 %v3276
        %3322 = vmatprep.subr.mxu0 0.0
        %3323 = vmatpush1.msra.mxu0 %v3275
        %3324 = vmatprep.subr.mxu0 0.0
        %3325 = vmatpush2.msra.mxu0 0.0
        %3326 = vmatprep.subr.mxu0 0.0
        %3327 = vmatpush2.msra.mxu0 0.0
        %3328 = vmatprep.subr.mxu0 0.0
        %3329 = vmatpush2.msra.mxu0 0.0
        %3330 = vmatprep.subr.mxu0 0.0
        %3331 = vmatpush2.msra.mxu0 0.0
        %3332 = vmatprep.subr.mxu0 0.0
        %3333 = vmatpush2.msra.mxu0 0.0
        %3334 = vmatprep.subr.mxu0 0.0
        %3335 = vmatpush2.msra.mxu0 0.0
        %3336 = vmatprep.subr.mxu0 0.0
        %3337 = vmatpush2.msra.mxu0 0.0
        %3338 = vmatprep.subr.mxu0 0.0
        %3339 = vmatpush2.msra.mxu0 0.0
        %3340 = vmatprep.subr.mxu0 0.0
        %3341 = vmatpush2.msra.mxu0 0.0
        %3342 = vmatprep.subr.mxu0 0.0
        %3343 = vmatpush2.msra.mxu0 0.0
        %3344 = vmatprep.subr.mxu0 0.0
        %3345 = vmatpush2.msra.mxu0 0.0
        %3346 = vmatprep.subr.mxu0 0.0
        %3347 = vmatpush2.msra.mxu0 0.0
        %3348 = vmatprep.subr.mxu0 0.0
        %3349 = vmatpush2.msra.mxu0 0.0
        %3350 = vmatprep.subr.mxu0 0.0
        %3351 = vmatpush2.msra.mxu0 0.0
        %3352 = vmatprep.subr.mxu0 0.0
        %3353 = vmatpush2.msra.mxu0 0.0
        %3354 = vmatprep.subr.mxu0 0.0
        %3355 = vmatpush2.msra.mxu0 0.0
        %3356 = vmatprep.mubr.f32.mxu0 0.0
        %3357 = vmatmul.mubr.f32.gmra.mxu0 %v3287
        %v3358 = vpop.f32.mrf.mxu0
        %v3359 = vadd.f32 %v3284, %v3358
        %v3360 = vpop.f32.mrf.mxu0
        %3361 = vmatprep.mubr.f32.mxu0 0.0
        %3362 = vmatmul.mubr.f32.gmra.mxu0 %v3290
        %v3363 = vpop.f32.mrf.mxu0
        %v3364 = vadd.f32 %v3284, %v3363
        %v3365 = vpop.f32.mrf.mxu0
        %3366 = vdwg.mxu0
        %v3367 = vld [vmem:[#allocation31] sm:$0xff]
        %v3368 = vld [vmem:[#allocation31 + $0x8] sm:$0xff]
        %v3369 = vld [vmem:[#allocation31 + $0x10] sm:$0xff]
        %v3370 = vld [vmem:[#allocation31 + $0x18] sm:$0xff]
        %v3371 = vld [vmem:[%s21] sm:$0x1]
        %v3373 = vlaneseq
        %v3374 = vshrl.u32 %v3373, 7
        %v3375 = vsub.s32 0, %v3374
        %v3376 = vrot.slane %v3371, %v3375
        %v3379 = vsel %vm1010, %v3273, 0
        %v3382 = vsel %vm1010, %v3274, 0
        %3384 = vmatprep.subr.mxu0 0.0
        %3385 = vmatpush1.msra.mxu0 0.0
        %3386 = vmatprep.subr.mxu0 0.0
        %3387 = vmatpush1.msra.mxu0 0.0
        %3388 = vmatprep.subr.mxu0 0.0
        %3389 = vmatpush1.msra.mxu0 0.0
        %3390 = vmatprep.subr.mxu0 0.0
        %3391 = vmatpush1.msra.mxu0 0.0
        %3392 = vmatprep.subr.mxu0 0.0
        %3393 = vmatpush1.msra.mxu0 0.0
        %3394 = vmatprep.subr.mxu0 0.0
        %3395 = vmatpush1.msra.mxu0 0.0
        %3396 = vmatprep.subr.mxu0 0.0
        %3397 = vmatpush1.msra.mxu0 0.0
        %3398 = vmatprep.subr.mxu0 0.0
        %3399 = vmatpush1.msra.mxu0 0.0
        %3400 = vmatprep.subr.mxu0 0.0
        %3401 = vmatpush1.msra.mxu0 0.0
        %3402 = vmatprep.subr.mxu0 0.0
        %3403 = vmatpush1.msra.mxu0 0.0
        %3404 = vmatprep.subr.mxu0 0.0
        %3405 = vmatpush1.msra.mxu0 0.0
        %3406 = vmatprep.subr.mxu0 0.0
        %3407 = vmatpush1.msra.mxu0 0.0
        %3408 = vmatprep.subr.mxu0 0.0
        %3409 = vmatpush1.msra.mxu0 %v3370
        %3410 = vmatprep.subr.mxu0 0.0
        %3411 = vmatpush1.msra.mxu0 %v3369
        %3412 = vmatprep.subr.mxu0 0.0
        %3413 = vmatpush1.msra.mxu0 %v3368
        %3414 = vmatprep.subr.mxu0 0.0
        %3415 = vmatpush1.msra.mxu0 %v3367
        %3416 = vmatprep.subr.mxu0 0.0
        %3417 = vmatpush2.msra.mxu0 0.0
        %3418 = vmatprep.subr.mxu0 0.0
        %3419 = vmatpush2.msra.mxu0 0.0
        %3420 = vmatprep.subr.mxu0 0.0
        %3421 = vmatpush2.msra.mxu0 0.0
        %3422 = vmatprep.subr.mxu0 0.0
        %3423 = vmatpush2.msra.mxu0 0.0
        %3424 = vmatprep.subr.mxu0 0.0
        %3425 = vmatpush2.msra.mxu0 0.0
        %3426 = vmatprep.subr.mxu0 0.0
        %3427 = vmatpush2.msra.mxu0 0.0
        %3428 = vmatprep.subr.mxu0 0.0
        %3429 = vmatpush2.msra.mxu0 0.0
        %3430 = vmatprep.subr.mxu0 0.0
        %3431 = vmatpush2.msra.mxu0 0.0
        %3432 = vmatprep.subr.mxu0 0.0
        %3433 = vmatpush2.msra.mxu0 0.0
        %3434 = vmatprep.subr.mxu0 0.0
        %3435 = vmatpush2.msra.mxu0 0.0
        %3436 = vmatprep.subr.mxu0 0.0
        %3437 = vmatpush2.msra.mxu0 0.0
        %3438 = vmatprep.subr.mxu0 0.0
        %3439 = vmatpush2.msra.mxu0 0.0
        %3440 = vmatprep.subr.mxu0 0.0
        %3441 = vmatpush2.msra.mxu0 0.0
        %3442 = vmatprep.subr.mxu0 0.0
        %3443 = vmatpush2.msra.mxu0 0.0
        %3444 = vmatprep.subr.mxu0 0.0
        %3445 = vmatpush2.msra.mxu0 0.0
        %3446 = vmatprep.subr.mxu0 0.0
        %3447 = vmatpush2.msra.mxu0 0.0
        %3448 = vmatprep.mubr.f32.mxu0 0.0
        %3449 = vmatmul.mubr.f32.gmra.mxu0 %v3379
        %v3450 = vpop.f32.mrf.mxu0
        %v3451 = vadd.f32 %v3376, %v3450
        %v3452 = vpop.f32.mrf.mxu0
        %3453 = vmatprep.mubr.f32.mxu0 0.0
        %3454 = vmatmul.mubr.f32.gmra.mxu0 %v3382
        %v3455 = vpop.f32.mrf.mxu0
        %v3456 = vadd.f32 %v3376, %v3455
        %v3457 = vpop.f32.mrf.mxu0
        %3458 = vdwg.mxu0
        %3459 = vst.msk [vmem:[%s998] sm:$0xff] %vm1010, %v3359
        %3460 = vst.msk [vmem:[%s998 + $0x8] sm:$0xff] %vm1010, %v3364
        %3461 = vst.msk [vmem:[%s1005] sm:$0xff] %vm1010, %v3451
        %3462 = vst.msk [vmem:[%s1005 + $0x8] sm:$0xff] %vm1010, %v3456
        %s3463 = sand.u32 %s535, 1
        %s3464 = scalar_lea.sflag [#allocation4], %s3463
        %s3465 = sand.u32 %s535, 1
        %s3466 = smul.addr %s3465, 16
        %s3467 = scalar_lea.vmem [#allocation32], %s3466
        %s3468 = sand.u32 %s561, 1
        %s3469 = scalar_lea.sflag [#allocation34], %s3468
        %s3470 = sand.u32 %s561, 1
        %s3471 = smul.addr %s3470, 16
        %s3472 = scalar_lea.vmem [#allocation33], %s3471
        // Predicated region
        $region185: #{cross_attention_pallas.1} parent=107 // pred_check
          %p3473 = pneg %p545
        $region186: #{cross_attention_pallas.1} parent=107 // pred_check_branch
          %3475 = sbr.rel (%p3473) target = $region188
        $region187: #{cross_attention_pallas.1} parent=107 // pred_region
          %s3477 = ssub.s32 256, 256
          %3478 = vsyncadd %s3464, %s3477
          %s3479 = smul.addr %s55, 2
          %s3480 = smul.addr %s3479, 128
          %s3481 = scalar_lea.hbm %s22, %s3480
          %s3482 = sshll.u32 %s3467, 4
          %s3483 = int_to_ptr.vmem [resolvable:$true] %s3482
          %3488 = dma.vmem_to_hbm [thread:$0]  %s3483, 256, %s3481, %s3464, 128, 128, 8
        $region188: #{cross_attention_pallas.1} parent=107 // pred_fallthru
          _
        // Predicated region
        $region189: #{cross_attention_pallas.1} parent=107 // pred_check
          %p3489 = pneg %p571
        $region190: #{cross_attention_pallas.1} parent=107 // pred_check_branch
          %3491 = sbr.rel (%p3489) target = $region192
        $region191: #{cross_attention_pallas.1} parent=107 // pred_region
          %s3493 = ssub.s32 256, 256
          %3494 = vsyncadd %s3469, %s3493
          %s3495 = smul.addr %s55, 2
          %s3496 = smul.addr %s3495, 128
          %s3497 = scalar_lea.hbm %s23, %s3496
          %s3498 = sshll.u32 %s3472, 4
          %s3499 = int_to_ptr.vmem [resolvable:$true] %s3498
          %3504 = dma.vmem_to_hbm [thread:$0]  %s3499, 256, %s3497, %s3469, 128, 128, 8
        $region192: #{cross_attention_pallas.1} parent=107 // pred_fallthru
          _
      $region108: #{cross_attention_pallas.1} parent=5 // pred_fallthru
        _
      %p3505 = scmp.le.s32.totalorder 2, %s50
      // Predicated region
      $region193: #{cross_attention_pallas.1} parent=5 // pred_check
        %p3506 = pneg %p3505
      $region194: #{cross_attention_pallas.1} parent=5 // pred_check_branch
        %3508 = sbr.rel (%p3506) target = $region196
      $region195: #{cross_attention_pallas.1} parent=5 // pred_region
        %s3509 = ssub.s32 %s50, 2
        // Predicated region
        $region197: #{cross_attention_pallas.1} parent=195 // pred_check
          %p3510 = pneg %p551
        $region198: #{cross_attention_pallas.1} parent=195 // pred_check_branch
          %3512 = sbr.rel (%p3510) target = $region200
        $region199: #{cross_attention_pallas.1} parent=195 // pred_region
          %s3513 = sand.u32 %s536, 1
          %s3514 = scalar_lea.sflag [#allocation4], %s3513
          %s3515 = sand.u32 %s536, 1
          %s3516 = smul.addr %s3515, 16
          %s3517 = scalar_lea.vmem [#allocation32], %s3516
          %3518 = dma.done %s3514, 256
        $region200: #{cross_attention_pallas.1} parent=195 // pred_fallthru
          _
        // Predicated region
        $region201: #{cross_attention_pallas.1} parent=195 // pred_check
          %p3519 = pneg %p577
        $region202: #{cross_attention_pallas.1} parent=195 // pred_check_branch
          %3521 = sbr.rel (%p3519) target = $region204
        $region203: #{cross_attention_pallas.1} parent=195 // pred_region
          %s3522 = sand.u32 %s562, 1
          %s3523 = scalar_lea.sflag [#allocation34], %s3522
          %s3524 = sand.u32 %s562, 1
          %s3525 = smul.addr %s3524, 16
          %s3526 = scalar_lea.vmem [#allocation33], %s3525
          %3527 = dma.done %s3523, 256
        $region204: #{cross_attention_pallas.1} parent=195 // pred_fallthru
          _
      $region196: #{cross_attention_pallas.1} parent=5 // pred_fallthru
        _
    $region6: #{cross_attention_pallas.1} parent=1 // loop_footer
      %s54 = sadd.s32 1, %s50
    $region7: #{cross_attention_pallas.1} parent=1 // loop_footer_branch
      %49 = sbr.rel target = $region3
    $region8: #{cross_attention_pallas.1} parent=1 // loop_exit
      _
    %3528 = vsyncpa [#allocation3], 1
    %s3529 = scalar_lea.sflag [#allocation3], 1
    %3530 = vsyncpa %s3529, 1
    %3531 = vsyncpa [#allocation6], 1
    %s3532 = scalar_lea.sflag [#allocation6], 1
    %3533 = vsyncpa %s3532, 1
    %3534 = vsyncpa [#allocation9], 1
    %3535 = vsyncpa [#allocation12], 1
    %3536 = vsyncpa [#allocation15], 1
    %3537 = vsyncpa [#allocation18], 1
    %3538 = vsyncpa [#allocation21], 1
    %3539 = vsyncpa [#allocation24], 1
    %3540 = vsyncpa [#allocation27], 1
    %3541 = vsyncpa [#allocation30], 1
    %3542 = vsyncpa [#allocation4], 1
    %s3543 = scalar_lea.sflag [#allocation4], 1
    %3544 = vsyncpa %s3543, 1
    %3545 = vsyncpa [#allocation34], 1
    %s3546 = scalar_lea.sflag [#allocation34], 1
    %3547 = vsyncpa %s3546, 1

</llo_original>
